<compile_context>
chip_gen: v6e
topology: v6e:2x2x1
jax: 0.10.0
libtpu: 0.0.40
codegen_flags: <defaults>
</compile_context>

<pallas_src>
import jax
import jax.numpy as jnp
from jax.experimental import pallas as pl
from jax.experimental.pallas import tpu as pltpu

_LN_EPS = 1e-5


def _leaky_relu(h, slope=0.2):
    return jnp.where(h > 0, h, slope * h)


def bc_policy_kernel(
    x_ref,
    w1_ref, b1_ref,
    w2_ref, b2_ref,
    w3_ref, b3_ref,
    w4_ref, b4_ref,
    w5_ref, b5_ref,
    g_ref, beta_ref,
    w6_ref, b6_ref,
    o_ref,
):
    def dense(h_bf16, w_ref, b_ref):
        # bf16 operands into the MXU, f32 accumulation + f32 bias add.
        return jnp.dot(h_bf16, w_ref[...],
                       preferred_element_type=jnp.float32) + b_ref[...]

    def act(h_f32):
        # LeakyReLU in f32 (v5e VPU has no bf16 VALU), then carry the
        # activation as bf16 to halve VMEM/vreg traffic into the next matmul.
        return _leaky_relu(h_f32).astype(jnp.bfloat16)

    h = act(dense(x_ref[...], w1_ref, b1_ref))   # Linear(obs, 512) + LeakyReLU
    h = act(dense(h, w2_ref, b2_ref))            # Linear(512, 512) + LeakyReLU
    h = act(dense(h, w3_ref, b3_ref))            # Linear(512, 256) + LeakyReLU
    h = act(dense(h, w4_ref, b4_ref))            # Linear(256, 256) + LeakyReLU
    h = dense(h, w5_ref, b5_ref)                 # Linear(256, 128) (f32 into LN)

    # LayerNorm(128): biased variance, eps inside rsqrt, elementwise affine (f32).
    mu = jnp.mean(h, axis=-1, keepdims=True)
    var = jnp.mean((h - mu) * (h - mu), axis=-1, keepdims=True)
    h = (h - mu) * jax.lax.rsqrt(var + _LN_EPS)
    h = h * g_ref[...] + beta_ref[...]
    h = act(h)

    # Final Linear (lane-padded to 128 outputs) + Tanh -> lane-dense store.
    h = dense(h, w6_ref, b6_ref)
    o_ref[...] = jnp.tanh(h).astype(o_ref.dtype)


def _round_up(x, m):
    return (x + m - 1) // m * m


def bc_policy_forward(x, params, *, tile_b=1024, act_pad=128,
                      out_dtype=jnp.float32):
    """Fused BCPolicy forward.

    x: (B, obs_dim) float; any B — the wrapper pads to a multiple of the tile.
    params: dict with w1..w6 (in,out), b1..b6 (1,out), gamma, beta (1,128).
    """
    B, obs_dim = x.shape
    act_dim = params["w6"].shape[1]

    # ---- batch tile selection ------------------------------------------
    # 16-row alignment (bf16 sublane packing). Large tiles amortize the
    # ~0.35us per-grid-step overhead; clamp at 2048 so total VMEM stays well
    # under every generation's limit.
    ALIGN = 16
    tile_b = int(max(ALIGN, min(int(tile_b), 2048)))
    tile_b = min(_round_up(tile_b, ALIGN), _round_up(B, ALIGN))
    # Prefer >= 2 grid steps when the batch allows it so v7x's two TensorCores
    # both get work under dimension_semantics=("parallel",).
    if B > ALIGN:
        tile_b = min(tile_b, max(ALIGN, _round_up(pl.cdiv(B, 2), ALIGN)))
    B_pad = _round_up(B, tile_b)
    if B_pad != B:
        x = jnp.pad(x, ((0, B_pad - B), (0, 0)))
    # bf16 input: halves the x DMA; the first matmul consumes bf16 anyway.
    x = x.astype(jnp.bfloat16)

    # bf16 weights (MXU-native); biases / LayerNorm affine stay f32.
    w1 = params["w1"].astype(jnp.bfloat16)
    w2 = params["w2"].astype(jnp.bfloat16)
    w3 = params["w3"].astype(jnp.bfloat16)
    w4 = params["w4"].astype(jnp.bfloat16)
    w5 = params["w5"].astype(jnp.bfloat16)
    b1 = params["b1"].astype(jnp.float32)
    b2 = params["b2"].astype(jnp.float32)
    b3 = params["b3"].astype(jnp.float32)
    b4 = params["b4"].astype(jnp.float32)
    b5 = params["b5"].astype(jnp.float32)
    gamma = params["gamma"].astype(jnp.float32)
    beta = params["beta"].astype(jnp.float32)

    # Zero-pad the last layer to 128 output lanes (sliced back after the call).
    w6 = jnp.zeros((params["w6"].shape[0], act_pad), jnp.bfloat16)
    w6 = w6.at[:, :act_dim].set(params["w6"].astype(jnp.bfloat16))
    b6 = jnp.zeros((1, act_pad), jnp.float32)
    b6 = b6.at[:, :act_dim].set(params["b6"].astype(jnp.float32))

    ordered = [w1, b1, w2, b2, w3, b3, w4, b4, w5, b5, gamma, beta, w6, b6]
    param_bytes = sum(int(p.size) * p.dtype.itemsize for p in ordered)

    # Scoped VMEM limit: scale with the tile, keep headroom under v7x's 64 MiB.
    est_bytes = (param_bytes
                 + 2 * tile_b * obs_dim * 2        # double-buffered bf16 x tiles
                 + 2 * tile_b * act_pad * 4        # double-buffered out tiles
                 + tile_b * (512 + 512 + 256 + 256 + 128) * 6)  # live intermediates
    vmem_limit = int(min(max(32 << 20, 2 * est_bytes), 56 << 20))

    # Advisory cost estimate so XLA schedules surrounding ops sensibly.
    flops = 2 * B_pad * (obs_dim * 512 + 512 * 512 + 512 * 256
                         + 256 * 256 + 256 * 128 + 128 * act_pad)
    transcendentals = B_pad * (act_pad + 1)  # tanh lanes + per-row rsqrt
    bytes_accessed = (param_bytes + B_pad * obs_dim * 2
                      + B_pad * act_pad * jnp.dtype(out_dtype).itemsize)

    def build_call(single_buffer_params):
        def param_spec(arr):
            # Whole parameter resident in VMEM; constant index_map -> DMA'd once.
            # Single-buffered (no useless second pipeline buffer) when supported.
            kwargs = {}
            if single_buffer_params:
                kwargs["pipeline_mode"] = pl.Buffered(buffer_count=1)
            return pl.BlockSpec(arr.shape, lambda i: (0, 0), **kwargs)

        in_specs = [pl.BlockSpec((tile_b, obs_dim), lambda i: (i, 0))]
        in_specs += [param_spec(p) for p in ordered]
        out_spec = pl.BlockSpec((tile_b, act_pad), lambda i: (i, 0))

        return pl.pallas_call(
            bc_policy_kernel,
            out_shape=jax.ShapeDtypeStruct((B_pad, act_pad), out_dtype),
            grid_spec=pltpu.PrefetchScalarGridSpec(
                num_scalar_prefetch=0,
                grid=(B_pad // tile_b,),
                in_specs=in_specs,
                out_specs=out_spec,
            ),
            compiler_params=pltpu.CompilerParams(
                dimension_semantics=("parallel",),
                vmem_limit_bytes=vmem_limit,
            ),
            cost_estimate=pl.CostEstimate(
                flops=flops,
                transcendentals=transcendentals,
                bytes_accessed=bytes_accessed,
            ),
        )

    try:
        out = build_call(single_buffer_params=True)(x, *ordered)
    except Exception:
        # Fallback for jax versions without BlockSpec.pipeline_mode support.
        out = build_call(single_buffer_params=False)(x, *ordered)
    return out[:B, :act_dim]


def init_params(key, obs_dim, act_dim):
    """Deterministic synthetic parameters (shapes match BCPolicy.__init__)."""
    dims = [(obs_dim, 512), (512, 512), (512, 256), (256, 256), (256, 128),
            (128, act_dim)]
    params = {}
    keys = jax.random.split(key, 2 * len(dims) + 2)
    for li, (din, dout) in enumerate(dims, start=1):
        scale = 1.0 / jnp.sqrt(jnp.float32(din))
        params[f"w{li}"] = scale * jax.random.normal(
            keys[2 * (li - 1)], (din, dout), jnp.float32)
        params[f"b{li}"] = 0.1 * jax.random.normal(
            keys[2 * (li - 1) + 1], (1, dout), jnp.float32)
    params["gamma"] = 1.0 + 0.05 * jax.random.normal(keys[-2], (1, 128), jnp.float32)
    params["beta"] = 0.05 * jax.random.normal(keys[-1], (1, 128), jnp.float32)
    return params


def bc_policy_reference(x, params):
    """Pure-JAX reference mirroring the kernel's bf16-matmul / bf16-carry math."""
    def leaky(h):
        return jnp.where(h > 0, h, 0.2 * h)

    def dense(h_bf16, w, b):
        return (jnp.dot(h_bf16, w.astype(jnp.bfloat16),
                        preferred_element_type=jnp.float32)
                + b.astype(jnp.float32))

    h = x.astype(jnp.bfloat16)
    h = leaky(dense(h, params["w1"], params["b1"])).astype(jnp.bfloat16)
    h = leaky(dense(h, params["w2"], params["b2"])).astype(jnp.bfloat16)
    h = leaky(dense(h, params["w3"], params["b3"])).astype(jnp.bfloat16)
    h = leaky(dense(h, params["w4"], params["b4"])).astype(jnp.bfloat16)
    h = dense(h, params["w5"], params["b5"])
    mu = jnp.mean(h, axis=-1, keepdims=True)
    var = jnp.mean((h - mu) ** 2, axis=-1, keepdims=True)
    h = (h - mu) * jax.lax.rsqrt(var + _LN_EPS)
    h = h * params["gamma"] + params["beta"]
    h = leaky(h).astype(jnp.bfloat16)
    return jnp.tanh(dense(h, params["w6"], params["b6"]))


if __name__ == "__main__":
    key = jax.random.PRNGKey(0)
    kp, kx = jax.random.split(key)

    obs_dim, act_dim = 32, 8
    batch = 16  # small test batch; wrapper handles tiling/padding

    params = init_params(kp, obs_dim, act_dim)
    x = jax.random.normal(kx, (batch, obs_dim), jnp.float32)

    out = bc_policy_forward(x, params)
    out = jax.block_until_ready(out)

    ref = bc_policy_reference(x, params)
    assert out.shape == (batch, act_dim)
    assert jnp.allclose(out, ref, atol=1e-2, rtol=1e-2), \
        "Pallas output mismatch vs reference"

    print("KERNEL_OK")
</pallas_src>

<mosaic_0001>
module attributes {stable_mosaic.version = 11 : i64} {
  func.func @bc_policy_kernel(%arg0: i32, %arg1: memref<16x32xbf16, #tpu.memory_space<vmem>>, %arg2: memref<32x512xbf16, #tpu.memory_space<vmem>>, %arg3: memref<1x512xf32, #tpu.memory_space<vmem>>, %arg4: memref<512x512xbf16, #tpu.memory_space<vmem>>, %arg5: memref<1x512xf32, #tpu.memory_space<vmem>>, %arg6: memref<512x256xbf16, #tpu.memory_space<vmem>>, %arg7: memref<1x256xf32, #tpu.memory_space<vmem>>, %arg8: memref<256x256xbf16, #tpu.memory_space<vmem>>, %arg9: memref<1x256xf32, #tpu.memory_space<vmem>>, %arg10: memref<256x128xbf16, #tpu.memory_space<vmem>>, %arg11: memref<1x128xf32, #tpu.memory_space<vmem>>, %arg12: memref<1x128xf32, #tpu.memory_space<vmem>>, %arg13: memref<1x128xf32, #tpu.memory_space<vmem>>, %arg14: memref<128x128xbf16, #tpu.memory_space<vmem>>, %arg15: memref<1x128xf32, #tpu.memory_space<vmem>>, %arg16: memref<16x128xf32, #tpu.memory_space<vmem>>) attributes {dimension_semantics = [#tpu.dimension_semantics<parallel>], iteration_bounds = array<i64: 1>, scalar_prefetch = 0 : i64, scratch_operands = 0 : i64, tpu.core_type = #tpu.core_type<tc>, window_params = [{transform_indices = @transform_0, window_bounds = array<i64: 16, 32>}, {pipeline_mode = #tpu.pipeline_mode<synchronous>, transform_indices = @transform_1, window_bounds = array<i64: 32, 512>}, {pipeline_mode = #tpu.pipeline_mode<synchronous>, transform_indices = @transform_2, window_bounds = array<i64: 1, 512>}, {pipeline_mode = #tpu.pipeline_mode<synchronous>, transform_indices = @transform_3, window_bounds = array<i64: 512, 512>}, {pipeline_mode = #tpu.pipeline_mode<synchronous>, transform_indices = @transform_4, window_bounds = array<i64: 1, 512>}, {pipeline_mode = #tpu.pipeline_mode<synchronous>, transform_indices = @transform_5, window_bounds = array<i64: 512, 256>}, {pipeline_mode = #tpu.pipeline_mode<synchronous>, transform_indices = @transform_6, window_bounds = array<i64: 1, 256>}, {pipeline_mode = #tpu.pipeline_mode<synchronous>, transform_indices = @transform_7, window_bounds = array<i64: 256, 256>}, {pipeline_mode = #tpu.pipeline_mode<synchronous>, transform_indices = @transform_8, window_bounds = array<i64: 1, 256>}, {pipeline_mode = #tpu.pipeline_mode<synchronous>, transform_indices = @transform_9, window_bounds = array<i64: 256, 128>}, {pipeline_mode = #tpu.pipeline_mode<synchronous>, transform_indices = @transform_10, window_bounds = array<i64: 1, 128>}, {pipeline_mode = #tpu.pipeline_mode<synchronous>, transform_indices = @transform_11, window_bounds = array<i64: 1, 128>}, {pipeline_mode = #tpu.pipeline_mode<synchronous>, transform_indices = @transform_12, window_bounds = array<i64: 1, 128>}, {pipeline_mode = #tpu.pipeline_mode<synchronous>, transform_indices = @transform_13, window_bounds = array<i64: 128, 128>}, {pipeline_mode = #tpu.pipeline_mode<synchronous>, transform_indices = @transform_14, window_bounds = array<i64: 1, 128>}, {transform_indices = @transform_15, window_bounds = array<i64: 16, 128>}]} {
    %c0 = arith.constant 0 : index
    %c0_0 = arith.constant 0 : index
    %0 = vector.load %arg1[%c0, %c0_0] : memref<16x32xbf16, #tpu.memory_space<vmem>>, vector<16x32xbf16>
    %c0_1 = arith.constant 0 : index
    %c0_2 = arith.constant 0 : index
    %1 = vector.load %arg2[%c0_1, %c0_2] : memref<32x512xbf16, #tpu.memory_space<vmem>>, vector<32x512xbf16>
    %cst = arith.constant dense<0.000000e+00> : vector<16x512xf32>
    %2 = tpu.matmul %0, %1, %cst {dimension_numbers = #tpu.dot_dimension_numbers<[1], [0], [0], [1], [0, 0, 1, 1], [], []>} : vector<16x32xbf16>, vector<32x512xbf16>, vector<16x512xf32> -> vector<16x512xf32>
    %c0_3 = arith.constant 0 : index
    %c0_4 = arith.constant 0 : index
    %3 = vector.load %arg3[%c0_3, %c0_4] : memref<1x512xf32, #tpu.memory_space<vmem>>, vector<1x512xf32>
    %4 = vector.broadcast %3 : vector<1x512xf32> to vector<16x512xf32>
    %5 = arith.addf %2, %4 : vector<16x512xf32>
    %cst_5 = arith.constant 0.000000e+00 : f32
    %6 = vector.broadcast %cst_5 : f32 to vector<16x512xf32>
    %7 = arith.cmpf ogt, %5, %6 : vector<16x512xf32>
    %cst_6 = arith.constant 2.000000e-01 : f32
    %8 = vector.broadcast %cst_6 : f32 to vector<16x512xf32>
    %9 = arith.mulf %8, %5 : vector<16x512xf32>
    %10 = arith.select %7, %5, %9 : vector<16x512xi1>, vector<16x512xf32>
    %11 = arith.truncf %10 : vector<16x512xf32> to vector<16x512xbf16>
    %c0_7 = arith.constant 0 : index
    %c0_8 = arith.constant 0 : index
    %12 = vector.load %arg4[%c0_7, %c0_8] : memref<512x512xbf16, #tpu.memory_space<vmem>>, vector<512x512xbf16>
    %cst_9 = arith.constant dense<0.000000e+00> : vector<16x512xf32>
    %13 = tpu.matmul %11, %12, %cst_9 {dimension_numbers = #tpu.dot_dimension_numbers<[1], [0], [0], [1], [0, 0, 1, 1], [], []>} : vector<16x512xbf16>, vector<512x512xbf16>, vector<16x512xf32> -> vector<16x512xf32>
    %c0_10 = arith.constant 0 : index
    %c0_11 = arith.constant 0 : index
    %14 = vector.load %arg5[%c0_10, %c0_11] : memref<1x512xf32, #tpu.memory_space<vmem>>, vector<1x512xf32>
    %15 = vector.broadcast %14 : vector<1x512xf32> to vector<16x512xf32>
    %16 = arith.addf %13, %15 : vector<16x512xf32>
    %cst_12 = arith.constant 0.000000e+00 : f32
    %17 = vector.broadcast %cst_12 : f32 to vector<16x512xf32>
    %18 = arith.cmpf ogt, %16, %17 : vector<16x512xf32>
    %cst_13 = arith.constant 2.000000e-01 : f32
    %19 = vector.broadcast %cst_13 : f32 to vector<16x512xf32>
    %20 = arith.mulf %19, %16 : vector<16x512xf32>
    %21 = arith.select %18, %16, %20 : vector<16x512xi1>, vector<16x512xf32>
    %22 = arith.truncf %21 : vector<16x512xf32> to vector<16x512xbf16>
    %c0_14 = arith.constant 0 : index
    %c0_15 = arith.constant 0 : index
    %23 = vector.load %arg6[%c0_14, %c0_15] : memref<512x256xbf16, #tpu.memory_space<vmem>>, vector<512x256xbf16>
    %cst_16 = arith.constant dense<0.000000e+00> : vector<16x256xf32>
    %24 = tpu.matmul %22, %23, %cst_16 {dimension_numbers = #tpu.dot_dimension_numbers<[1], [0], [0], [1], [0, 0, 1, 1], [], []>} : vector<16x512xbf16>, vector<512x256xbf16>, vector<16x256xf32> -> vector<16x256xf32>
    %c0_17 = arith.constant 0 : index
    %c0_18 = arith.constant 0 : index
    %25 = vector.load %arg7[%c0_17, %c0_18] : memref<1x256xf32, #tpu.memory_space<vmem>>, vector<1x256xf32>
    %26 = vector.broadcast %25 : vector<1x256xf32> to vector<16x256xf32>
    %27 = arith.addf %24, %26 : vector<16x256xf32>
    %cst_19 = arith.constant 0.000000e+00 : f32
    %28 = vector.broadcast %cst_19 : f32 to vector<16x256xf32>
    %29 = arith.cmpf ogt, %27, %28 : vector<16x256xf32>
    %cst_20 = arith.constant 2.000000e-01 : f32
    %30 = vector.broadcast %cst_20 : f32 to vector<16x256xf32>
    %31 = arith.mulf %30, %27 : vector<16x256xf32>
    %32 = arith.select %29, %27, %31 : vector<16x256xi1>, vector<16x256xf32>
    %33 = arith.truncf %32 : vector<16x256xf32> to vector<16x256xbf16>
    %c0_21 = arith.constant 0 : index
    %c0_22 = arith.constant 0 : index
    %34 = vector.load %arg8[%c0_21, %c0_22] : memref<256x256xbf16, #tpu.memory_space<vmem>>, vector<256x256xbf16>
    %cst_23 = arith.constant dense<0.000000e+00> : vector<16x256xf32>
    %35 = tpu.matmul %33, %34, %cst_23 {dimension_numbers = #tpu.dot_dimension_numbers<[1], [0], [0], [1], [0, 0, 1, 1], [], []>} : vector<16x256xbf16>, vector<256x256xbf16>, vector<16x256xf32> -> vector<16x256xf32>
    %c0_24 = arith.constant 0 : index
    %c0_25 = arith.constant 0 : index
    %36 = vector.load %arg9[%c0_24, %c0_25] : memref<1x256xf32, #tpu.memory_space<vmem>>, vector<1x256xf32>
    %37 = vector.broadcast %36 : vector<1x256xf32> to vector<16x256xf32>
    %38 = arith.addf %35, %37 : vector<16x256xf32>
    %cst_26 = arith.constant 0.000000e+00 : f32
    %39 = vector.broadcast %cst_26 : f32 to vector<16x256xf32>
    %40 = arith.cmpf ogt, %38, %39 : vector<16x256xf32>
    %cst_27 = arith.constant 2.000000e-01 : f32
    %41 = vector.broadcast %cst_27 : f32 to vector<16x256xf32>
    %42 = arith.mulf %41, %38 : vector<16x256xf32>
    %43 = arith.select %40, %38, %42 : vector<16x256xi1>, vector<16x256xf32>
    %44 = arith.truncf %43 : vector<16x256xf32> to vector<16x256xbf16>
    %c0_28 = arith.constant 0 : index
    %c0_29 = arith.constant 0 : index
    %45 = vector.load %arg10[%c0_28, %c0_29] : memref<256x128xbf16, #tpu.memory_space<vmem>>, vector<256x128xbf16>
    %cst_30 = arith.constant dense<0.000000e+00> : vector<16x128xf32>
    %46 = tpu.matmul %44, %45, %cst_30 {dimension_numbers = #tpu.dot_dimension_numbers<[1], [0], [0], [1], [0, 0, 1, 1], [], []>} : vector<16x256xbf16>, vector<256x128xbf16>, vector<16x128xf32> -> vector<16x128xf32>
    %c0_31 = arith.constant 0 : index
    %c0_32 = arith.constant 0 : index
    %47 = vector.load %arg11[%c0_31, %c0_32] : memref<1x128xf32, #tpu.memory_space<vmem>>, vector<1x128xf32>
    %48 = vector.broadcast %47 : vector<1x128xf32> to vector<16x128xf32>
    %49 = arith.addf %46, %48 : vector<16x128xf32>
    %cst_33 = arith.constant dense<0.000000e+00> : vector<16xf32>
    %50 = vector.multi_reduction <add>, %49, %cst_33 [1] : vector<16x128xf32> to vector<16xf32>
    %51 = vector.shape_cast %50 : vector<16xf32> to vector<16x1xf32>
    %cst_34 = arith.constant 1.280000e+02 : f32
    %52 = vector.broadcast %cst_34 : f32 to vector<16x1xf32>
    %53 = arith.divf %51, %52 : vector<16x1xf32>
    %54 = vector.broadcast %53 : vector<16x1xf32> to vector<16x128xf32>
    %55 = arith.subf %49, %54 : vector<16x128xf32>
    %56 = vector.broadcast %53 : vector<16x1xf32> to vector<16x128xf32>
    %57 = arith.subf %49, %56 : vector<16x128xf32>
    %58 = arith.mulf %55, %57 : vector<16x128xf32>
    %cst_35 = arith.constant dense<0.000000e+00> : vector<16xf32>
    %59 = vector.multi_reduction <add>, %58, %cst_35 [1] : vector<16x128xf32> to vector<16xf32>
    %60 = vector.shape_cast %59 : vector<16xf32> to vector<16x1xf32>
    %cst_36 = arith.constant 1.280000e+02 : f32
    %61 = vector.broadcast %cst_36 : f32 to vector<16x1xf32>
    %62 = arith.divf %60, %61 : vector<16x1xf32>
    %63 = vector.broadcast %53 : vector<16x1xf32> to vector<16x128xf32>
    %64 = arith.subf %49, %63 : vector<16x128xf32>
    %cst_37 = arith.constant 9.99999974E-6 : f32
    %65 = vector.broadcast %cst_37 : f32 to vector<16x1xf32>
    %66 = arith.addf %62, %65 : vector<16x1xf32>
    %67 = math.rsqrt %66 : vector<16x1xf32>
    %68 = vector.broadcast %67 : vector<16x1xf32> to vector<16x128xf32>
    %69 = arith.mulf %64, %68 : vector<16x128xf32>
    %c0_38 = arith.constant 0 : index
    %c0_39 = arith.constant 0 : index
    %70 = vector.load %arg12[%c0_38, %c0_39] : memref<1x128xf32, #tpu.memory_space<vmem>>, vector<1x128xf32>
    %71 = vector.broadcast %70 : vector<1x128xf32> to vector<16x128xf32>
    %72 = arith.mulf %69, %71 : vector<16x128xf32>
    %c0_40 = arith.constant 0 : index
    %c0_41 = arith.constant 0 : index
    %73 = vector.load %arg13[%c0_40, %c0_41] : memref<1x128xf32, #tpu.memory_space<vmem>>, vector<1x128xf32>
    %74 = vector.broadcast %73 : vector<1x128xf32> to vector<16x128xf32>
    %75 = arith.addf %72, %74 : vector<16x128xf32>
    %cst_42 = arith.constant 0.000000e+00 : f32
    %76 = vector.broadcast %cst_42 : f32 to vector<16x128xf32>
    %77 = arith.cmpf ogt, %75, %76 : vector<16x128xf32>
    %cst_43 = arith.constant 2.000000e-01 : f32
    %78 = vector.broadcast %cst_43 : f32 to vector<16x128xf32>
    %79 = arith.mulf %78, %75 : vector<16x128xf32>
    %80 = arith.select %77, %75, %79 : vector<16x128xi1>, vector<16x128xf32>
    %81 = arith.truncf %80 : vector<16x128xf32> to vector<16x128xbf16>
    %c0_44 = arith.constant 0 : index
    %c0_45 = arith.constant 0 : index
    %82 = vector.load %arg14[%c0_44, %c0_45] : memref<128x128xbf16, #tpu.memory_space<vmem>>, vector<128x128xbf16>
    %cst_46 = arith.constant dense<0.000000e+00> : vector<16x128xf32>
    %83 = tpu.matmul %81, %82, %cst_46 {dimension_numbers = #tpu.dot_dimension_numbers<[1], [0], [0], [1], [0, 0, 1, 1], [], []>} : vector<16x128xbf16>, vector<128x128xbf16>, vector<16x128xf32> -> vector<16x128xf32>
    %c0_47 = arith.constant 0 : index
    %c0_48 = arith.constant 0 : index
    %84 = vector.load %arg15[%c0_47, %c0_48] : memref<1x128xf32, #tpu.memory_space<vmem>>, vector<1x128xf32>
    %85 = vector.broadcast %84 : vector<1x128xf32> to vector<16x128xf32>
    %86 = arith.addf %83, %85 : vector<16x128xf32>
    %87 = math.tanh %86 : vector<16x128xf32>
    %c0_49 = arith.constant 0 : index
    %c0_50 = arith.constant 0 : index
    %88 = vector.load %arg16[%c0_49, %c0_50] : memref<16x128xf32, #tpu.memory_space<vmem>>, vector<16x128xf32>
    tpu.vector_store %arg16[%c0_49, %c0_50], %87 {strides = array<i32>} : memref<16x128xf32, #tpu.memory_space<vmem>>, vector<16x128xf32>,
    return
  }
  func.func @transform_0(%arg0: i32) -> (i32, i32) {
    %c0_i32 = arith.constant 0 : i32
    %c0_i32_0 = arith.constant 0 : i32
    return %arg0, %c0_i32 : i32, i32
  }
  func.func @transform_1(%arg0: i32) -> (i32, i32) {
    %c0_i32 = arith.constant 0 : i32
    %c0_i32_0 = arith.constant 0 : i32
    %c0_i32_1 = arith.constant 0 : i32
    return %c0_i32, %c0_i32_0 : i32, i32
  }
  func.func @transform_2(%arg0: i32) -> (i32, i32) {
    %c0_i32 = arith.constant 0 : i32
    %c0_i32_0 = arith.constant 0 : i32
    %c0_i32_1 = arith.constant 0 : i32
    return %c0_i32, %c0_i32_0 : i32, i32
  }
  func.func @transform_3(%arg0: i32) -> (i32, i32) {
    %c0_i32 = arith.constant 0 : i32
    %c0_i32_0 = arith.constant 0 : i32
    %c0_i32_1 = arith.constant 0 : i32
    return %c0_i32, %c0_i32_0 : i32, i32
  }
  func.func @transform_4(%arg0: i32) -> (i32, i32) {
    %c0_i32 = arith.constant 0 : i32
    %c0_i32_0 = arith.constant 0 : i32
    %c0_i32_1 = arith.constant 0 : i32
    return %c0_i32, %c0_i32_0 : i32, i32
  }
  func.func @transform_5(%arg0: i32) -> (i32, i32) {
    %c0_i32 = arith.constant 0 : i32
    %c0_i32_0 = arith.constant 0 : i32
    %c0_i32_1 = arith.constant 0 : i32
    return %c0_i32, %c0_i32_0 : i32, i32
  }
  func.func @transform_6(%arg0: i32) -> (i32, i32) {
    %c0_i32 = arith.constant 0 : i32
    %c0_i32_0 = arith.constant 0 : i32
    %c0_i32_1 = arith.constant 0 : i32
    return %c0_i32, %c0_i32_0 : i32, i32
  }
  func.func @transform_7(%arg0: i32) -> (i32, i32) {
    %c0_i32 = arith.constant 0 : i32
    %c0_i32_0 = arith.constant 0 : i32
    %c0_i32_1 = arith.constant 0 : i32
    return %c0_i32, %c0_i32_0 : i32, i32
  }
  func.func @transform_8(%arg0: i32) -> (i32, i32) {
    %c0_i32 = arith.constant 0 : i32
    %c0_i32_0 = arith.constant 0 : i32
    %c0_i32_1 = arith.constant 0 : i32
    return %c0_i32, %c0_i32_0 : i32, i32
  }
  func.func @transform_9(%arg0: i32) -> (i32, i32) {
    %c0_i32 = arith.constant 0 : i32
    %c0_i32_0 = arith.constant 0 : i32
    %c0_i32_1 = arith.constant 0 : i32
    return %c0_i32, %c0_i32_0 : i32, i32
  }
  func.func @transform_10(%arg0: i32) -> (i32, i32) {
    %c0_i32 = arith.constant 0 : i32
    %c0_i32_0 = arith.constant 0 : i32
    %c0_i32_1 = arith.constant 0 : i32
    return %c0_i32, %c0_i32_0 : i32, i32
  }
  func.func @transform_11(%arg0: i32) -> (i32, i32) {
    %c0_i32 = arith.constant 0 : i32
    %c0_i32_0 = arith.constant 0 : i32
    %c0_i32_1 = arith.constant 0 : i32
    return %c0_i32, %c0_i32_0 : i32, i32
  }
  func.func @transform_12(%arg0: i32) -> (i32, i32) {
    %c0_i32 = arith.constant 0 : i32
    %c0_i32_0 = arith.constant 0 : i32
    %c0_i32_1 = arith.constant 0 : i32
    return %c0_i32, %c0_i32_0 : i32, i32
  }
  func.func @transform_13(%arg0: i32) -> (i32, i32) {
    %c0_i32 = arith.constant 0 : i32
    %c0_i32_0 = arith.constant 0 : i32
    %c0_i32_1 = arith.constant 0 : i32
    return %c0_i32, %c0_i32_0 : i32, i32
  }
  func.func @transform_14(%arg0: i32) -> (i32, i32) {
    %c0_i32 = arith.constant 0 : i32
    %c0_i32_0 = arith.constant 0 : i32
    %c0_i32_1 = arith.constant 0 : i32
    return %c0_i32, %c0_i32_0 : i32, i32
  }
  func.func @transform_15(%arg0: i32) -> (i32, i32) {
    %c0_i32 = arith.constant 0 : i32
    %c0_i32_0 = arith.constant 0 : i32
    return %arg0, %c0_i32 : i32, i32
  }
}

module attributes {stable_mosaic.version = 11 : i64} {
  func.func @bc_policy_kernel(%arg0: i32, %arg1: memref<16x32xbf16, #tpu.memory_space<vmem>>, %arg2: memref<32x512xbf16, #tpu.memory_space<vmem>>, %arg3: memref<1x512xf32, #tpu.memory_space<vmem>>, %arg4: memref<512x512xbf16, #tpu.memory_space<vmem>>, %arg5: memref<1x512xf32, #tpu.memory_space<vmem>>, %arg6: memref<512x256xbf16, #tpu.memory_space<vmem>>, %arg7: memref<1x256xf32, #tpu.memory_space<vmem>>, %arg8: memref<256x256xbf16, #tpu.memory_space<vmem>>, %arg9: memref<1x256xf32, #tpu.memory_space<vmem>>, %arg10: memref<256x128xbf16, #tpu.memory_space<vmem>>, %arg11: memref<1x128xf32, #tpu.memory_space<vmem>>, %arg12: memref<1x128xf32, #tpu.memory_space<vmem>>, %arg13: memref<1x128xf32, #tpu.memory_space<vmem>>, %arg14: memref<128x128xbf16, #tpu.memory_space<vmem>>, %arg15: memref<1x128xf32, #tpu.memory_space<vmem>>, %arg16: memref<16x128xf32, #tpu.memory_space<vmem>>) attributes {dimension_semantics = [#tpu.dimension_semantics<parallel>], iteration_bounds = array<i64: 1>, scalar_prefetch = 0 : i64, scratch_operands = 0 : i64, tpu.core_type = #tpu.core_type<tc>, window_params = [{transform_indices = @transform_0, window_bounds = array<i64: 16, 32>}, {pipeline_mode = #tpu.pipeline_mode<synchronous>, transform_indices = @transform_1, window_bounds = array<i64: 32, 512>}, {pipeline_mode = #tpu.pipeline_mode<synchronous>, transform_indices = @transform_2, window_bounds = array<i64: 1, 512>}, {pipeline_mode = #tpu.pipeline_mode<synchronous>, transform_indices = @transform_3, window_bounds = array<i64: 512, 512>}, {pipeline_mode = #tpu.pipeline_mode<synchronous>, transform_indices = @transform_4, window_bounds = array<i64: 1, 512>}, {pipeline_mode = #tpu.pipeline_mode<synchronous>, transform_indices = @transform_5, window_bounds = array<i64: 512, 256>}, {pipeline_mode = #tpu.pipeline_mode<synchronous>, transform_indices = @transform_6, window_bounds = array<i64: 1, 256>}, {pipeline_mode = #tpu.pipeline_mode<synchronous>, transform_indices = @transform_7, window_bounds = array<i64: 256, 256>}, {pipeline_mode = #tpu.pipeline_mode<synchronous>, transform_indices = @transform_8, window_bounds = array<i64: 1, 256>}, {pipeline_mode = #tpu.pipeline_mode<synchronous>, transform_indices = @transform_9, window_bounds = array<i64: 256, 128>}, {pipeline_mode = #tpu.pipeline_mode<synchronous>, transform_indices = @transform_10, window_bounds = array<i64: 1, 128>}, {pipeline_mode = #tpu.pipeline_mode<synchronous>, transform_indices = @transform_11, window_bounds = array<i64: 1, 128>}, {pipeline_mode = #tpu.pipeline_mode<synchronous>, transform_indices = @transform_12, window_bounds = array<i64: 1, 128>}, {pipeline_mode = #tpu.pipeline_mode<synchronous>, transform_indices = @transform_13, window_bounds = array<i64: 128, 128>}, {pipeline_mode = #tpu.pipeline_mode<synchronous>, transform_indices = @transform_14, window_bounds = array<i64: 1, 128>}, {transform_indices = @transform_15, window_bounds = array<i64: 16, 128>}]} {
    %c0 = arith.constant 0 : index
    %c0_0 = arith.constant 0 : index
    %0 = vector.load %arg1[%c0, %c0_0] : memref<16x32xbf16, #tpu.memory_space<vmem>>, vector<16x32xbf16>
    %c0_1 = arith.constant 0 : index
    %c0_2 = arith.constant 0 : index
    %1 = vector.load %arg2[%c0_1, %c0_2] : memref<32x512xbf16, #tpu.memory_space<vmem>>, vector<32x512xbf16>
    %cst = arith.constant dense<0.000000e+00> : vector<16x512xf32>
    %2 = tpu.matmul %0, %1, %cst {dimension_numbers = #tpu.dot_dimension_numbers<[1], [0], [0], [1], [0, 0, 1, 1], [], []>} : vector<16x32xbf16>, vector<32x512xbf16>, vector<16x512xf32> -> vector<16x512xf32>
    %c0_3 = arith.constant 0 : index
    %c0_4 = arith.constant 0 : index
    %3 = vector.load %arg3[%c0_3, %c0_4] : memref<1x512xf32, #tpu.memory_space<vmem>>, vector<1x512xf32>
    %4 = vector.broadcast %3 : vector<1x512xf32> to vector<16x512xf32>
    %5 = arith.addf %2, %4 : vector<16x512xf32>
    %cst_5 = arith.constant 0.000000e+00 : f32
    %6 = vector.broadcast %cst_5 : f32 to vector<16x512xf32>
    %7 = arith.cmpf ogt, %5, %6 : vector<16x512xf32>
    %cst_6 = arith.constant 2.000000e-01 : f32
    %8 = vector.broadcast %cst_6 : f32 to vector<16x512xf32>
    %9 = arith.mulf %8, %5 : vector<16x512xf32>
    %10 = arith.select %7, %5, %9 : vector<16x512xi1>, vector<16x512xf32>
    %11 = arith.truncf %10 : vector<16x512xf32> to vector<16x512xbf16>
    %c0_7 = arith.constant 0 : index
    %c0_8 = arith.constant 0 : index
    %12 = vector.load %arg4[%c0_7, %c0_8] : memref<512x512xbf16, #tpu.memory_space<vmem>>, vector<512x512xbf16>
    %cst_9 = arith.constant dense<0.000000e+00> : vector<16x512xf32>
    %13 = tpu.matmul %11, %12, %cst_9 {dimension_numbers = #tpu.dot_dimension_numbers<[1], [0], [0], [1], [0, 0, 1, 1], [], []>} : vector<16x512xbf16>, vector<512x512xbf16>, vector<16x512xf32> -> vector<16x512xf32>
    %c0_10 = arith.constant 0 : index
    %c0_11 = arith.constant 0 : index
    %14 = vector.load %arg5[%c0_10, %c0_11] : memref<1x512xf32, #tpu.memory_space<vmem>>, vector<1x512xf32>
    %15 = vector.broadcast %14 : vector<1x512xf32> to vector<16x512xf32>
    %16 = arith.addf %13, %15 : vector<16x512xf32>
    %cst_12 = arith.constant 0.000000e+00 : f32
    %17 = vector.broadcast %cst_12 : f32 to vector<16x512xf32>
    %18 = arith.cmpf ogt, %16, %17 : vector<16x512xf32>
    %cst_13 = arith.constant 2.000000e-01 : f32
    %19 = vector.broadcast %cst_13 : f32 to vector<16x512xf32>
    %20 = arith.mulf %19, %16 : vector<16x512xf32>
    %21 = arith.select %18, %16, %20 : vector<16x512xi1>, vector<16x512xf32>
    %22 = arith.truncf %21 : vector<16x512xf32> to vector<16x512xbf16>
    %c0_14 = arith.constant 0 : index
    %c0_15 = arith.constant 0 : index
    %23 = vector.load %arg6[%c0_14, %c0_15] : memref<512x256xbf16, #tpu.memory_space<vmem>>, vector<512x256xbf16>
    %cst_16 = arith.constant dense<0.000000e+00> : vector<16x256xf32>
    %24 = tpu.matmul %22, %23, %cst_16 {dimension_numbers = #tpu.dot_dimension_numbers<[1], [0], [0], [1], [0, 0, 1, 1], [], []>} : vector<16x512xbf16>, vector<512x256xbf16>, vector<16x256xf32> -> vector<16x256xf32>
    %c0_17 = arith.constant 0 : index
    %c0_18 = arith.constant 0 : index
    %25 = vector.load %arg7[%c0_17, %c0_18] : memref<1x256xf32, #tpu.memory_space<vmem>>, vector<1x256xf32>
    %26 = vector.broadcast %25 : vector<1x256xf32> to vector<16x256xf32>
    %27 = arith.addf %24, %26 : vector<16x256xf32>
    %cst_19 = arith.constant 0.000000e+00 : f32
    %28 = vector.broadcast %cst_19 : f32 to vector<16x256xf32>
    %29 = arith.cmpf ogt, %27, %28 : vector<16x256xf32>
    %cst_20 = arith.constant 2.000000e-01 : f32
    %30 = vector.broadcast %cst_20 : f32 to vector<16x256xf32>
    %31 = arith.mulf %30, %27 : vector<16x256xf32>
    %32 = arith.select %29, %27, %31 : vector<16x256xi1>, vector<16x256xf32>
    %33 = arith.truncf %32 : vector<16x256xf32> to vector<16x256xbf16>
    %c0_21 = arith.constant 0 : index
    %c0_22 = arith.constant 0 : index
    %34 = vector.load %arg8[%c0_21, %c0_22] : memref<256x256xbf16, #tpu.memory_space<vmem>>, vector<256x256xbf16>
    %cst_23 = arith.constant dense<0.000000e+00> : vector<16x256xf32>
    %35 = tpu.matmul %33, %34, %cst_23 {dimension_numbers = #tpu.dot_dimension_numbers<[1], [0], [0], [1], [0, 0, 1, 1], [], []>} : vector<16x256xbf16>, vector<256x256xbf16>, vector<16x256xf32> -> vector<16x256xf32>
    %c0_24 = arith.constant 0 : index
    %c0_25 = arith.constant 0 : index
    %36 = vector.load %arg9[%c0_24, %c0_25] : memref<1x256xf32, #tpu.memory_space<vmem>>, vector<1x256xf32>
    %37 = vector.broadcast %36 : vector<1x256xf32> to vector<16x256xf32>
    %38 = arith.addf %35, %37 : vector<16x256xf32>
    %cst_26 = arith.constant 0.000000e+00 : f32
    %39 = vector.broadcast %cst_26 : f32 to vector<16x256xf32>
    %40 = arith.cmpf ogt, %38, %39 : vector<16x256xf32>
    %cst_27 = arith.constant 2.000000e-01 : f32
    %41 = vector.broadcast %cst_27 : f32 to vector<16x256xf32>
    %42 = arith.mulf %41, %38 : vector<16x256xf32>
    %43 = arith.select %40, %38, %42 : vector<16x256xi1>, vector<16x256xf32>
    %44 = arith.truncf %43 : vector<16x256xf32> to vector<16x256xbf16>
    %c0_28 = arith.constant 0 : index
    %c0_29 = arith.constant 0 : index
    %45 = vector.load %arg10[%c0_28, %c0_29] : memref<256x128xbf16, #tpu.memory_space<vmem>>, vector<256x128xbf16>
    %cst_30 = arith.constant dense<0.000000e+00> : vector<16x128xf32>
    %46 = tpu.matmul %44, %45, %cst_30 {dimension_numbers = #tpu.dot_dimension_numbers<[1], [0], [0], [1], [0, 0, 1, 1], [], []>} : vector<16x256xbf16>, vector<256x128xbf16>, vector<16x128xf32> -> vector<16x128xf32>
    %c0_31 = arith.constant 0 : index
    %c0_32 = arith.constant 0 : index
    %47 = vector.load %arg11[%c0_31, %c0_32] : memref<1x128xf32, #tpu.memory_space<vmem>>, vector<1x128xf32>
    %48 = vector.broadcast %47 : vector<1x128xf32> to vector<16x128xf32>
    %49 = arith.addf %46, %48 : vector<16x128xf32>
    %cst_33 = arith.constant dense<0.000000e+00> : vector<16xf32>
    %50 = vector.multi_reduction <add>, %49, %cst_33 [1] : vector<16x128xf32> to vector<16xf32>
    %51 = vector.shape_cast %50 : vector<16xf32> to vector<16x1xf32>
    %cst_34 = arith.constant 1.280000e+02 : f32
    %52 = vector.broadcast %cst_34 : f32 to vector<16x1xf32>
    %53 = arith.divf %51, %52 : vector<16x1xf32>
    %54 = vector.broadcast %53 : vector<16x1xf32> to vector<16x128xf32>
    %55 = arith.subf %49, %54 : vector<16x128xf32>
    %56 = vector.broadcast %53 : vector<16x1xf32> to vector<16x128xf32>
    %57 = arith.subf %49, %56 : vector<16x128xf32>
    %58 = arith.mulf %55, %57 : vector<16x128xf32>
    %cst_35 = arith.constant dense<0.000000e+00> : vector<16xf32>
    %59 = vector.multi_reduction <add>, %58, %cst_35 [1] : vector<16x128xf32> to vector<16xf32>
    %60 = vector.shape_cast %59 : vector<16xf32> to vector<16x1xf32>
    %cst_36 = arith.constant 1.280000e+02 : f32
    %61 = vector.broadcast %cst_36 : f32 to vector<16x1xf32>
    %62 = arith.divf %60, %61 : vector<16x1xf32>
    %63 = vector.broadcast %53 : vector<16x1xf32> to vector<16x128xf32>
    %64 = arith.subf %49, %63 : vector<16x128xf32>
    %cst_37 = arith.constant 9.99999974E-6 : f32
    %65 = vector.broadcast %cst_37 : f32 to vector<16x1xf32>
    %66 = arith.addf %62, %65 : vector<16x1xf32>
    %67 = math.rsqrt %66 : vector<16x1xf32>
    %68 = vector.broadcast %67 : vector<16x1xf32> to vector<16x128xf32>
    %69 = arith.mulf %64, %68 : vector<16x128xf32>
    %c0_38 = arith.constant 0 : index
    %c0_39 = arith.constant 0 : index
    %70 = vector.load %arg12[%c0_38, %c0_39] : memref<1x128xf32, #tpu.memory_space<vmem>>, vector<1x128xf32>
    %71 = vector.broadcast %70 : vector<1x128xf32> to vector<16x128xf32>
    %72 = arith.mulf %69, %71 : vector<16x128xf32>
    %c0_40 = arith.constant 0 : index
    %c0_41 = arith.constant 0 : index
    %73 = vector.load %arg13[%c0_40, %c0_41] : memref<1x128xf32, #tpu.memory_space<vmem>>, vector<1x128xf32>
    %74 = vector.broadcast %73 : vector<1x128xf32> to vector<16x128xf32>
    %75 = arith.addf %72, %74 : vector<16x128xf32>
    %cst_42 = arith.constant 0.000000e+00 : f32
    %76 = vector.broadcast %cst_42 : f32 to vector<16x128xf32>
    %77 = arith.cmpf ogt, %75, %76 : vector<16x128xf32>
    %cst_43 = arith.constant 2.000000e-01 : f32
    %78 = vector.broadcast %cst_43 : f32 to vector<16x128xf32>
    %79 = arith.mulf %78, %75 : vector<16x128xf32>
    %80 = arith.select %77, %75, %79 : vector<16x128xi1>, vector<16x128xf32>
    %81 = arith.truncf %80 : vector<16x128xf32> to vector<16x128xbf16>
    %c0_44 = arith.constant 0 : index
    %c0_45 = arith.constant 0 : index
    %82 = vector.load %arg14[%c0_44, %c0_45] : memref<128x128xbf16, #tpu.memory_space<vmem>>, vector<128x128xbf16>
    %cst_46 = arith.constant dense<0.000000e+00> : vector<16x128xf32>
    %83 = tpu.matmul %81, %82, %cst_46 {dimension_numbers = #tpu.dot_dimension_numbers<[1], [0], [0], [1], [0, 0, 1, 1], [], []>} : vector<16x128xbf16>, vector<128x128xbf16>, vector<16x128xf32> -> vector<16x128xf32>
    %c0_47 = arith.constant 0 : index
    %c0_48 = arith.constant 0 : index
    %84 = vector.load %arg15[%c0_47, %c0_48] : memref<1x128xf32, #tpu.memory_space<vmem>>, vector<1x128xf32>
    %85 = vector.broadcast %84 : vector<1x128xf32> to vector<16x128xf32>
    %86 = arith.addf %83, %85 : vector<16x128xf32>
    %87 = math.tanh %86 : vector<16x128xf32>
    %c0_49 = arith.constant 0 : index
    %c0_50 = arith.constant 0 : index
    %88 = vector.load %arg16[%c0_49, %c0_50] : memref<16x128xf32, #tpu.memory_space<vmem>>, vector<16x128xf32>
    tpu.vector_store %arg16[%c0_49, %c0_50], %87 {strides = array<i32>} : memref<16x128xf32, #tpu.memory_space<vmem>>, vector<16x128xf32>,
    return
  }
  func.func @transform_0(%arg0: i32) -> (i32, i32) {
    %c0_i32 = arith.constant 0 : i32
    %c0_i32_0 = arith.constant 0 : i32
    return %arg0, %c0_i32 : i32, i32
  }
  func.func @transform_1(%arg0: i32) -> (i32, i32) {
    %c0_i32 = arith.constant 0 : i32
    %c0_i32_0 = arith.constant 0 : i32
    %c0_i32_1 = arith.constant 0 : i32
    return %c0_i32, %c0_i32_0 : i32, i32
  }
  func.func @transform_2(%arg0: i32) -> (i32, i32) {
    %c0_i32 = arith.constant 0 : i32
    %c0_i32_0 = arith.constant 0 : i32
    %c0_i32_1 = arith.constant 0 : i32
    return %c0_i32, %c0_i32_0 : i32, i32
  }
  func.func @transform_3(%arg0: i32) -> (i32, i32) {
    %c0_i32 = arith.constant 0 : i32
    %c0_i32_0 = arith.constant 0 : i32
    %c0_i32_1 = arith.constant 0 : i32
    return %c0_i32, %c0_i32_0 : i32, i32
  }
  func.func @transform_4(%arg0: i32) -> (i32, i32) {
    %c0_i32 = arith.constant 0 : i32
    %c0_i32_0 = arith.constant 0 : i32
    %c0_i32_1 = arith.constant 0 : i32
    return %c0_i32, %c0_i32_0 : i32, i32
  }
  func.func @transform_5(%arg0: i32) -> (i32, i32) {
    %c0_i32 = arith.constant 0 : i32
    %c0_i32_0 = arith.constant 0 : i32
    %c0_i32_1 = arith.constant 0 : i32
    return %c0_i32, %c0_i32_0 : i32, i32
  }
  func.func @transform_6(%arg0: i32) -> (i32, i32) {
    %c0_i32 = arith.constant 0 : i32
    %c0_i32_0 = arith.constant 0 : i32
    %c0_i32_1 = arith.constant 0 : i32
    return %c0_i32, %c0_i32_0 : i32, i32
  }
  func.func @transform_7(%arg0: i32) -> (i32, i32) {
    %c0_i32 = arith.constant 0 : i32
    %c0_i32_0 = arith.constant 0 : i32
    %c0_i32_1 = arith.constant 0 : i32
    return %c0_i32, %c0_i32_0 : i32, i32
  }
  func.func @transform_8(%arg0: i32) -> (i32, i32) {
    %c0_i32 = arith.constant 0 : i32
    %c0_i32_0 = arith.constant 0 : i32
    %c0_i32_1 = arith.constant 0 : i32
    return %c0_i32, %c0_i32_0 : i32, i32
  }
  func.func @transform_9(%arg0: i32) -> (i32, i32) {
    %c0_i32 = arith.constant 0 : i32
    %c0_i32_0 = arith.constant 0 : i32
    %c0_i32_1 = arith.constant 0 : i32
    return %c0_i32, %c0_i32_0 : i32, i32
  }
  func.func @transform_10(%arg0: i32) -> (i32, i32) {
    %c0_i32 = arith.constant 0 : i32
    %c0_i32_0 = arith.constant 0 : i32
    %c0_i32_1 = arith.constant 0 : i32
    return %c0_i32, %c0_i32_0 : i32, i32
  }
  func.func @transform_11(%arg0: i32) -> (i32, i32) {
    %c0_i32 = arith.constant 0 : i32
    %c0_i32_0 = arith.constant 0 : i32
    %c0_i32_1 = arith.constant 0 : i32
    return %c0_i32, %c0_i32_0 : i32, i32
  }
  func.func @transform_12(%arg0: i32) -> (i32, i32) {
    %c0_i32 = arith.constant 0 : i32
    %c0_i32_0 = arith.constant 0 : i32
    %c0_i32_1 = arith.constant 0 : i32
    return %c0_i32, %c0_i32_0 : i32, i32
  }
  func.func @transform_13(%arg0: i32) -> (i32, i32) {
    %c0_i32 = arith.constant 0 : i32
    %c0_i32_0 = arith.constant 0 : i32
    %c0_i32_1 = arith.constant 0 : i32
    return %c0_i32, %c0_i32_0 : i32, i32
  }
  func.func @transform_14(%arg0: i32) -> (i32, i32) {
    %c0_i32 = arith.constant 0 : i32
    %c0_i32_0 = arith.constant 0 : i32
    %c0_i32_1 = arith.constant 0 : i32
    return %c0_i32, %c0_i32_0 : i32, i32
  }
  func.func @transform_15(%arg0: i32) -> (i32, i32) {
    %c0_i32 = arith.constant 0 : i32
    %c0_i32_0 = arith.constant 0 : i32
    return %arg0, %c0_i32 : i32, i32
  }
}

</mosaic_0001>

<llo_original>
// kernel: tpu_custom_call.1
$region0: #{tpu_custom_call.1}
  #allocation0 [shape = 'u32[]', space=smem, size = 0x4, offset = 0x4, fixed_abs, tag = 'smem constant byte address 0x4 - core index']
  #allocation1 [shape = 'u32[144,128]{1,0:T(1,128)}', space=vmem, size = 0x12000, scoped, tag = 'internal scratch']
  %s0 = inlined_call_operand.hbm [shape: bf16[16,32], index: 0, kind: input, shape index: {}]
  %s1 = inlined_call_operand.hbm [shape: bf16[32,512], index: 1, kind: input, shape index: {}]
  %s2 = inlined_call_operand.hbm [shape: f32[1,512], index: 2, kind: input, shape index: {}]
  %s3 = inlined_call_operand.hbm [shape: bf16[512,512], index: 3, kind: input, shape index: {}]
  %s4 = inlined_call_operand.vmem [shape: f32[1,512], index: 4, kind: input, shape index: {}]
  %s5 = inlined_call_operand.hbm [shape: bf16[512,256], index: 5, kind: input, shape index: {}]
  %s6 = inlined_call_operand.vmem [shape: f32[1,256], index: 6, kind: input, shape index: {}]
  %s7 = inlined_call_operand.hbm [shape: bf16[256,256], index: 7, kind: input, shape index: {}]
  %s8 = inlined_call_operand.vmem [shape: f32[1,256], index: 8, kind: input, shape index: {}]
  %s9 = inlined_call_operand.hbm [shape: bf16[256,128], index: 9, kind: input, shape index: {}]
  %s10 = inlined_call_operand.vmem [shape: f32[1,128], index: 10, kind: input, shape index: {}]
  %s11 = inlined_call_operand.vmem [shape: f32[1,128], index: 11, kind: input, shape index: {}]
  %s12 = inlined_call_operand.vmem [shape: f32[1,128], index: 12, kind: input, shape index: {}]
  %s13 = inlined_call_operand.hbm [shape: bf16[128,128], index: 13, kind: input, shape index: {}]
  %s14 = inlined_call_operand.vmem [shape: f32[1,128], index: 14, kind: input, shape index: {}]
  %s15 = inlined_call_operand.hbm [shape: f32[16,128], index: 15, kind: output, shape index: {}]
  %s16 = sld [smem:[#allocation0]]
  $region102: #{tpu_custom_call.1} parent=0
    _
  %s18 = ssub.s32 1, %s16
  %s19 = scalar_select 0, %s18, %s16
  $region1: #{tpu_custom_call.1} parent=0
    #allocation2 [shape = 'u8[4096]{0}', space=vmem, size = 0x1000, scoped, tag = 'input window, operand 0, single buffered']
    #allocation3 [shape = 's32[1]{0}', space=sflag, size = 0x4, scoped, tag = 'scoped memory for tpu_custom_call.1']
    #allocation4 [shape = 's32[1]{0}', space=sflag, size = 0x4, scoped, tag = 'scoped memory for tpu_custom_call.1']
    #allocation5 [shape = 'u8[32768]{0}', space=vmem, size = 0x8000, scoped, tag = 'input window, operand 1, single buffered']
    #allocation6 [shape = 's32[1]{0}', space=sflag, size = 0x4, scoped, tag = 'scoped memory for tpu_custom_call.1']
    #allocation7 [shape = 'u8[2048]{0}', space=vmem, size = 0x800, scoped, tag = 'input window, operand 2, single buffered']
    #allocation8 [shape = 'u8[524288]{0}', space=vmem, size = 0x80000, scoped, tag = 'input window, operand 3, single buffered']
    #allocation9 [shape = 's32[1]{0}', space=sflag, size = 0x4, scoped, tag = 'scoped memory for tpu_custom_call.1']
    #allocation10 [shape = 'u8[262144]{0}', space=vmem, size = 0x40000, scoped, tag = 'input window, operand 5, single buffered']
    #allocation11 [shape = 'u8[131072]{0}', space=vmem, size = 0x20000, scoped, tag = 'input window, operand 7, single buffered']
    #allocation12 [shape = 's32[1]{0}', space=sflag, size = 0x4, scoped, tag = 'scoped memory for tpu_custom_call.1']
    #allocation13 [shape = 'u8[65536]{0}', space=vmem, size = 0x10000, scoped, tag = 'input window, operand 9, single buffered']
    #allocation14 [shape = 'u8[32768]{0}', space=vmem, size = 0x8000, scoped, tag = 'input window, operand 13, single buffered']
    #allocation15 [shape = 's32[1]{0}', space=sflag, size = 0x4, scoped, tag = 'scoped memory for tpu_custom_call.1']
    #allocation16 [shape = 'u8[8192]{0}', space=vmem, size = 0x2000, scoped, tag = 'output window, operand 0, single buffered']
    %20 = vsyncpa [#allocation3], 0
    %21 = vsyncpa [#allocation6], 0
    %22 = vsyncpa [#allocation9], 0
    %23 = vsyncpa [#allocation12], 0
    %24 = vsyncpa [#allocation15], 0
    %25 = vsyncpa [#allocation4], 0
    // Predicated region
    $region2: #{tpu_custom_call.1} parent=1 // pred_check
      _
    $region3: #{tpu_custom_call.1} parent=1 // pred_check_branch
      %27 = sbr.rel (0) target = $region5
    $region4: #{tpu_custom_call.1} parent=1 // pred_region
      %s29 = ssub.s32 128, 128
      %30 = vsyncadd [#allocation3], %s29
      %s31 = sshll.u32 [#allocation2], 4
      %s32 = int_to_ptr.vmem [resolvable:$true] %s31
      %37 = dma.hbm_to_vmem [thread:$0]  %s0, 128, %s32, [#allocation3], 64, 64, 4
    $region5: #{tpu_custom_call.1} parent=1 // pred_fallthru
      _
    // Predicated region
    $region6: #{tpu_custom_call.1} parent=1 // pred_check
      _
    $region7: #{tpu_custom_call.1} parent=1 // pred_check_branch
      %39 = sbr.rel (0) target = $region9
    $region8: #{tpu_custom_call.1} parent=1 // pred_region
      %s41 = ssub.s32 1024, 1024
      %42 = vsyncadd [#allocation6], %s41
      %s43 = sshll.u32 [#allocation5], 4
      %s44 = int_to_ptr.vmem [resolvable:$true] %s43
      %49 = dma.hbm_to_vmem [thread:$0]  %s1, 1024, %s44, [#allocation6], 256, 256, 16
    $region9: #{tpu_custom_call.1} parent=1 // pred_fallthru
      _
    // Predicated region
    $region10: #{tpu_custom_call.1} parent=1 // pred_check
      _
    $region11: #{tpu_custom_call.1} parent=1 // pred_check_branch
      %51 = sbr.rel (0) target = $region13
    $region12: #{tpu_custom_call.1} parent=1 // pred_region
      %s53 = ssub.s32 64, 64
      %54 = vsyncadd [#allocation6], %s53
      %s56 = sshll.u32 [#allocation7], 4
      %s57 = int_to_ptr.vmem [resolvable:$true] %s56
      %59 = dma.hbm_to_vmem [thread:$0]  %s2, 64, %s57, [#allocation6]
    $region13: #{tpu_custom_call.1} parent=1 // pred_fallthru
      _
    // Predicated region
    $region14: #{tpu_custom_call.1} parent=1 // pred_check
      _
    $region15: #{tpu_custom_call.1} parent=1 // pred_check_branch
      %61 = sbr.rel (0) target = $region17
    $region16: #{tpu_custom_call.1} parent=1 // pred_region
      %s63 = ssub.s32 16384, 16384
      %64 = vsyncadd [#allocation9], %s63
      %s65 = sshll.u32 [#allocation8], 4
      %s66 = int_to_ptr.vmem [resolvable:$true] %s65
      %71 = dma.hbm_to_vmem [thread:$0]  %s3, 16384, %s66, [#allocation9], 256, 256, 16
    $region17: #{tpu_custom_call.1} parent=1 // pred_fallthru
      _
    // Predicated region
    $region18: #{tpu_custom_call.1} parent=1 // pred_check
      _
    $region19: #{tpu_custom_call.1} parent=1 // pred_check_branch
      %73 = sbr.rel (0) target = $region21
    $region20: #{tpu_custom_call.1} parent=1 // pred_region
      _
    $region21: #{tpu_custom_call.1} parent=1 // pred_fallthru
      _
    // Predicated region
    $region22: #{tpu_custom_call.1} parent=1 // pred_check
      _
    $region23: #{tpu_custom_call.1} parent=1 // pred_check_branch
      %75 = sbr.rel (0) target = $region25
    $region24: #{tpu_custom_call.1} parent=1 // pred_region
      %s77 = ssub.s32 8192, 8192
      %78 = vsyncadd [#allocation9], %s77
      %s79 = sshll.u32 [#allocation10], 4
      %s80 = int_to_ptr.vmem [resolvable:$true] %s79
      %85 = dma.hbm_to_vmem [thread:$0]  %s5, 8192, %s80, [#allocation9], 128, 128, 8
    $region25: #{tpu_custom_call.1} parent=1 // pred_fallthru
      _
    // Predicated region
    $region26: #{tpu_custom_call.1} parent=1 // pred_check
      _
    $region27: #{tpu_custom_call.1} parent=1 // pred_check_branch
      %87 = sbr.rel (0) target = $region29
    $region28: #{tpu_custom_call.1} parent=1 // pred_region
      _
    $region29: #{tpu_custom_call.1} parent=1 // pred_fallthru
      _
    // Predicated region
    $region30: #{tpu_custom_call.1} parent=1 // pred_check
      _
    $region31: #{tpu_custom_call.1} parent=1 // pred_check_branch
      %89 = sbr.rel (0) target = $region33
    $region32: #{tpu_custom_call.1} parent=1 // pred_region
      %s91 = ssub.s32 4096, 4096
      %92 = vsyncadd [#allocation12], %s91
      %s93 = sshll.u32 [#allocation11], 4
      %s94 = int_to_ptr.vmem [resolvable:$true] %s93
      %99 = dma.hbm_to_vmem [thread:$0]  %s7, 4096, %s94, [#allocation12], 128, 128, 8
    $region33: #{tpu_custom_call.1} parent=1 // pred_fallthru
      _
    // Predicated region
    $region34: #{tpu_custom_call.1} parent=1 // pred_check
      _
    $region35: #{tpu_custom_call.1} parent=1 // pred_check_branch
      %101 = sbr.rel (0) target = $region37
    $region36: #{tpu_custom_call.1} parent=1 // pred_region
      _
    $region37: #{tpu_custom_call.1} parent=1 // pred_fallthru
      _
    // Predicated region
    $region38: #{tpu_custom_call.1} parent=1 // pred_check
      _
    $region39: #{tpu_custom_call.1} parent=1 // pred_check_branch
      %103 = sbr.rel (0) target = $region41
    $region40: #{tpu_custom_call.1} parent=1 // pred_region
      %s105 = ssub.s32 2048, 2048
      %106 = vsyncadd [#allocation12], %s105
      %s107 = sshll.u32 [#allocation13], 4
      %s108 = int_to_ptr.vmem [resolvable:$true] %s107
      %113 = dma.hbm_to_vmem [thread:$0]  %s9, 2048, %s108, [#allocation12], 64, 64, 4
    $region41: #{tpu_custom_call.1} parent=1 // pred_fallthru
      _
    // Predicated region
    $region42: #{tpu_custom_call.1} parent=1 // pred_check
      _
    $region43: #{tpu_custom_call.1} parent=1 // pred_check_branch
      %115 = sbr.rel (0) target = $region45
    $region44: #{tpu_custom_call.1} parent=1 // pred_region
      _
    $region45: #{tpu_custom_call.1} parent=1 // pred_fallthru
      _
    // Predicated region
    $region46: #{tpu_custom_call.1} parent=1 // pred_check
      _
    $region47: #{tpu_custom_call.1} parent=1 // pred_check_branch
      %117 = sbr.rel (0) target = $region49
    $region48: #{tpu_custom_call.1} parent=1 // pred_region
      _
    $region49: #{tpu_custom_call.1} parent=1 // pred_fallthru
      _
    // Predicated region
    $region50: #{tpu_custom_call.1} parent=1 // pred_check
      _
    $region51: #{tpu_custom_call.1} parent=1 // pred_check_branch
      %119 = sbr.rel (0) target = $region53
    $region52: #{tpu_custom_call.1} parent=1 // pred_region
      _
    $region53: #{tpu_custom_call.1} parent=1 // pred_fallthru
      _
    // Predicated region
    $region54: #{tpu_custom_call.1} parent=1 // pred_check
      _
    $region55: #{tpu_custom_call.1} parent=1 // pred_check_branch
      %121 = sbr.rel (0) target = $region57
    $region56: #{tpu_custom_call.1} parent=1 // pred_region
      %s123 = ssub.s32 1024, 1024
      %124 = vsyncadd [#allocation15], %s123
      %s125 = sshll.u32 [#allocation14], 4
      %s126 = int_to_ptr.vmem [resolvable:$true] %s125
      %131 = dma.hbm_to_vmem [thread:$0]  %s13, 1024, %s126, [#allocation15], 64, 64, 4
    $region57: #{tpu_custom_call.1} parent=1 // pred_fallthru
      _
    // Predicated region
    $region58: #{tpu_custom_call.1} parent=1 // pred_check
      _
    $region59: #{tpu_custom_call.1} parent=1 // pred_check_branch
      %133 = sbr.rel (0) target = $region61
    $region60: #{tpu_custom_call.1} parent=1 // pred_region
      _
    $region61: #{tpu_custom_call.1} parent=1 // pred_fallthru
      _
    // Predicated region
    $region62: #{tpu_custom_call.1} parent=1 // pred_check
      _
    $region63: #{tpu_custom_call.1} parent=1 // pred_check_branch
      %135 = sbr.rel (0) target = $region65
    $region64: #{tpu_custom_call.1} parent=1 // pred_region
      %136 = dma.done [#allocation3], 128
    $region65: #{tpu_custom_call.1} parent=1 // pred_fallthru
      _
    // Predicated region
    $region66: #{tpu_custom_call.1} parent=1 // pred_check
      _
    $region67: #{tpu_custom_call.1} parent=1 // pred_check_branch
      %138 = sbr.rel (0) target = $region69
    $region68: #{tpu_custom_call.1} parent=1 // pred_region
      %139 = dma.done [#allocation6], 1024
    $region69: #{tpu_custom_call.1} parent=1 // pred_fallthru
      _
    // Predicated region
    $region70: #{tpu_custom_call.1} parent=1 // pred_check
      _
    $region71: #{tpu_custom_call.1} parent=1 // pred_check_branch
      %141 = sbr.rel (0) target = $region73
    $region72: #{tpu_custom_call.1} parent=1 // pred_region
      %142 = dma.done [#allocation6], 64
    $region73: #{tpu_custom_call.1} parent=1 // pred_fallthru
      _
    // Predicated region
    $region74: #{tpu_custom_call.1} parent=1 // pred_check
      _
    $region75: #{tpu_custom_call.1} parent=1 // pred_check_branch
      %144 = sbr.rel (0) target = $region77
    $region76: #{tpu_custom_call.1} parent=1 // pred_region
      %145 = dma.done [#allocation9], 16384
    $region77: #{tpu_custom_call.1} parent=1 // pred_fallthru
      _
    // Predicated region
    $region78: #{tpu_custom_call.1} parent=1 // pred_check
      _
    $region79: #{tpu_custom_call.1} parent=1 // pred_check_branch
      %147 = sbr.rel (0) target = $region81
    $region80: #{tpu_custom_call.1} parent=1 // pred_region
      %148 = dma.done [#allocation9], 8192
    $region81: #{tpu_custom_call.1} parent=1 // pred_fallthru
      _
    // Predicated region
    $region82: #{tpu_custom_call.1} parent=1 // pred_check
      _
    $region83: #{tpu_custom_call.1} parent=1 // pred_check_branch
      %150 = sbr.rel (0) target = $region85
    $region84: #{tpu_custom_call.1} parent=1 // pred_region
      %151 = dma.done [#allocation12], 4096
    $region85: #{tpu_custom_call.1} parent=1 // pred_fallthru
      _
    // Predicated region
    $region86: #{tpu_custom_call.1} parent=1 // pred_check
      _
    $region87: #{tpu_custom_call.1} parent=1 // pred_check_branch
      %153 = sbr.rel (0) target = $region89
    $region88: #{tpu_custom_call.1} parent=1 // pred_region
      %154 = dma.done [#allocation12], 2048
    $region89: #{tpu_custom_call.1} parent=1 // pred_fallthru
      _
    // Predicated region
    $region90: #{tpu_custom_call.1} parent=1 // pred_check
      _
    $region91: #{tpu_custom_call.1} parent=1 // pred_check_branch
      %156 = sbr.rel (0) target = $region93
    $region92: #{tpu_custom_call.1} parent=1 // pred_region
      %157 = dma.done [#allocation15], 1024
    $region93: #{tpu_custom_call.1} parent=1 // pred_fallthru
      _
    %v159 = vld [vmem:[#allocation2] sm:$0xf]
    %v160 = vld [vmem:[#allocation2 + $0x4] sm:$0xf]
    %v161 = vld [vmem:[#allocation5] sm:$0xff]
    %v162 = vld [vmem:[#allocation5 + $0x8] sm:$0xff]
    %v163 = vld [vmem:[#allocation5 + $0x10] sm:$0xff]
    %v164 = vld [vmem:[#allocation5 + $0x18] sm:$0xff]
    %v165 = vld [vmem:[#allocation5 + $0x20] sm:$0xff]
    %v166 = vld [vmem:[#allocation5 + $0x28] sm:$0xff]
    %v167 = vld [vmem:[#allocation5 + $0x30] sm:$0xff]
    %v168 = vld [vmem:[#allocation5 + $0x38] sm:$0xff]
    %v169 = vld [vmem:[#allocation7] sm:$0xf]
    %v171 = vlaneseq
    %v172 = vshrl.u32 %v171, 7
    %v173 = vsub.s32 0, %v172
    %v174 = vrot.slane %v169, %v173
    %v175 = vlaneseq
    %v176 = vshrl.u32 %v175, 7
    %v177 = vsub.s32 1, %v176
    %v178 = vrot.slane %v169, %v177
    %v179 = vlaneseq
    %v180 = vshrl.u32 %v179, 7
    %v181 = vsub.s32 2, %v180
    %v182 = vrot.slane %v169, %v181
    %v183 = vlaneseq
    %v184 = vshrl.u32 %v183, 7
    %v185 = vsub.s32 3, %v184
    %v186 = vrot.slane %v169, %v185
    %v193 = vunpack.c.l.b16 %v159
    %v194 = vunpack.c.l.b16 %v160
    %v195 = vpack.c.b16 %v194, %v193
    %v204 = vunpack.c.l.b16 %v161
    %v205 = vunpack.c.h.b16 %v161
    %v206 = vunpack.c.l.b16 %v162
    %v207 = vunpack.c.h.b16 %v162
    %v208 = vunpack.c.l.b16 %v163
    %v209 = vunpack.c.h.b16 %v163
    %v210 = vunpack.c.l.b16 %v164
    %v211 = vunpack.c.h.b16 %v164
    %v212 = vunpack.c.l.b16 %v165
    %v213 = vunpack.c.h.b16 %v165
    %v214 = vunpack.c.l.b16 %v166
    %v215 = vunpack.c.h.b16 %v166
    %v216 = vunpack.c.l.b16 %v167
    %v217 = vunpack.c.h.b16 %v167
    %v218 = vunpack.c.l.b16 %v168
    %v219 = vunpack.c.h.b16 %v168
    %v220 = vpack.c.b16 %v208, %v204
    %v221 = vpack.c.b16 %v209, %v205
    %v222 = vpack.c.b16 %v210, %v206
    %v223 = vpack.c.b16 %v211, %v207
    %v224 = vpack.c.b16 %v216, %v212
    %v225 = vpack.c.b16 %v217, %v213
    %v226 = vpack.c.b16 %v218, %v214
    %v227 = vpack.c.b16 %v219, %v215
    %vm236 = vcmask 261120
    %v238 = vsel %vm236, %v195, 0
    %240 = vmatprep.subr.bf16.mxu0 0
    %241 = vmatpush1.bf16.msra.mxu0 0
    %242 = vmatprep.subr.bf16.mxu0 0
    %243 = vmatpush1.bf16.msra.mxu0 0
    %244 = vmatprep.subr.bf16.mxu0 0
    %245 = vmatpush1.bf16.msra.mxu0 0
    %246 = vmatprep.subr.bf16.mxu0 0
    %247 = vmatpush1.bf16.msra.mxu0 0
    %248 = vmatprep.subr.bf16.mxu0 0
    %249 = vmatpush1.bf16.msra.mxu0 0
    %250 = vmatprep.subr.bf16.mxu0 0
    %251 = vmatpush1.bf16.msra.mxu0 0
    %252 = vmatprep.subr.bf16.mxu0 %v225
    %253 = vmatpush1.bf16.msra.mxu0 %v224
    %254 = vmatprep.subr.bf16.mxu0 %v221
    %255 = vmatpush1.bf16.msra.mxu0 %v220
    %256 = vmatprep.subr.bf16.mxu0 0
    %257 = vmatpush2.bf16.msra.mxu0 0
    %258 = vmatprep.subr.bf16.mxu0 0
    %259 = vmatpush2.bf16.msra.mxu0 0
    %260 = vmatprep.subr.bf16.mxu0 0
    %261 = vmatpush2.bf16.msra.mxu0 0
    %262 = vmatprep.subr.bf16.mxu0 0
    %263 = vmatpush2.bf16.msra.mxu0 0
    %264 = vmatprep.subr.bf16.mxu0 0
    %265 = vmatpush2.bf16.msra.mxu0 0
    %266 = vmatprep.subr.bf16.mxu0 0
    %267 = vmatpush2.bf16.msra.mxu0 0
    %268 = vmatprep.subr.bf16.mxu0 0
    %269 = vmatpush2.bf16.msra.mxu0 0
    %270 = vmatprep.subr.bf16.mxu0 0
    %271 = vmatpush2.bf16.msra.mxu0 0
    %272 = vmatprep.mubr.bf16.mxu0 0
    %273 = vmatmul.mubr.bf16.gmra.mxu0 %v238
    %v274 = vpop.f32.mrf.mxu0
    %v275 = vadd.f32 %v174, %v274
    %v276 = vpop.f32.mrf.mxu0
    %v277 = vadd.f32 %v178, %v276
    %v278 = vpop.f32.mrf.mxu0
    %v279 = vadd.f32 %v174, %v278
    %v280 = vpop.f32.mrf.mxu0
    %v281 = vadd.f32 %v178, %v280
    %282 = vdwg.mxu0
    %283 = vmatprep.subr.bf16.mxu0 0
    %284 = vmatpush1.bf16.msra.mxu0 0
    %285 = vmatprep.subr.bf16.mxu0 0
    %286 = vmatpush1.bf16.msra.mxu0 0
    %287 = vmatprep.subr.bf16.mxu0 0
    %288 = vmatpush1.bf16.msra.mxu0 0
    %289 = vmatprep.subr.bf16.mxu0 0
    %290 = vmatpush1.bf16.msra.mxu0 0
    %291 = vmatprep.subr.bf16.mxu0 0
    %292 = vmatpush1.bf16.msra.mxu0 0
    %293 = vmatprep.subr.bf16.mxu0 0
    %294 = vmatpush1.bf16.msra.mxu0 0
    %295 = vmatprep.subr.bf16.mxu0 %v227
    %296 = vmatpush1.bf16.msra.mxu0 %v226
    %297 = vmatprep.subr.bf16.mxu0 %v223
    %298 = vmatpush1.bf16.msra.mxu0 %v222
    %299 = vmatprep.subr.bf16.mxu0 0
    %300 = vmatpush2.bf16.msra.mxu0 0
    %301 = vmatprep.subr.bf16.mxu0 0
    %302 = vmatpush2.bf16.msra.mxu0 0
    %303 = vmatprep.subr.bf16.mxu0 0
    %304 = vmatpush2.bf16.msra.mxu0 0
    %305 = vmatprep.subr.bf16.mxu0 0
    %306 = vmatpush2.bf16.msra.mxu0 0
    %307 = vmatprep.subr.bf16.mxu0 0
    %308 = vmatpush2.bf16.msra.mxu0 0
    %309 = vmatprep.subr.bf16.mxu0 0
    %310 = vmatpush2.bf16.msra.mxu0 0
    %311 = vmatprep.subr.bf16.mxu0 0
    %312 = vmatpush2.bf16.msra.mxu0 0
    %313 = vmatprep.subr.bf16.mxu0 0
    %314 = vmatpush2.bf16.msra.mxu0 0
    %315 = vmatprep.mubr.bf16.mxu0 0
    %316 = vmatmul.mubr.bf16.gmra.mxu0 %v238
    %v317 = vpop.f32.mrf.mxu0
    %v318 = vadd.f32 %v182, %v317
    %v319 = vpop.f32.mrf.mxu0
    %v320 = vadd.f32 %v186, %v319
    %v321 = vpop.f32.mrf.mxu0
    %v322 = vadd.f32 %v182, %v321
    %v323 = vpop.f32.mrf.mxu0
    %v324 = vadd.f32 %v186, %v323
    %325 = vdwg.mxu0
    %vm326 = vcmp.gt.f32.partialorder %v275, 0.0
    %vm327 = vcmp.gt.f32.partialorder %v277, 0.0
    %vm328 = vcmp.gt.f32.partialorder %v318, 0.0
    %vm329 = vcmp.gt.f32.partialorder %v320, 0.0
    %vm330 = vcmp.gt.f32.partialorder %v279, 0.0
    %vm331 = vcmp.gt.f32.partialorder %v281, 0.0
    %vm332 = vcmp.gt.f32.partialorder %v322, 0.0
    %vm333 = vcmp.gt.f32.partialorder %v324, 0.0
    %v334 = vmul.f32 %v275, 0.2
    %v335 = vmul.f32 %v277, 0.2
    %v336 = vmul.f32 %v318, 0.2
    %v337 = vmul.f32 %v320, 0.2
    %v338 = vmul.f32 %v279, 0.2
    %v339 = vmul.f32 %v281, 0.2
    %v340 = vmul.f32 %v322, 0.2
    %v341 = vmul.f32 %v324, 0.2
    %v342 = vsel %vm326, %v275, %v334
    %v343 = vsel %vm327, %v277, %v335
    %v344 = vsel %vm328, %v318, %v336
    %v345 = vsel %vm329, %v320, %v337
    %v346 = vsel %vm330, %v279, %v338
    %v347 = vsel %vm331, %v281, %v339
    %v348 = vsel %vm332, %v322, %v340
    %v349 = vsel %vm333, %v324, %v341
    %v350 = vpack.c.bf16 %v346, %v342
    %v351 = vpack.c.bf16 %v347, %v343
    %v352 = vpack.c.bf16 %v348, %v344
    %v353 = vpack.c.bf16 %v349, %v345
    %v354 = vld [vmem:[#allocation8] sm:$0xff]
    %v355 = vld [vmem:[#allocation8 + $0x8] sm:$0xff]
    %v356 = vld [vmem:[#allocation8 + $0x10] sm:$0xff]
    %v357 = vld [vmem:[#allocation8 + $0x18] sm:$0xff]
    %v358 = vld [vmem:[#allocation8 + $0x20] sm:$0xff]
    %v359 = vld [vmem:[#allocation8 + $0x28] sm:$0xff]
    %v360 = vld [vmem:[#allocation8 + $0x30] sm:$0xff]
    %v361 = vld [vmem:[#allocation8 + $0x38] sm:$0xff]
    %v362 = vld [vmem:[#allocation8 + $0x40] sm:$0xff]
    %v363 = vld [vmem:[#allocation8 + $0x48] sm:$0xff]
    %v364 = vld [vmem:[#allocation8 + $0x50] sm:$0xff]
    %v365 = vld [vmem:[#allocation8 + $0x58] sm:$0xff]
    %v366 = vld [vmem:[#allocation8 + $0x60] sm:$0xff]
    %v367 = vld [vmem:[#allocation8 + $0x68] sm:$0xff]
    %v368 = vld [vmem:[#allocation8 + $0x70] sm:$0xff]
    %v369 = vld [vmem:[#allocation8 + $0x78] sm:$0xff]
    %v370 = vld [vmem:[#allocation8 + $0x80] sm:$0xff]
    %v371 = vld [vmem:[#allocation8 + $0x88] sm:$0xff]
    %v372 = vld [vmem:[#allocation8 + $0x90] sm:$0xff]
    %v373 = vld [vmem:[#allocation8 + $0x98] sm:$0xff]
    %v374 = vld [vmem:[#allocation8 + $0xa0] sm:$0xff]
    %v375 = vld [vmem:[#allocation8 + $0xa8] sm:$0xff]
    %v376 = vld [vmem:[#allocation8 + $0xb0] sm:$0xff]
    %v377 = vld [vmem:[#allocation8 + $0xb8] sm:$0xff]
    %v378 = vld [vmem:[#allocation8 + $0xc0] sm:$0xff]
    %v379 = vld [vmem:[#allocation8 + $0xc8] sm:$0xff]
    %v380 = vld [vmem:[#allocation8 + $0xd0] sm:$0xff]
    %v381 = vld [vmem:[#allocation8 + $0xd8] sm:$0xff]
    %v382 = vld [vmem:[#allocation8 + $0xe0] sm:$0xff]
    %v383 = vld [vmem:[#allocation8 + $0xe8] sm:$0xff]
    %v384 = vld [vmem:[#allocation8 + $0xf0] sm:$0xff]
    %v385 = vld [vmem:[#allocation8 + $0xf8] sm:$0xff]
    %v386 = vld [vmem:[#allocation8 + $0x100] sm:$0xff]
    %v387 = vld [vmem:[#allocation8 + $0x108] sm:$0xff]
    %v388 = vld [vmem:[#allocation8 + $0x110] sm:$0xff]
    %v389 = vld [vmem:[#allocation8 + $0x118] sm:$0xff]
    %v390 = vld [vmem:[#allocation8 + $0x120] sm:$0xff]
    %v391 = vld [vmem:[#allocation8 + $0x128] sm:$0xff]
    %v392 = vld [vmem:[#allocation8 + $0x130] sm:$0xff]
    %v393 = vld [vmem:[#allocation8 + $0x138] sm:$0xff]
    %v394 = vld [vmem:[#allocation8 + $0x140] sm:$0xff]
    %v395 = vld [vmem:[#allocation8 + $0x148] sm:$0xff]
    %v396 = vld [vmem:[#allocation8 + $0x150] sm:$0xff]
    %v397 = vld [vmem:[#allocation8 + $0x158] sm:$0xff]
    %v398 = vld [vmem:[#allocation8 + $0x160] sm:$0xff]
    %v399 = vld [vmem:[#allocation8 + $0x168] sm:$0xff]
    %v400 = vld [vmem:[#allocation8 + $0x170] sm:$0xff]
    %v401 = vld [vmem:[#allocation8 + $0x178] sm:$0xff]
    %v402 = vld [vmem:[#allocation8 + $0x180] sm:$0xff]
    %v403 = vld [vmem:[#allocation8 + $0x188] sm:$0xff]
    %v404 = vld [vmem:[#allocation8 + $0x190] sm:$0xff]
    %v405 = vld [vmem:[#allocation8 + $0x198] sm:$0xff]
    %v406 = vld [vmem:[#allocation8 + $0x1a0] sm:$0xff]
    %v407 = vld [vmem:[#allocation8 + $0x1a8] sm:$0xff]
    %v408 = vld [vmem:[#allocation8 + $0x1b0] sm:$0xff]
    %v409 = vld [vmem:[#allocation8 + $0x1b8] sm:$0xff]
    %v410 = vld [vmem:[#allocation8 + $0x1c0] sm:$0xff]
    %v411 = vld [vmem:[#allocation8 + $0x1c8] sm:$0xff]
    %v412 = vld [vmem:[#allocation8 + $0x1d0] sm:$0xff]
    %v413 = vld [vmem:[#allocation8 + $0x1d8] sm:$0xff]
    %v414 = vld [vmem:[#allocation8 + $0x1e0] sm:$0xff]
    %v415 = vld [vmem:[#allocation8 + $0x1e8] sm:$0xff]
    %v416 = vld [vmem:[#allocation8 + $0x1f0] sm:$0xff]
    %v417 = vld [vmem:[#allocation8 + $0x1f8] sm:$0xff]
    %v418 = vld [vmem:[#allocation8 + $0x200] sm:$0xff]
    %v419 = vld [vmem:[#allocation8 + $0x208] sm:$0xff]
    %v420 = vld [vmem:[#allocation8 + $0x210] sm:$0xff]
    %v421 = vld [vmem:[#allocation8 + $0x218] sm:$0xff]
    %v422 = vld [vmem:[#allocation8 + $0x220] sm:$0xff]
    %v423 = vld [vmem:[#allocation8 + $0x228] sm:$0xff]
    %v424 = vld [vmem:[#allocation8 + $0x230] sm:$0xff]
    %v425 = vld [vmem:[#allocation8 + $0x238] sm:$0xff]
    %v426 = vld [vmem:[#allocation8 + $0x240] sm:$0xff]
    %v427 = vld [vmem:[#allocation8 + $0x248] sm:$0xff]
    %v428 = vld [vmem:[#allocation8 + $0x250] sm:$0xff]
    %v429 = vld [vmem:[#allocation8 + $0x258] sm:$0xff]
    %v430 = vld [vmem:[#allocation8 + $0x260] sm:$0xff]
    %v431 = vld [vmem:[#allocation8 + $0x268] sm:$0xff]
    %v432 = vld [vmem:[#allocation8 + $0x270] sm:$0xff]
    %v433 = vld [vmem:[#allocation8 + $0x278] sm:$0xff]
    %v434 = vld [vmem:[#allocation8 + $0x280] sm:$0xff]
    %v435 = vld [vmem:[#allocation8 + $0x288] sm:$0xff]
    %v436 = vld [vmem:[#allocation8 + $0x290] sm:$0xff]
    %v437 = vld [vmem:[#allocation8 + $0x298] sm:$0xff]
    %v438 = vld [vmem:[#allocation8 + $0x2a0] sm:$0xff]
    %v439 = vld [vmem:[#allocation8 + $0x2a8] sm:$0xff]
    %v440 = vld [vmem:[#allocation8 + $0x2b0] sm:$0xff]
    %v441 = vld [vmem:[#allocation8 + $0x2b8] sm:$0xff]
    %v442 = vld [vmem:[#allocation8 + $0x2c0] sm:$0xff]
    %v443 = vld [vmem:[#allocation8 + $0x2c8] sm:$0xff]
    %v444 = vld [vmem:[#allocation8 + $0x2d0] sm:$0xff]
    %v445 = vld [vmem:[#allocation8 + $0x2d8] sm:$0xff]
    %v446 = vld [vmem:[#allocation8 + $0x2e0] sm:$0xff]
    %v447 = vld [vmem:[#allocation8 + $0x2e8] sm:$0xff]
    %v448 = vld [vmem:[#allocation8 + $0x2f0] sm:$0xff]
    %v449 = vld [vmem:[#allocation8 + $0x2f8] sm:$0xff]
    %v450 = vld [vmem:[#allocation8 + $0x300] sm:$0xff]
    %v451 = vld [vmem:[#allocation8 + $0x308] sm:$0xff]
    %v452 = vld [vmem:[#allocation8 + $0x310] sm:$0xff]
    %v453 = vld [vmem:[#allocation8 + $0x318] sm:$0xff]
    %v454 = vld [vmem:[#allocation8 + $0x320] sm:$0xff]
    %v455 = vld [vmem:[#allocation8 + $0x328] sm:$0xff]
    %v456 = vld [vmem:[#allocation8 + $0x330] sm:$0xff]
    %v457 = vld [vmem:[#allocation8 + $0x338] sm:$0xff]
    %v458 = vld [vmem:[#allocation8 + $0x340] sm:$0xff]
    %v459 = vld [vmem:[#allocation8 + $0x348] sm:$0xff]
    %v460 = vld [vmem:[#allocation8 + $0x350] sm:$0xff]
    %v461 = vld [vmem:[#allocation8 + $0x358] sm:$0xff]
    %v462 = vld [vmem:[#allocation8 + $0x360] sm:$0xff]
    %v463 = vld [vmem:[#allocation8 + $0x368] sm:$0xff]
    %v464 = vld [vmem:[#allocation8 + $0x370] sm:$0xff]
    %v465 = vld [vmem:[#allocation8 + $0x378] sm:$0xff]
    %v466 = vld [vmem:[#allocation8 + $0x380] sm:$0xff]
    %v467 = vld [vmem:[#allocation8 + $0x388] sm:$0xff]
    %v468 = vld [vmem:[#allocation8 + $0x390] sm:$0xff]
    %v469 = vld [vmem:[#allocation8 + $0x398] sm:$0xff]
    %v470 = vld [vmem:[#allocation8 + $0x3a0] sm:$0xff]
    %v471 = vld [vmem:[#allocation8 + $0x3a8] sm:$0xff]
    %v472 = vld [vmem:[#allocation8 + $0x3b0] sm:$0xff]
    %v473 = vld [vmem:[#allocation8 + $0x3b8] sm:$0xff]
    %v474 = vld [vmem:[#allocation8 + $0x3c0] sm:$0xff]
    %v475 = vld [vmem:[#allocation8 + $0x3c8] sm:$0xff]
    %v476 = vld [vmem:[#allocation8 + $0x3d0] sm:$0xff]
    %v477 = vld [vmem:[#allocation8 + $0x3d8] sm:$0xff]
    %v478 = vld [vmem:[#allocation8 + $0x3e0] sm:$0xff]
    %v479 = vld [vmem:[#allocation8 + $0x3e8] sm:$0xff]
    %v480 = vld [vmem:[#allocation8 + $0x3f0] sm:$0xff]
    %v481 = vld [vmem:[#allocation8 + $0x3f8] sm:$0xff]
    %v482 = vld [vmem:[%s4] sm:$0xf]
    %v484 = vlaneseq
    %v485 = vshrl.u32 %v484, 7
    %v486 = vsub.s32 0, %v485
    %v487 = vrot.slane %v482, %v486
    %v488 = vlaneseq
    %v489 = vshrl.u32 %v488, 7
    %v490 = vsub.s32 1, %v489
    %v491 = vrot.slane %v482, %v490
    %v492 = vlaneseq
    %v493 = vshrl.u32 %v492, 7
    %v494 = vsub.s32 2, %v493
    %v495 = vrot.slane %v482, %v494
    %v496 = vlaneseq
    %v497 = vshrl.u32 %v496, 7
    %v498 = vsub.s32 3, %v497
    %v499 = vrot.slane %v482, %v498
    %v632 = vunpack.c.l.b16 %v354
    %v633 = vunpack.c.h.b16 %v354
    %v634 = vunpack.c.l.b16 %v355
    %v635 = vunpack.c.h.b16 %v355
    %v636 = vunpack.c.l.b16 %v356
    %v637 = vunpack.c.h.b16 %v356
    %v638 = vunpack.c.l.b16 %v357
    %v639 = vunpack.c.h.b16 %v357
    %v640 = vunpack.c.l.b16 %v358
    %v641 = vunpack.c.h.b16 %v358
    %v642 = vunpack.c.l.b16 %v359
    %v643 = vunpack.c.h.b16 %v359
    %v644 = vunpack.c.l.b16 %v360
    %v645 = vunpack.c.h.b16 %v360
    %v646 = vunpack.c.l.b16 %v361
    %v647 = vunpack.c.h.b16 %v361
    %v648 = vunpack.c.l.b16 %v362
    %v649 = vunpack.c.h.b16 %v362
    %v650 = vunpack.c.l.b16 %v363
    %v651 = vunpack.c.h.b16 %v363
    %v652 = vunpack.c.l.b16 %v364
    %v653 = vunpack.c.h.b16 %v364
    %v654 = vunpack.c.l.b16 %v365
    %v655 = vunpack.c.h.b16 %v365
    %v656 = vunpack.c.l.b16 %v366
    %v657 = vunpack.c.h.b16 %v366
    %v658 = vunpack.c.l.b16 %v367
    %v659 = vunpack.c.h.b16 %v367
    %v660 = vunpack.c.l.b16 %v368
    %v661 = vunpack.c.h.b16 %v368
    %v662 = vunpack.c.l.b16 %v369
    %v663 = vunpack.c.h.b16 %v369
    %v664 = vunpack.c.l.b16 %v370
    %v665 = vunpack.c.h.b16 %v370
    %v666 = vunpack.c.l.b16 %v371
    %v667 = vunpack.c.h.b16 %v371
    %v668 = vunpack.c.l.b16 %v372
    %v669 = vunpack.c.h.b16 %v372
    %v670 = vunpack.c.l.b16 %v373
    %v671 = vunpack.c.h.b16 %v373
    %v672 = vunpack.c.l.b16 %v374
    %v673 = vunpack.c.h.b16 %v374
    %v674 = vunpack.c.l.b16 %v375
    %v675 = vunpack.c.h.b16 %v375
    %v676 = vunpack.c.l.b16 %v376
    %v677 = vunpack.c.h.b16 %v376
    %v678 = vunpack.c.l.b16 %v377
    %v679 = vunpack.c.h.b16 %v377
    %v680 = vunpack.c.l.b16 %v378
    %v681 = vunpack.c.h.b16 %v378
    %v682 = vunpack.c.l.b16 %v379
    %v683 = vunpack.c.h.b16 %v379
    %v684 = vunpack.c.l.b16 %v380
    %v685 = vunpack.c.h.b16 %v380
    %v686 = vunpack.c.l.b16 %v381
    %v687 = vunpack.c.h.b16 %v381
    %v688 = vunpack.c.l.b16 %v382
    %v689 = vunpack.c.h.b16 %v382
    %v690 = vunpack.c.l.b16 %v383
    %v691 = vunpack.c.h.b16 %v383
    %v692 = vunpack.c.l.b16 %v384
    %v693 = vunpack.c.h.b16 %v384
    %v694 = vunpack.c.l.b16 %v385
    %v695 = vunpack.c.h.b16 %v385
    %v696 = vunpack.c.l.b16 %v386
    %v697 = vunpack.c.h.b16 %v386
    %v698 = vunpack.c.l.b16 %v387
    %v699 = vunpack.c.h.b16 %v387
    %v700 = vunpack.c.l.b16 %v388
    %v701 = vunpack.c.h.b16 %v388
    %v702 = vunpack.c.l.b16 %v389
    %v703 = vunpack.c.h.b16 %v389
    %v704 = vunpack.c.l.b16 %v390
    %v705 = vunpack.c.h.b16 %v390
    %v706 = vunpack.c.l.b16 %v391
    %v707 = vunpack.c.h.b16 %v391
    %v708 = vunpack.c.l.b16 %v392
    %v709 = vunpack.c.h.b16 %v392
    %v710 = vunpack.c.l.b16 %v393
    %v711 = vunpack.c.h.b16 %v393
    %v712 = vunpack.c.l.b16 %v394
    %v713 = vunpack.c.h.b16 %v394
    %v714 = vunpack.c.l.b16 %v395
    %v715 = vunpack.c.h.b16 %v395
    %v716 = vunpack.c.l.b16 %v396
    %v717 = vunpack.c.h.b16 %v396
    %v718 = vunpack.c.l.b16 %v397
    %v719 = vunpack.c.h.b16 %v397
    %v720 = vunpack.c.l.b16 %v398
    %v721 = vunpack.c.h.b16 %v398
    %v722 = vunpack.c.l.b16 %v399
    %v723 = vunpack.c.h.b16 %v399
    %v724 = vunpack.c.l.b16 %v400
    %v725 = vunpack.c.h.b16 %v400
    %v726 = vunpack.c.l.b16 %v401
    %v727 = vunpack.c.h.b16 %v401
    %v728 = vunpack.c.l.b16 %v402
    %v729 = vunpack.c.h.b16 %v402
    %v730 = vunpack.c.l.b16 %v403
    %v731 = vunpack.c.h.b16 %v403
    %v732 = vunpack.c.l.b16 %v404
    %v733 = vunpack.c.h.b16 %v404
    %v734 = vunpack.c.l.b16 %v405
    %v735 = vunpack.c.h.b16 %v405
    %v736 = vunpack.c.l.b16 %v406
    %v737 = vunpack.c.h.b16 %v406
    %v738 = vunpack.c.l.b16 %v407
    %v739 = vunpack.c.h.b16 %v407
    %v740 = vunpack.c.l.b16 %v408
    %v741 = vunpack.c.h.b16 %v408
    %v742 = vunpack.c.l.b16 %v409
    %v743 = vunpack.c.h.b16 %v409
    %v744 = vunpack.c.l.b16 %v410
    %v745 = vunpack.c.h.b16 %v410
    %v746 = vunpack.c.l.b16 %v411
    %v747 = vunpack.c.h.b16 %v411
    %v748 = vunpack.c.l.b16 %v412
    %v749 = vunpack.c.h.b16 %v412
    %v750 = vunpack.c.l.b16 %v413
    %v751 = vunpack.c.h.b16 %v413
    %v752 = vunpack.c.l.b16 %v414
    %v753 = vunpack.c.h.b16 %v414
    %v754 = vunpack.c.l.b16 %v415
    %v755 = vunpack.c.h.b16 %v415
    %v756 = vunpack.c.l.b16 %v416
    %v757 = vunpack.c.h.b16 %v416
    %v758 = vunpack.c.l.b16 %v417
    %v759 = vunpack.c.h.b16 %v417
    %v760 = vunpack.c.l.b16 %v418
    %v761 = vunpack.c.h.b16 %v418
    %v762 = vunpack.c.l.b16 %v419
    %v763 = vunpack.c.h.b16 %v419
    %v764 = vunpack.c.l.b16 %v420
    %v765 = vunpack.c.h.b16 %v420
    %v766 = vunpack.c.l.b16 %v421
    %v767 = vunpack.c.h.b16 %v421
    %v768 = vunpack.c.l.b16 %v422
    %v769 = vunpack.c.h.b16 %v422
    %v770 = vunpack.c.l.b16 %v423
    %v771 = vunpack.c.h.b16 %v423
    %v772 = vunpack.c.l.b16 %v424
    %v773 = vunpack.c.h.b16 %v424
    %v774 = vunpack.c.l.b16 %v425
    %v775 = vunpack.c.h.b16 %v425
    %v776 = vunpack.c.l.b16 %v426
    %v777 = vunpack.c.h.b16 %v426
    %v778 = vunpack.c.l.b16 %v427
    %v779 = vunpack.c.h.b16 %v427
    %v780 = vunpack.c.l.b16 %v428
    %v781 = vunpack.c.h.b16 %v428
    %v782 = vunpack.c.l.b16 %v429
    %v783 = vunpack.c.h.b16 %v429
    %v784 = vunpack.c.l.b16 %v430
    %v785 = vunpack.c.h.b16 %v430
    %v786 = vunpack.c.l.b16 %v431
    %v787 = vunpack.c.h.b16 %v431
    %v788 = vunpack.c.l.b16 %v432
    %v789 = vunpack.c.h.b16 %v432
    %v790 = vunpack.c.l.b16 %v433
    %v791 = vunpack.c.h.b16 %v433
    %v792 = vunpack.c.l.b16 %v434
    %v793 = vunpack.c.h.b16 %v434
    %v794 = vunpack.c.l.b16 %v435
    %v795 = vunpack.c.h.b16 %v435
    %v796 = vunpack.c.l.b16 %v436
    %v797 = vunpack.c.h.b16 %v436
    %v798 = vunpack.c.l.b16 %v437
    %v799 = vunpack.c.h.b16 %v437
    %v800 = vunpack.c.l.b16 %v438
    %v801 = vunpack.c.h.b16 %v438
    %v802 = vunpack.c.l.b16 %v439
    %v803 = vunpack.c.h.b16 %v439
    %v804 = vunpack.c.l.b16 %v440
    %v805 = vunpack.c.h.b16 %v440
    %v806 = vunpack.c.l.b16 %v441
    %v807 = vunpack.c.h.b16 %v441
    %v808 = vunpack.c.l.b16 %v442
    %v809 = vunpack.c.h.b16 %v442
    %v810 = vunpack.c.l.b16 %v443
    %v811 = vunpack.c.h.b16 %v443
    %v812 = vunpack.c.l.b16 %v444
    %v813 = vunpack.c.h.b16 %v444
    %v814 = vunpack.c.l.b16 %v445
    %v815 = vunpack.c.h.b16 %v445
    %v816 = vunpack.c.l.b16 %v446
    %v817 = vunpack.c.h.b16 %v446
    %v818 = vunpack.c.l.b16 %v447
    %v819 = vunpack.c.h.b16 %v447
    %v820 = vunpack.c.l.b16 %v448
    %v821 = vunpack.c.h.b16 %v448
    %v822 = vunpack.c.l.b16 %v449
    %v823 = vunpack.c.h.b16 %v449
    %v824 = vunpack.c.l.b16 %v450
    %v825 = vunpack.c.h.b16 %v450
    %v826 = vunpack.c.l.b16 %v451
    %v827 = vunpack.c.h.b16 %v451
    %v828 = vunpack.c.l.b16 %v452
    %v829 = vunpack.c.h.b16 %v452
    %v830 = vunpack.c.l.b16 %v453
    %v831 = vunpack.c.h.b16 %v453
    %v832 = vunpack.c.l.b16 %v454
    %v833 = vunpack.c.h.b16 %v454
    %v834 = vunpack.c.l.b16 %v455
    %v835 = vunpack.c.h.b16 %v455
    %v836 = vunpack.c.l.b16 %v456
    %v837 = vunpack.c.h.b16 %v456
    %v838 = vunpack.c.l.b16 %v457
    %v839 = vunpack.c.h.b16 %v457
    %v840 = vunpack.c.l.b16 %v458
    %v841 = vunpack.c.h.b16 %v458
    %v842 = vunpack.c.l.b16 %v459
    %v843 = vunpack.c.h.b16 %v459
    %v844 = vunpack.c.l.b16 %v460
    %v845 = vunpack.c.h.b16 %v460
    %v846 = vunpack.c.l.b16 %v461
    %v847 = vunpack.c.h.b16 %v461
    %v848 = vunpack.c.l.b16 %v462
    %v849 = vunpack.c.h.b16 %v462
    %v850 = vunpack.c.l.b16 %v463
    %v851 = vunpack.c.h.b16 %v463
    %v852 = vunpack.c.l.b16 %v464
    %v853 = vunpack.c.h.b16 %v464
    %v854 = vunpack.c.l.b16 %v465
    %v855 = vunpack.c.h.b16 %v465
    %v856 = vunpack.c.l.b16 %v466
    %v857 = vunpack.c.h.b16 %v466
    %v858 = vunpack.c.l.b16 %v467
    %v859 = vunpack.c.h.b16 %v467
    %v860 = vunpack.c.l.b16 %v468
    %v861 = vunpack.c.h.b16 %v468
    %v862 = vunpack.c.l.b16 %v469
    %v863 = vunpack.c.h.b16 %v469
    %v864 = vunpack.c.l.b16 %v470
    %v865 = vunpack.c.h.b16 %v470
    %v866 = vunpack.c.l.b16 %v471
    %v867 = vunpack.c.h.b16 %v471
    %v868 = vunpack.c.l.b16 %v472
    %v869 = vunpack.c.h.b16 %v472
    %v870 = vunpack.c.l.b16 %v473
    %v871 = vunpack.c.h.b16 %v473
    %v872 = vunpack.c.l.b16 %v474
    %v873 = vunpack.c.h.b16 %v474
    %v874 = vunpack.c.l.b16 %v475
    %v875 = vunpack.c.h.b16 %v475
    %v876 = vunpack.c.l.b16 %v476
    %v877 = vunpack.c.h.b16 %v476
    %v878 = vunpack.c.l.b16 %v477
    %v879 = vunpack.c.h.b16 %v477
    %v880 = vunpack.c.l.b16 %v478
    %v881 = vunpack.c.h.b16 %v478
    %v882 = vunpack.c.l.b16 %v479
    %v883 = vunpack.c.h.b16 %v479
    %v884 = vunpack.c.l.b16 %v480
    %v885 = vunpack.c.h.b16 %v480
    %v886 = vunpack.c.l.b16 %v481
    %v887 = vunpack.c.h.b16 %v481
    %v888 = vpack.c.b16 %v636, %v632
    %v889 = vpack.c.b16 %v637, %v633
    %v890 = vpack.c.b16 %v638, %v634
    %v891 = vpack.c.b16 %v639, %v635
    %v892 = vpack.c.b16 %v644, %v640
    %v893 = vpack.c.b16 %v645, %v641
    %v894 = vpack.c.b16 %v646, %v642
    %v895 = vpack.c.b16 %v647, %v643
    %v896 = vpack.c.b16 %v652, %v648
    %v897 = vpack.c.b16 %v653, %v649
    %v898 = vpack.c.b16 %v654, %v650
    %v899 = vpack.c.b16 %v655, %v651
    %v900 = vpack.c.b16 %v660, %v656
    %v901 = vpack.c.b16 %v661, %v657
    %v902 = vpack.c.b16 %v662, %v658
    %v903 = vpack.c.b16 %v663, %v659
    %v904 = vpack.c.b16 %v668, %v664
    %v905 = vpack.c.b16 %v669, %v665
    %v906 = vpack.c.b16 %v670, %v666
    %v907 = vpack.c.b16 %v671, %v667
    %v908 = vpack.c.b16 %v676, %v672
    %v909 = vpack.c.b16 %v677, %v673
    %v910 = vpack.c.b16 %v678, %v674
    %v911 = vpack.c.b16 %v679, %v675
    %v912 = vpack.c.b16 %v684, %v680
    %v913 = vpack.c.b16 %v685, %v681
    %v914 = vpack.c.b16 %v686, %v682
    %v915 = vpack.c.b16 %v687, %v683
    %v916 = vpack.c.b16 %v692, %v688
    %v917 = vpack.c.b16 %v693, %v689
    %v918 = vpack.c.b16 %v694, %v690
    %v919 = vpack.c.b16 %v695, %v691
    %v920 = vpack.c.b16 %v700, %v696
    %v921 = vpack.c.b16 %v701, %v697
    %v922 = vpack.c.b16 %v702, %v698
    %v923 = vpack.c.b16 %v703, %v699
    %v924 = vpack.c.b16 %v708, %v704
    %v925 = vpack.c.b16 %v709, %v705
    %v926 = vpack.c.b16 %v710, %v706
    %v927 = vpack.c.b16 %v711, %v707
    %v928 = vpack.c.b16 %v716, %v712
    %v929 = vpack.c.b16 %v717, %v713
    %v930 = vpack.c.b16 %v718, %v714
    %v931 = vpack.c.b16 %v719, %v715
    %v932 = vpack.c.b16 %v724, %v720
    %v933 = vpack.c.b16 %v725, %v721
    %v934 = vpack.c.b16 %v726, %v722
    %v935 = vpack.c.b16 %v727, %v723
    %v936 = vpack.c.b16 %v732, %v728
    %v937 = vpack.c.b16 %v733, %v729
    %v938 = vpack.c.b16 %v734, %v730
    %v939 = vpack.c.b16 %v735, %v731
    %v940 = vpack.c.b16 %v740, %v736
    %v941 = vpack.c.b16 %v741, %v737
    %v942 = vpack.c.b16 %v742, %v738
    %v943 = vpack.c.b16 %v743, %v739
    %v944 = vpack.c.b16 %v748, %v744
    %v945 = vpack.c.b16 %v749, %v745
    %v946 = vpack.c.b16 %v750, %v746
    %v947 = vpack.c.b16 %v751, %v747
    %v948 = vpack.c.b16 %v756, %v752
    %v949 = vpack.c.b16 %v757, %v753
    %v950 = vpack.c.b16 %v758, %v754
    %v951 = vpack.c.b16 %v759, %v755
    %v952 = vpack.c.b16 %v764, %v760
    %v953 = vpack.c.b16 %v765, %v761
    %v954 = vpack.c.b16 %v766, %v762
    %v955 = vpack.c.b16 %v767, %v763
    %v956 = vpack.c.b16 %v772, %v768
    %v957 = vpack.c.b16 %v773, %v769
    %v958 = vpack.c.b16 %v774, %v770
    %v959 = vpack.c.b16 %v775, %v771
    %v960 = vpack.c.b16 %v780, %v776
    %v961 = vpack.c.b16 %v781, %v777
    %v962 = vpack.c.b16 %v782, %v778
    %v963 = vpack.c.b16 %v783, %v779
    %v964 = vpack.c.b16 %v788, %v784
    %v965 = vpack.c.b16 %v789, %v785
    %v966 = vpack.c.b16 %v790, %v786
    %v967 = vpack.c.b16 %v791, %v787
    %v968 = vpack.c.b16 %v796, %v792
    %v969 = vpack.c.b16 %v797, %v793
    %v970 = vpack.c.b16 %v798, %v794
    %v971 = vpack.c.b16 %v799, %v795
    %v972 = vpack.c.b16 %v804, %v800
    %v973 = vpack.c.b16 %v805, %v801
    %v974 = vpack.c.b16 %v806, %v802
    %v975 = vpack.c.b16 %v807, %v803
    %v976 = vpack.c.b16 %v812, %v808
    %v977 = vpack.c.b16 %v813, %v809
    %v978 = vpack.c.b16 %v814, %v810
    %v979 = vpack.c.b16 %v815, %v811
    %v980 = vpack.c.b16 %v820, %v816
    %v981 = vpack.c.b16 %v821, %v817
    %v982 = vpack.c.b16 %v822, %v818
    %v983 = vpack.c.b16 %v823, %v819
    %v984 = vpack.c.b16 %v828, %v824
    %v985 = vpack.c.b16 %v829, %v825
    %v986 = vpack.c.b16 %v830, %v826
    %v987 = vpack.c.b16 %v831, %v827
    %v988 = vpack.c.b16 %v836, %v832
    %v989 = vpack.c.b16 %v837, %v833
    %v990 = vpack.c.b16 %v838, %v834
    %v991 = vpack.c.b16 %v839, %v835
    %v992 = vpack.c.b16 %v844, %v840
    %v993 = vpack.c.b16 %v845, %v841
    %v994 = vpack.c.b16 %v846, %v842
    %v995 = vpack.c.b16 %v847, %v843
    %v996 = vpack.c.b16 %v852, %v848
    %v997 = vpack.c.b16 %v853, %v849
    %v998 = vpack.c.b16 %v854, %v850
    %v999 = vpack.c.b16 %v855, %v851
    %v1000 = vpack.c.b16 %v860, %v856
    %v1001 = vpack.c.b16 %v861, %v857
    %v1002 = vpack.c.b16 %v862, %v858
    %v1003 = vpack.c.b16 %v863, %v859
    %v1004 = vpack.c.b16 %v868, %v864
    %v1005 = vpack.c.b16 %v869, %v865
    %v1006 = vpack.c.b16 %v870, %v866
    %v1007 = vpack.c.b16 %v871, %v867
    %v1008 = vpack.c.b16 %v876, %v872
    %v1009 = vpack.c.b16 %v877, %v873
    %v1010 = vpack.c.b16 %v878, %v874
    %v1011 = vpack.c.b16 %v879, %v875
    %v1012 = vpack.c.b16 %v884, %v880
    %v1013 = vpack.c.b16 %v885, %v881
    %v1014 = vpack.c.b16 %v886, %v882
    %v1015 = vpack.c.b16 %v887, %v883
    %1144 = vmatprep.subr.bf16.mxu0 %v917
    %1145 = vmatpush1.bf16.msra.mxu0 %v916
    %1146 = vmatprep.subr.bf16.mxu0 %v913
    %1147 = vmatpush1.bf16.msra.mxu0 %v912
    %1148 = vmatprep.subr.bf16.mxu0 %v909
    %1149 = vmatpush1.bf16.msra.mxu0 %v908
    %1150 = vmatprep.subr.bf16.mxu0 %v905
    %1151 = vmatpush1.bf16.msra.mxu0 %v904
    %1152 = vmatprep.subr.bf16.mxu0 %v901
    %1153 = vmatpush1.bf16.msra.mxu0 %v900
    %1154 = vmatprep.subr.bf16.mxu0 %v897
    %1155 = vmatpush1.bf16.msra.mxu0 %v896
    %1156 = vmatprep.subr.bf16.mxu0 %v893
    %1157 = vmatpush1.bf16.msra.mxu0 %v892
    %1158 = vmatprep.subr.bf16.mxu0 %v889
    %1159 = vmatpush1.bf16.msra.mxu0 %v888
    %1160 = vmatprep.subr.bf16.mxu0 %v949
    %1161 = vmatpush2.bf16.msra.mxu0 %v948
    %1162 = vmatprep.subr.bf16.mxu0 %v945
    %1163 = vmatpush2.bf16.msra.mxu0 %v944
    %1164 = vmatprep.subr.bf16.mxu0 %v941
    %1165 = vmatpush2.bf16.msra.mxu0 %v940
    %1166 = vmatprep.subr.bf16.mxu0 %v937
    %1167 = vmatpush2.bf16.msra.mxu0 %v936
    %1168 = vmatprep.subr.bf16.mxu0 %v933
    %1169 = vmatpush2.bf16.msra.mxu0 %v932
    %1170 = vmatprep.subr.bf16.mxu0 %v929
    %1171 = vmatpush2.bf16.msra.mxu0 %v928
    %1172 = vmatprep.subr.bf16.mxu0 %v925
    %1173 = vmatpush2.bf16.msra.mxu0 %v924
    %1174 = vmatprep.subr.bf16.mxu0 %v921
    %1175 = vmatpush2.bf16.msra.mxu0 %v920
    %1176 = vmatprep.mubr.bf16.mxu0 %v351
    %1177 = vmatmul.mubr.bf16.gmra.mxu0 %v350
    %v1178 = vpop.f32.mrf.mxu0
    %v1179 = vadd.f32 %v487, %v1178
    %v1180 = vpop.f32.mrf.mxu0
    %v1181 = vadd.f32 %v491, %v1180
    %v1182 = vpop.f32.mrf.mxu0
    %v1183 = vadd.f32 %v487, %v1182
    %v1184 = vpop.f32.mrf.mxu0
    %v1185 = vadd.f32 %v491, %v1184
    %1186 = vdwg.mxu0
    %1187 = vmatprep.subr.bf16.mxu0 %v981
    %1188 = vmatpush1.bf16.msra.mxu0 %v980
    %1189 = vmatprep.subr.bf16.mxu0 %v977
    %1190 = vmatpush1.bf16.msra.mxu0 %v976
    %1191 = vmatprep.subr.bf16.mxu0 %v973
    %1192 = vmatpush1.bf16.msra.mxu0 %v972
    %1193 = vmatprep.subr.bf16.mxu0 %v969
    %1194 = vmatpush1.bf16.msra.mxu0 %v968
    %1195 = vmatprep.subr.bf16.mxu0 %v965
    %1196 = vmatpush1.bf16.msra.mxu0 %v964
    %1197 = vmatprep.subr.bf16.mxu0 %v961
    %1198 = vmatpush1.bf16.msra.mxu0 %v960
    %1199 = vmatprep.subr.bf16.mxu0 %v957
    %1200 = vmatpush1.bf16.msra.mxu0 %v956
    %1201 = vmatprep.subr.bf16.mxu0 %v953
    %1202 = vmatpush1.bf16.msra.mxu0 %v952
    %1203 = vmatprep.subr.bf16.mxu0 %v1013
    %1204 = vmatpush2.bf16.msra.mxu0 %v1012
    %1205 = vmatprep.subr.bf16.mxu0 %v1009
    %1206 = vmatpush2.bf16.msra.mxu0 %v1008
    %1207 = vmatprep.subr.bf16.mxu0 %v1005
    %1208 = vmatpush2.bf16.msra.mxu0 %v1004
    %1209 = vmatprep.subr.bf16.mxu0 %v1001
    %1210 = vmatpush2.bf16.msra.mxu0 %v1000
    %1211 = vmatprep.subr.bf16.mxu0 %v997
    %1212 = vmatpush2.bf16.msra.mxu0 %v996
    %1213 = vmatprep.subr.bf16.mxu0 %v993
    %1214 = vmatpush2.bf16.msra.mxu0 %v992
    %1215 = vmatprep.subr.bf16.mxu0 %v989
    %1216 = vmatpush2.bf16.msra.mxu0 %v988
    %1217 = vmatprep.subr.bf16.mxu0 %v985
    %1218 = vmatpush2.bf16.msra.mxu0 %v984
    %1219 = vmatprep.mubr.bf16.mxu0 %v353
    %1220 = vmatmul.mubr.bf16.gmra.mxu0 %v352
    %v1221 = vpop.f32.mrf.mxu0
    %v1222 = vadd.f32 %v1179, %v1221
    %v1223 = vpop.f32.mrf.mxu0
    %v1224 = vadd.f32 %v1181, %v1223
    %v1225 = vpop.f32.mrf.mxu0
    %v1226 = vadd.f32 %v1183, %v1225
    %v1227 = vpop.f32.mrf.mxu0
    %v1228 = vadd.f32 %v1185, %v1227
    %1229 = vdwg.mxu0
    %1230 = vmatprep.subr.bf16.mxu0 %v919
    %1231 = vmatpush1.bf16.msra.mxu0 %v918
    %1232 = vmatprep.subr.bf16.mxu0 %v915
    %1233 = vmatpush1.bf16.msra.mxu0 %v914
    %1234 = vmatprep.subr.bf16.mxu0 %v911
    %1235 = vmatpush1.bf16.msra.mxu0 %v910
    %1236 = vmatprep.subr.bf16.mxu0 %v907
    %1237 = vmatpush1.bf16.msra.mxu0 %v906
    %1238 = vmatprep.subr.bf16.mxu0 %v903
    %1239 = vmatpush1.bf16.msra.mxu0 %v902
    %1240 = vmatprep.subr.bf16.mxu0 %v899
    %1241 = vmatpush1.bf16.msra.mxu0 %v898
    %1242 = vmatprep.subr.bf16.mxu0 %v895
    %1243 = vmatpush1.bf16.msra.mxu0 %v894
    %1244 = vmatprep.subr.bf16.mxu0 %v891
    %1245 = vmatpush1.bf16.msra.mxu0 %v890
    %1246 = vmatprep.subr.bf16.mxu0 %v951
    %1247 = vmatpush2.bf16.msra.mxu0 %v950
    %1248 = vmatprep.subr.bf16.mxu0 %v947
    %1249 = vmatpush2.bf16.msra.mxu0 %v946
    %1250 = vmatprep.subr.bf16.mxu0 %v943
    %1251 = vmatpush2.bf16.msra.mxu0 %v942
    %1252 = vmatprep.subr.bf16.mxu0 %v939
    %1253 = vmatpush2.bf16.msra.mxu0 %v938
    %1254 = vmatprep.subr.bf16.mxu0 %v935
    %1255 = vmatpush2.bf16.msra.mxu0 %v934
    %1256 = vmatprep.subr.bf16.mxu0 %v931
    %1257 = vmatpush2.bf16.msra.mxu0 %v930
    %1258 = vmatprep.subr.bf16.mxu0 %v927
    %1259 = vmatpush2.bf16.msra.mxu0 %v926
    %1260 = vmatprep.subr.bf16.mxu0 %v923
    %1261 = vmatpush2.bf16.msra.mxu0 %v922
    %1262 = vmatprep.mubr.bf16.mxu0 %v351
    %1263 = vmatmul.mubr.bf16.gmra.mxu0 %v350
    %v1264 = vpop.f32.mrf.mxu0
    %v1265 = vadd.f32 %v495, %v1264
    %v1266 = vpop.f32.mrf.mxu0
    %v1267 = vadd.f32 %v499, %v1266
    %v1268 = vpop.f32.mrf.mxu0
    %v1269 = vadd.f32 %v495, %v1268
    %v1270 = vpop.f32.mrf.mxu0
    %v1271 = vadd.f32 %v499, %v1270
    %1272 = vdwg.mxu0
    %1273 = vmatprep.subr.bf16.mxu0 %v983
    %1274 = vmatpush1.bf16.msra.mxu0 %v982
    %1275 = vmatprep.subr.bf16.mxu0 %v979
    %1276 = vmatpush1.bf16.msra.mxu0 %v978
    %1277 = vmatprep.subr.bf16.mxu0 %v975
    %1278 = vmatpush1.bf16.msra.mxu0 %v974
    %1279 = vmatprep.subr.bf16.mxu0 %v971
    %1280 = vmatpush1.bf16.msra.mxu0 %v970
    %1281 = vmatprep.subr.bf16.mxu0 %v967
    %1282 = vmatpush1.bf16.msra.mxu0 %v966
    %1283 = vmatprep.subr.bf16.mxu0 %v963
    %1284 = vmatpush1.bf16.msra.mxu0 %v962
    %1285 = vmatprep.subr.bf16.mxu0 %v959
    %1286 = vmatpush1.bf16.msra.mxu0 %v958
    %1287 = vmatprep.subr.bf16.mxu0 %v955
    %1288 = vmatpush1.bf16.msra.mxu0 %v954
    %1289 = vmatprep.subr.bf16.mxu0 %v1015
    %1290 = vmatpush2.bf16.msra.mxu0 %v1014
    %1291 = vmatprep.subr.bf16.mxu0 %v1011
    %1292 = vmatpush2.bf16.msra.mxu0 %v1010
    %1293 = vmatprep.subr.bf16.mxu0 %v1007
    %1294 = vmatpush2.bf16.msra.mxu0 %v1006
    %1295 = vmatprep.subr.bf16.mxu0 %v1003
    %1296 = vmatpush2.bf16.msra.mxu0 %v1002
    %1297 = vmatprep.subr.bf16.mxu0 %v999
    %1298 = vmatpush2.bf16.msra.mxu0 %v998
    %1299 = vmatprep.subr.bf16.mxu0 %v995
    %1300 = vmatpush2.bf16.msra.mxu0 %v994
    %1301 = vmatprep.subr.bf16.mxu0 %v991
    %1302 = vmatpush2.bf16.msra.mxu0 %v990
    %1303 = vmatprep.subr.bf16.mxu0 %v987
    %1304 = vmatpush2.bf16.msra.mxu0 %v986
    %1305 = vmatprep.mubr.bf16.mxu0 %v353
    %1306 = vmatmul.mubr.bf16.gmra.mxu0 %v352
    %v1307 = vpop.f32.mrf.mxu0
    %v1308 = vadd.f32 %v1265, %v1307
    %v1309 = vpop.f32.mrf.mxu0
    %v1310 = vadd.f32 %v1267, %v1309
    %v1311 = vpop.f32.mrf.mxu0
    %v1312 = vadd.f32 %v1269, %v1311
    %v1313 = vpop.f32.mrf.mxu0
    %v1314 = vadd.f32 %v1271, %v1313
    %1315 = vdwg.mxu0
    %vm1316 = vcmp.gt.f32.partialorder %v1222, 0.0
    %vm1317 = vcmp.gt.f32.partialorder %v1224, 0.0
    %vm1318 = vcmp.gt.f32.partialorder %v1308, 0.0
    %vm1319 = vcmp.gt.f32.partialorder %v1310, 0.0
    %vm1320 = vcmp.gt.f32.partialorder %v1226, 0.0
    %vm1321 = vcmp.gt.f32.partialorder %v1228, 0.0
    %vm1322 = vcmp.gt.f32.partialorder %v1312, 0.0
    %vm1323 = vcmp.gt.f32.partialorder %v1314, 0.0
    %v1324 = vmul.f32 %v1222, 0.2
    %v1325 = vmul.f32 %v1224, 0.2
    %v1326 = vmul.f32 %v1308, 0.2
    %v1327 = vmul.f32 %v1310, 0.2
    %v1328 = vmul.f32 %v1226, 0.2
    %v1329 = vmul.f32 %v1228, 0.2
    %v1330 = vmul.f32 %v1312, 0.2
    %v1331 = vmul.f32 %v1314, 0.2
    %v1332 = vsel %vm1316, %v1222, %v1324
    %v1333 = vsel %vm1317, %v1224, %v1325
    %v1334 = vsel %vm1318, %v1308, %v1326
    %v1335 = vsel %vm1319, %v1310, %v1327
    %v1336 = vsel %vm1320, %v1226, %v1328
    %v1337 = vsel %vm1321, %v1228, %v1329
    %v1338 = vsel %vm1322, %v1312, %v1330
    %v1339 = vsel %vm1323, %v1314, %v1331
    %v1340 = vpack.c.bf16 %v1336, %v1332
    %v1341 = vpack.c.bf16 %v1337, %v1333
    %v1342 = vpack.c.bf16 %v1338, %v1334
    %v1343 = vpack.c.bf16 %v1339, %v1335
    %v1344 = vld [vmem:[#allocation10] sm:$0xff]
    %v1345 = vld [vmem:[#allocation10 + $0x8] sm:$0xff]
    %v1346 = vld [vmem:[#allocation10 + $0x10] sm:$0xff]
    %v1347 = vld [vmem:[#allocation10 + $0x18] sm:$0xff]
    %v1348 = vld [vmem:[#allocation10 + $0x20] sm:$0xff]
    %v1349 = vld [vmem:[#allocation10 + $0x28] sm:$0xff]
    %v1350 = vld [vmem:[#allocation10 + $0x30] sm:$0xff]
    %v1351 = vld [vmem:[#allocation10 + $0x38] sm:$0xff]
    %v1352 = vld [vmem:[#allocation10 + $0x40] sm:$0xff]
    %v1353 = vld [vmem:[#allocation10 + $0x48] sm:$0xff]
    %v1354 = vld [vmem:[#allocation10 + $0x50] sm:$0xff]
    %v1355 = vld [vmem:[#allocation10 + $0x58] sm:$0xff]
    %v1356 = vld [vmem:[#allocation10 + $0x60] sm:$0xff]
    %v1357 = vld [vmem:[#allocation10 + $0x68] sm:$0xff]
    %v1358 = vld [vmem:[#allocation10 + $0x70] sm:$0xff]
    %v1359 = vld [vmem:[#allocation10 + $0x78] sm:$0xff]
    %v1360 = vld [vmem:[#allocation10 + $0x80] sm:$0xff]
    %v1361 = vld [vmem:[#allocation10 + $0x88] sm:$0xff]
    %v1362 = vld [vmem:[#allocation10 + $0x90] sm:$0xff]
    %v1363 = vld [vmem:[#allocation10 + $0x98] sm:$0xff]
    %v1364 = vld [vmem:[#allocation10 + $0xa0] sm:$0xff]
    %v1365 = vld [vmem:[#allocation10 + $0xa8] sm:$0xff]
    %v1366 = vld [vmem:[#allocation10 + $0xb0] sm:$0xff]
    %v1367 = vld [vmem:[#allocation10 + $0xb8] sm:$0xff]
    %v1368 = vld [vmem:[#allocation10 + $0xc0] sm:$0xff]
    %v1369 = vld [vmem:[#allocation10 + $0xc8] sm:$0xff]
    %v1370 = vld [vmem:[#allocation10 + $0xd0] sm:$0xff]
    %v1371 = vld [vmem:[#allocation10 + $0xd8] sm:$0xff]
    %v1372 = vld [vmem:[#allocation10 + $0xe0] sm:$0xff]
    %v1373 = vld [vmem:[#allocation10 + $0xe8] sm:$0xff]
    %v1374 = vld [vmem:[#allocation10 + $0xf0] sm:$0xff]
    %v1375 = vld [vmem:[#allocation10 + $0xf8] sm:$0xff]
    %v1376 = vld [vmem:[#allocation10 + $0x100] sm:$0xff]
    %v1377 = vld [vmem:[#allocation10 + $0x108] sm:$0xff]
    %v1378 = vld [vmem:[#allocation10 + $0x110] sm:$0xff]
    %v1379 = vld [vmem:[#allocation10 + $0x118] sm:$0xff]
    %v1380 = vld [vmem:[#allocation10 + $0x120] sm:$0xff]
    %v1381 = vld [vmem:[#allocation10 + $0x128] sm:$0xff]
    %v1382 = vld [vmem:[#allocation10 + $0x130] sm:$0xff]
    %v1383 = vld [vmem:[#allocation10 + $0x138] sm:$0xff]
    %v1384 = vld [vmem:[#allocation10 + $0x140] sm:$0xff]
    %v1385 = vld [vmem:[#allocation10 + $0x148] sm:$0xff]
    %v1386 = vld [vmem:[#allocation10 + $0x150] sm:$0xff]
    %v1387 = vld [vmem:[#allocation10 + $0x158] sm:$0xff]
    %v1388 = vld [vmem:[#allocation10 + $0x160] sm:$0xff]
    %v1389 = vld [vmem:[#allocation10 + $0x168] sm:$0xff]
    %v1390 = vld [vmem:[#allocation10 + $0x170] sm:$0xff]
    %v1391 = vld [vmem:[#allocation10 + $0x178] sm:$0xff]
    %v1392 = vld [vmem:[#allocation10 + $0x180] sm:$0xff]
    %v1393 = vld [vmem:[#allocation10 + $0x188] sm:$0xff]
    %v1394 = vld [vmem:[#allocation10 + $0x190] sm:$0xff]
    %v1395 = vld [vmem:[#allocation10 + $0x198] sm:$0xff]
    %v1396 = vld [vmem:[#allocation10 + $0x1a0] sm:$0xff]
    %v1397 = vld [vmem:[#allocation10 + $0x1a8] sm:$0xff]
    %v1398 = vld [vmem:[#allocation10 + $0x1b0] sm:$0xff]
    %v1399 = vld [vmem:[#allocation10 + $0x1b8] sm:$0xff]
    %v1400 = vld [vmem:[#allocation10 + $0x1c0] sm:$0xff]
    %v1401 = vld [vmem:[#allocation10 + $0x1c8] sm:$0xff]
    %v1402 = vld [vmem:[#allocation10 + $0x1d0] sm:$0xff]
    %v1403 = vld [vmem:[#allocation10 + $0x1d8] sm:$0xff]
    %v1404 = vld [vmem:[#allocation10 + $0x1e0] sm:$0xff]
    %v1405 = vld [vmem:[#allocation10 + $0x1e8] sm:$0xff]
    %v1406 = vld [vmem:[#allocation10 + $0x1f0] sm:$0xff]
    %v1407 = vld [vmem:[#allocation10 + $0x1f8] sm:$0xff]
    %v1408 = vld [vmem:[%s6] sm:$0x3]
    %v1410 = vlaneseq
    %v1411 = vshrl.u32 %v1410, 7
    %v1412 = vsub.s32 0, %v1411
    %v1413 = vrot.slane %v1408, %v1412
    %v1414 = vlaneseq
    %v1415 = vshrl.u32 %v1414, 7
    %v1416 = vsub.s32 1, %v1415
    %v1417 = vrot.slane %v1408, %v1416
    %v1484 = vunpack.c.l.b16 %v1344
    %v1485 = vunpack.c.h.b16 %v1344
    %v1486 = vunpack.c.l.b16 %v1345
    %v1487 = vunpack.c.h.b16 %v1345
    %v1488 = vunpack.c.l.b16 %v1346
    %v1489 = vunpack.c.h.b16 %v1346
    %v1490 = vunpack.c.l.b16 %v1347
    %v1491 = vunpack.c.h.b16 %v1347
    %v1492 = vunpack.c.l.b16 %v1348
    %v1493 = vunpack.c.h.b16 %v1348
    %v1494 = vunpack.c.l.b16 %v1349
    %v1495 = vunpack.c.h.b16 %v1349
    %v1496 = vunpack.c.l.b16 %v1350
    %v1497 = vunpack.c.h.b16 %v1350
    %v1498 = vunpack.c.l.b16 %v1351
    %v1499 = vunpack.c.h.b16 %v1351
    %v1500 = vunpack.c.l.b16 %v1352
    %v1501 = vunpack.c.h.b16 %v1352
    %v1502 = vunpack.c.l.b16 %v1353
    %v1503 = vunpack.c.h.b16 %v1353
    %v1504 = vunpack.c.l.b16 %v1354
    %v1505 = vunpack.c.h.b16 %v1354
    %v1506 = vunpack.c.l.b16 %v1355
    %v1507 = vunpack.c.h.b16 %v1355
    %v1508 = vunpack.c.l.b16 %v1356
    %v1509 = vunpack.c.h.b16 %v1356
    %v1510 = vunpack.c.l.b16 %v1357
    %v1511 = vunpack.c.h.b16 %v1357
    %v1512 = vunpack.c.l.b16 %v1358
    %v1513 = vunpack.c.h.b16 %v1358
    %v1514 = vunpack.c.l.b16 %v1359
    %v1515 = vunpack.c.h.b16 %v1359
    %v1516 = vunpack.c.l.b16 %v1360
    %v1517 = vunpack.c.h.b16 %v1360
    %v1518 = vunpack.c.l.b16 %v1361
    %v1519 = vunpack.c.h.b16 %v1361
    %v1520 = vunpack.c.l.b16 %v1362
    %v1521 = vunpack.c.h.b16 %v1362
    %v1522 = vunpack.c.l.b16 %v1363
    %v1523 = vunpack.c.h.b16 %v1363
    %v1524 = vunpack.c.l.b16 %v1364
    %v1525 = vunpack.c.h.b16 %v1364
    %v1526 = vunpack.c.l.b16 %v1365
    %v1527 = vunpack.c.h.b16 %v1365
    %v1528 = vunpack.c.l.b16 %v1366
    %v1529 = vunpack.c.h.b16 %v1366
    %v1530 = vunpack.c.l.b16 %v1367
    %v1531 = vunpack.c.h.b16 %v1367
    %v1532 = vunpack.c.l.b16 %v1368
    %v1533 = vunpack.c.h.b16 %v1368
    %v1534 = vunpack.c.l.b16 %v1369
    %v1535 = vunpack.c.h.b16 %v1369
    %v1536 = vunpack.c.l.b16 %v1370
    %v1537 = vunpack.c.h.b16 %v1370
    %v1538 = vunpack.c.l.b16 %v1371
    %v1539 = vunpack.c.h.b16 %v1371
    %v1540 = vunpack.c.l.b16 %v1372
    %v1541 = vunpack.c.h.b16 %v1372
    %v1542 = vunpack.c.l.b16 %v1373
    %v1543 = vunpack.c.h.b16 %v1373
    %v1544 = vunpack.c.l.b16 %v1374
    %v1545 = vunpack.c.h.b16 %v1374
    %v1546 = vunpack.c.l.b16 %v1375
    %v1547 = vunpack.c.h.b16 %v1375
    %v1548 = vunpack.c.l.b16 %v1376
    %v1549 = vunpack.c.h.b16 %v1376
    %v1550 = vunpack.c.l.b16 %v1377
    %v1551 = vunpack.c.h.b16 %v1377
    %v1552 = vunpack.c.l.b16 %v1378
    %v1553 = vunpack.c.h.b16 %v1378
    %v1554 = vunpack.c.l.b16 %v1379
    %v1555 = vunpack.c.h.b16 %v1379
    %v1556 = vunpack.c.l.b16 %v1380
    %v1557 = vunpack.c.h.b16 %v1380
    %v1558 = vunpack.c.l.b16 %v1381
    %v1559 = vunpack.c.h.b16 %v1381
    %v1560 = vunpack.c.l.b16 %v1382
    %v1561 = vunpack.c.h.b16 %v1382
    %v1562 = vunpack.c.l.b16 %v1383
    %v1563 = vunpack.c.h.b16 %v1383
    %v1564 = vunpack.c.l.b16 %v1384
    %v1565 = vunpack.c.h.b16 %v1384
    %v1566 = vunpack.c.l.b16 %v1385
    %v1567 = vunpack.c.h.b16 %v1385
    %v1568 = vunpack.c.l.b16 %v1386
    %v1569 = vunpack.c.h.b16 %v1386
    %v1570 = vunpack.c.l.b16 %v1387
    %v1571 = vunpack.c.h.b16 %v1387
    %v1572 = vunpack.c.l.b16 %v1388
    %v1573 = vunpack.c.h.b16 %v1388
    %v1574 = vunpack.c.l.b16 %v1389
    %v1575 = vunpack.c.h.b16 %v1389
    %v1576 = vunpack.c.l.b16 %v1390
    %v1577 = vunpack.c.h.b16 %v1390
    %v1578 = vunpack.c.l.b16 %v1391
    %v1579 = vunpack.c.h.b16 %v1391
    %v1580 = vunpack.c.l.b16 %v1392
    %v1581 = vunpack.c.h.b16 %v1392
    %v1582 = vunpack.c.l.b16 %v1393
    %v1583 = vunpack.c.h.b16 %v1393
    %v1584 = vunpack.c.l.b16 %v1394
    %v1585 = vunpack.c.h.b16 %v1394
    %v1586 = vunpack.c.l.b16 %v1395
    %v1587 = vunpack.c.h.b16 %v1395
    %v1588 = vunpack.c.l.b16 %v1396
    %v1589 = vunpack.c.h.b16 %v1396
    %v1590 = vunpack.c.l.b16 %v1397
    %v1591 = vunpack.c.h.b16 %v1397
    %v1592 = vunpack.c.l.b16 %v1398
    %v1593 = vunpack.c.h.b16 %v1398
    %v1594 = vunpack.c.l.b16 %v1399
    %v1595 = vunpack.c.h.b16 %v1399
    %v1596 = vunpack.c.l.b16 %v1400
    %v1597 = vunpack.c.h.b16 %v1400
    %v1598 = vunpack.c.l.b16 %v1401
    %v1599 = vunpack.c.h.b16 %v1401
    %v1600 = vunpack.c.l.b16 %v1402
    %v1601 = vunpack.c.h.b16 %v1402
    %v1602 = vunpack.c.l.b16 %v1403
    %v1603 = vunpack.c.h.b16 %v1403
    %v1604 = vunpack.c.l.b16 %v1404
    %v1605 = vunpack.c.h.b16 %v1404
    %v1606 = vunpack.c.l.b16 %v1405
    %v1607 = vunpack.c.h.b16 %v1405
    %v1608 = vunpack.c.l.b16 %v1406
    %v1609 = vunpack.c.h.b16 %v1406
    %v1610 = vunpack.c.l.b16 %v1407
    %v1611 = vunpack.c.h.b16 %v1407
    %v1612 = vpack.c.b16 %v1486, %v1484
    %v1613 = vpack.c.b16 %v1487, %v1485
    %v1614 = vpack.c.b16 %v1490, %v1488
    %v1615 = vpack.c.b16 %v1491, %v1489
    %v1616 = vpack.c.b16 %v1494, %v1492
    %v1617 = vpack.c.b16 %v1495, %v1493
    %v1618 = vpack.c.b16 %v1498, %v1496
    %v1619 = vpack.c.b16 %v1499, %v1497
    %v1620 = vpack.c.b16 %v1502, %v1500
    %v1621 = vpack.c.b16 %v1503, %v1501
    %v1622 = vpack.c.b16 %v1506, %v1504
    %v1623 = vpack.c.b16 %v1507, %v1505
    %v1624 = vpack.c.b16 %v1510, %v1508
    %v1625 = vpack.c.b16 %v1511, %v1509
    %v1626 = vpack.c.b16 %v1514, %v1512
    %v1627 = vpack.c.b16 %v1515, %v1513
    %v1628 = vpack.c.b16 %v1518, %v1516
    %v1629 = vpack.c.b16 %v1519, %v1517
    %v1630 = vpack.c.b16 %v1522, %v1520
    %v1631 = vpack.c.b16 %v1523, %v1521
    %v1632 = vpack.c.b16 %v1526, %v1524
    %v1633 = vpack.c.b16 %v1527, %v1525
    %v1634 = vpack.c.b16 %v1530, %v1528
    %v1635 = vpack.c.b16 %v1531, %v1529
    %v1636 = vpack.c.b16 %v1534, %v1532
    %v1637 = vpack.c.b16 %v1535, %v1533
    %v1638 = vpack.c.b16 %v1538, %v1536
    %v1639 = vpack.c.b16 %v1539, %v1537
    %v1640 = vpack.c.b16 %v1542, %v1540
    %v1641 = vpack.c.b16 %v1543, %v1541
    %v1642 = vpack.c.b16 %v1546, %v1544
    %v1643 = vpack.c.b16 %v1547, %v1545
    %v1644 = vpack.c.b16 %v1550, %v1548
    %v1645 = vpack.c.b16 %v1551, %v1549
    %v1646 = vpack.c.b16 %v1554, %v1552
    %v1647 = vpack.c.b16 %v1555, %v1553
    %v1648 = vpack.c.b16 %v1558, %v1556
    %v1649 = vpack.c.b16 %v1559, %v1557
    %v1650 = vpack.c.b16 %v1562, %v1560
    %v1651 = vpack.c.b16 %v1563, %v1561
    %v1652 = vpack.c.b16 %v1566, %v1564
    %v1653 = vpack.c.b16 %v1567, %v1565
    %v1654 = vpack.c.b16 %v1570, %v1568
    %v1655 = vpack.c.b16 %v1571, %v1569
    %v1656 = vpack.c.b16 %v1574, %v1572
    %v1657 = vpack.c.b16 %v1575, %v1573
    %v1658 = vpack.c.b16 %v1578, %v1576
    %v1659 = vpack.c.b16 %v1579, %v1577
    %v1660 = vpack.c.b16 %v1582, %v1580
    %v1661 = vpack.c.b16 %v1583, %v1581
    %v1662 = vpack.c.b16 %v1586, %v1584
    %v1663 = vpack.c.b16 %v1587, %v1585
    %v1664 = vpack.c.b16 %v1590, %v1588
    %v1665 = vpack.c.b16 %v1591, %v1589
    %v1666 = vpack.c.b16 %v1594, %v1592
    %v1667 = vpack.c.b16 %v1595, %v1593
    %v1668 = vpack.c.b16 %v1598, %v1596
    %v1669 = vpack.c.b16 %v1599, %v1597
    %v1670 = vpack.c.b16 %v1602, %v1600
    %v1671 = vpack.c.b16 %v1603, %v1601
    %v1672 = vpack.c.b16 %v1606, %v1604
    %v1673 = vpack.c.b16 %v1607, %v1605
    %v1674 = vpack.c.b16 %v1610, %v1608
    %v1675 = vpack.c.b16 %v1611, %v1609
    %1740 = vmatprep.subr.bf16.mxu0 %v1627
    %1741 = vmatpush1.bf16.msra.mxu0 %v1626
    %1742 = vmatprep.subr.bf16.mxu0 %v1625
    %1743 = vmatpush1.bf16.msra.mxu0 %v1624
    %1744 = vmatprep.subr.bf16.mxu0 %v1623
    %1745 = vmatpush1.bf16.msra.mxu0 %v1622
    %1746 = vmatprep.subr.bf16.mxu0 %v1621
    %1747 = vmatpush1.bf16.msra.mxu0 %v1620
    %1748 = vmatprep.subr.bf16.mxu0 %v1619
    %1749 = vmatpush1.bf16.msra.mxu0 %v1618
    %1750 = vmatprep.subr.bf16.mxu0 %v1617
    %1751 = vmatpush1.bf16.msra.mxu0 %v1616
    %1752 = vmatprep.subr.bf16.mxu0 %v1615
    %1753 = vmatpush1.bf16.msra.mxu0 %v1614
    %1754 = vmatprep.subr.bf16.mxu0 %v1613
    %1755 = vmatpush1.bf16.msra.mxu0 %v1612
    %1756 = vmatprep.subr.bf16.mxu0 %v1643
    %1757 = vmatpush2.bf16.msra.mxu0 %v1642
    %1758 = vmatprep.subr.bf16.mxu0 %v1641
    %1759 = vmatpush2.bf16.msra.mxu0 %v1640
    %1760 = vmatprep.subr.bf16.mxu0 %v1639
    %1761 = vmatpush2.bf16.msra.mxu0 %v1638
    %1762 = vmatprep.subr.bf16.mxu0 %v1637
    %1763 = vmatpush2.bf16.msra.mxu0 %v1636
    %1764 = vmatprep.subr.bf16.mxu0 %v1635
    %1765 = vmatpush2.bf16.msra.mxu0 %v1634
    %1766 = vmatprep.subr.bf16.mxu0 %v1633
    %1767 = vmatpush2.bf16.msra.mxu0 %v1632
    %1768 = vmatprep.subr.bf16.mxu0 %v1631
    %1769 = vmatpush2.bf16.msra.mxu0 %v1630
    %1770 = vmatprep.subr.bf16.mxu0 %v1629
    %1771 = vmatpush2.bf16.msra.mxu0 %v1628
    %1772 = vmatprep.mubr.bf16.mxu0 %v1341
    %1773 = vmatmul.mubr.bf16.gmra.mxu0 %v1340
    %v1774 = vpop.f32.mrf.mxu0
    %v1775 = vadd.f32 %v1413, %v1774
    %v1776 = vpop.f32.mrf.mxu0
    %v1777 = vadd.f32 %v1417, %v1776
    %v1778 = vpop.f32.mrf.mxu0
    %v1779 = vadd.f32 %v1413, %v1778
    %v1780 = vpop.f32.mrf.mxu0
    %v1781 = vadd.f32 %v1417, %v1780
    %1782 = vdwg.mxu0
    %1783 = vmatprep.subr.bf16.mxu0 %v1659
    %1784 = vmatpush1.bf16.msra.mxu0 %v1658
    %1785 = vmatprep.subr.bf16.mxu0 %v1657
    %1786 = vmatpush1.bf16.msra.mxu0 %v1656
    %1787 = vmatprep.subr.bf16.mxu0 %v1655
    %1788 = vmatpush1.bf16.msra.mxu0 %v1654
    %1789 = vmatprep.subr.bf16.mxu0 %v1653
    %1790 = vmatpush1.bf16.msra.mxu0 %v1652
    %1791 = vmatprep.subr.bf16.mxu0 %v1651
    %1792 = vmatpush1.bf16.msra.mxu0 %v1650
    %1793 = vmatprep.subr.bf16.mxu0 %v1649
    %1794 = vmatpush1.bf16.msra.mxu0 %v1648
    %1795 = vmatprep.subr.bf16.mxu0 %v1647
    %1796 = vmatpush1.bf16.msra.mxu0 %v1646
    %1797 = vmatprep.subr.bf16.mxu0 %v1645
    %1798 = vmatpush1.bf16.msra.mxu0 %v1644
    %1799 = vmatprep.subr.bf16.mxu0 %v1675
    %1800 = vmatpush2.bf16.msra.mxu0 %v1674
    %1801 = vmatprep.subr.bf16.mxu0 %v1673
    %1802 = vmatpush2.bf16.msra.mxu0 %v1672
    %1803 = vmatprep.subr.bf16.mxu0 %v1671
    %1804 = vmatpush2.bf16.msra.mxu0 %v1670
    %1805 = vmatprep.subr.bf16.mxu0 %v1669
    %1806 = vmatpush2.bf16.msra.mxu0 %v1668
    %1807 = vmatprep.subr.bf16.mxu0 %v1667
    %1808 = vmatpush2.bf16.msra.mxu0 %v1666
    %1809 = vmatprep.subr.bf16.mxu0 %v1665
    %1810 = vmatpush2.bf16.msra.mxu0 %v1664
    %1811 = vmatprep.subr.bf16.mxu0 %v1663
    %1812 = vmatpush2.bf16.msra.mxu0 %v1662
    %1813 = vmatprep.subr.bf16.mxu0 %v1661
    %1814 = vmatpush2.bf16.msra.mxu0 %v1660
    %1815 = vmatprep.mubr.bf16.mxu0 %v1343
    %1816 = vmatmul.mubr.bf16.gmra.mxu0 %v1342
    %v1817 = vpop.f32.mrf.mxu0
    %v1818 = vadd.f32 %v1775, %v1817
    %v1819 = vpop.f32.mrf.mxu0
    %v1820 = vadd.f32 %v1777, %v1819
    %v1821 = vpop.f32.mrf.mxu0
    %v1822 = vadd.f32 %v1779, %v1821
    %v1823 = vpop.f32.mrf.mxu0
    %v1824 = vadd.f32 %v1781, %v1823
    %1825 = vdwg.mxu0
    %vm1826 = vcmp.gt.f32.partialorder %v1818, 0.0
    %vm1827 = vcmp.gt.f32.partialorder %v1820, 0.0
    %vm1828 = vcmp.gt.f32.partialorder %v1822, 0.0
    %vm1829 = vcmp.gt.f32.partialorder %v1824, 0.0
    %v1830 = vmul.f32 %v1818, 0.2
    %v1831 = vmul.f32 %v1820, 0.2
    %v1832 = vmul.f32 %v1822, 0.2
    %v1833 = vmul.f32 %v1824, 0.2
    %v1834 = vsel %vm1826, %v1818, %v1830
    %v1835 = vsel %vm1827, %v1820, %v1831
    %v1836 = vsel %vm1828, %v1822, %v1832
    %v1837 = vsel %vm1829, %v1824, %v1833
    %v1838 = vpack.c.bf16 %v1836, %v1834
    %v1839 = vpack.c.bf16 %v1837, %v1835
    %v1840 = vld [vmem:[#allocation11] sm:$0xff]
    %v1841 = vld [vmem:[#allocation11 + $0x8] sm:$0xff]
    %v1842 = vld [vmem:[#allocation11 + $0x10] sm:$0xff]
    %v1843 = vld [vmem:[#allocation11 + $0x18] sm:$0xff]
    %v1844 = vld [vmem:[#allocation11 + $0x20] sm:$0xff]
    %v1845 = vld [vmem:[#allocation11 + $0x28] sm:$0xff]
    %v1846 = vld [vmem:[#allocation11 + $0x30] sm:$0xff]
    %v1847 = vld [vmem:[#allocation11 + $0x38] sm:$0xff]
    %v1848 = vld [vmem:[#allocation11 + $0x40] sm:$0xff]
    %v1849 = vld [vmem:[#allocation11 + $0x48] sm:$0xff]
    %v1850 = vld [vmem:[#allocation11 + $0x50] sm:$0xff]
    %v1851 = vld [vmem:[#allocation11 + $0x58] sm:$0xff]
    %v1852 = vld [vmem:[#allocation11 + $0x60] sm:$0xff]
    %v1853 = vld [vmem:[#allocation11 + $0x68] sm:$0xff]
    %v1854 = vld [vmem:[#allocation11 + $0x70] sm:$0xff]
    %v1855 = vld [vmem:[#allocation11 + $0x78] sm:$0xff]
    %v1856 = vld [vmem:[#allocation11 + $0x80] sm:$0xff]
    %v1857 = vld [vmem:[#allocation11 + $0x88] sm:$0xff]
    %v1858 = vld [vmem:[#allocation11 + $0x90] sm:$0xff]
    %v1859 = vld [vmem:[#allocation11 + $0x98] sm:$0xff]
    %v1860 = vld [vmem:[#allocation11 + $0xa0] sm:$0xff]
    %v1861 = vld [vmem:[#allocation11 + $0xa8] sm:$0xff]
    %v1862 = vld [vmem:[#allocation11 + $0xb0] sm:$0xff]
    %v1863 = vld [vmem:[#allocation11 + $0xb8] sm:$0xff]
    %v1864 = vld [vmem:[#allocation11 + $0xc0] sm:$0xff]
    %v1865 = vld [vmem:[#allocation11 + $0xc8] sm:$0xff]
    %v1866 = vld [vmem:[#allocation11 + $0xd0] sm:$0xff]
    %v1867 = vld [vmem:[#allocation11 + $0xd8] sm:$0xff]
    %v1868 = vld [vmem:[#allocation11 + $0xe0] sm:$0xff]
    %v1869 = vld [vmem:[#allocation11 + $0xe8] sm:$0xff]
    %v1870 = vld [vmem:[#allocation11 + $0xf0] sm:$0xff]
    %v1871 = vld [vmem:[#allocation11 + $0xf8] sm:$0xff]
    %v1872 = vld [vmem:[%s8] sm:$0x3]
    %v1874 = vlaneseq
    %v1875 = vshrl.u32 %v1874, 7
    %v1876 = vsub.s32 0, %v1875
    %v1877 = vrot.slane %v1872, %v1876
    %v1878 = vlaneseq
    %v1879 = vshrl.u32 %v1878, 7
    %v1880 = vsub.s32 1, %v1879
    %v1881 = vrot.slane %v1872, %v1880
    %v1916 = vunpack.c.l.b16 %v1840
    %v1917 = vunpack.c.h.b16 %v1840
    %v1918 = vunpack.c.l.b16 %v1841
    %v1919 = vunpack.c.h.b16 %v1841
    %v1920 = vunpack.c.l.b16 %v1842
    %v1921 = vunpack.c.h.b16 %v1842
    %v1922 = vunpack.c.l.b16 %v1843
    %v1923 = vunpack.c.h.b16 %v1843
    %v1924 = vunpack.c.l.b16 %v1844
    %v1925 = vunpack.c.h.b16 %v1844
    %v1926 = vunpack.c.l.b16 %v1845
    %v1927 = vunpack.c.h.b16 %v1845
    %v1928 = vunpack.c.l.b16 %v1846
    %v1929 = vunpack.c.h.b16 %v1846
    %v1930 = vunpack.c.l.b16 %v1847
    %v1931 = vunpack.c.h.b16 %v1847
    %v1932 = vunpack.c.l.b16 %v1848
    %v1933 = vunpack.c.h.b16 %v1848
    %v1934 = vunpack.c.l.b16 %v1849
    %v1935 = vunpack.c.h.b16 %v1849
    %v1936 = vunpack.c.l.b16 %v1850
    %v1937 = vunpack.c.h.b16 %v1850
    %v1938 = vunpack.c.l.b16 %v1851
    %v1939 = vunpack.c.h.b16 %v1851
    %v1940 = vunpack.c.l.b16 %v1852
    %v1941 = vunpack.c.h.b16 %v1852
    %v1942 = vunpack.c.l.b16 %v1853
    %v1943 = vunpack.c.h.b16 %v1853
    %v1944 = vunpack.c.l.b16 %v1854
    %v1945 = vunpack.c.h.b16 %v1854
    %v1946 = vunpack.c.l.b16 %v1855
    %v1947 = vunpack.c.h.b16 %v1855
    %v1948 = vunpack.c.l.b16 %v1856
    %v1949 = vunpack.c.h.b16 %v1856
    %v1950 = vunpack.c.l.b16 %v1857
    %v1951 = vunpack.c.h.b16 %v1857
    %v1952 = vunpack.c.l.b16 %v1858
    %v1953 = vunpack.c.h.b16 %v1858
    %v1954 = vunpack.c.l.b16 %v1859
    %v1955 = vunpack.c.h.b16 %v1859
    %v1956 = vunpack.c.l.b16 %v1860
    %v1957 = vunpack.c.h.b16 %v1860
    %v1958 = vunpack.c.l.b16 %v1861
    %v1959 = vunpack.c.h.b16 %v1861
    %v1960 = vunpack.c.l.b16 %v1862
    %v1961 = vunpack.c.h.b16 %v1862
    %v1962 = vunpack.c.l.b16 %v1863
    %v1963 = vunpack.c.h.b16 %v1863
    %v1964 = vunpack.c.l.b16 %v1864
    %v1965 = vunpack.c.h.b16 %v1864
    %v1966 = vunpack.c.l.b16 %v1865
    %v1967 = vunpack.c.h.b16 %v1865
    %v1968 = vunpack.c.l.b16 %v1866
    %v1969 = vunpack.c.h.b16 %v1866
    %v1970 = vunpack.c.l.b16 %v1867
    %v1971 = vunpack.c.h.b16 %v1867
    %v1972 = vunpack.c.l.b16 %v1868
    %v1973 = vunpack.c.h.b16 %v1868
    %v1974 = vunpack.c.l.b16 %v1869
    %v1975 = vunpack.c.h.b16 %v1869
    %v1976 = vunpack.c.l.b16 %v1870
    %v1977 = vunpack.c.h.b16 %v1870
    %v1978 = vunpack.c.l.b16 %v1871
    %v1979 = vunpack.c.h.b16 %v1871
    %v1980 = vpack.c.b16 %v1918, %v1916
    %v1981 = vpack.c.b16 %v1919, %v1917
    %v1982 = vpack.c.b16 %v1922, %v1920
    %v1983 = vpack.c.b16 %v1923, %v1921
    %v1984 = vpack.c.b16 %v1926, %v1924
    %v1985 = vpack.c.b16 %v1927, %v1925
    %v1986 = vpack.c.b16 %v1930, %v1928
    %v1987 = vpack.c.b16 %v1931, %v1929
    %v1988 = vpack.c.b16 %v1934, %v1932
    %v1989 = vpack.c.b16 %v1935, %v1933
    %v1990 = vpack.c.b16 %v1938, %v1936
    %v1991 = vpack.c.b16 %v1939, %v1937
    %v1992 = vpack.c.b16 %v1942, %v1940
    %v1993 = vpack.c.b16 %v1943, %v1941
    %v1994 = vpack.c.b16 %v1946, %v1944
    %v1995 = vpack.c.b16 %v1947, %v1945
    %v1996 = vpack.c.b16 %v1950, %v1948
    %v1997 = vpack.c.b16 %v1951, %v1949
    %v1998 = vpack.c.b16 %v1954, %v1952
    %v1999 = vpack.c.b16 %v1955, %v1953
    %v2000 = vpack.c.b16 %v1958, %v1956
    %v2001 = vpack.c.b16 %v1959, %v1957
    %v2002 = vpack.c.b16 %v1962, %v1960
    %v2003 = vpack.c.b16 %v1963, %v1961
    %v2004 = vpack.c.b16 %v1966, %v1964
    %v2005 = vpack.c.b16 %v1967, %v1965
    %v2006 = vpack.c.b16 %v1970, %v1968
    %v2007 = vpack.c.b16 %v1971, %v1969
    %v2008 = vpack.c.b16 %v1974, %v1972
    %v2009 = vpack.c.b16 %v1975, %v1973
    %v2010 = vpack.c.b16 %v1978, %v1976
    %v2011 = vpack.c.b16 %v1979, %v1977
    %2044 = vmatprep.subr.bf16.mxu0 %v1995
    %2045 = vmatpush1.bf16.msra.mxu0 %v1994
    %2046 = vmatprep.subr.bf16.mxu0 %v1993
    %2047 = vmatpush1.bf16.msra.mxu0 %v1992
    %2048 = vmatprep.subr.bf16.mxu0 %v1991
    %2049 = vmatpush1.bf16.msra.mxu0 %v1990
    %2050 = vmatprep.subr.bf16.mxu0 %v1989
    %2051 = vmatpush1.bf16.msra.mxu0 %v1988
    %2052 = vmatprep.subr.bf16.mxu0 %v1987
    %2053 = vmatpush1.bf16.msra.mxu0 %v1986
    %2054 = vmatprep.subr.bf16.mxu0 %v1985
    %2055 = vmatpush1.bf16.msra.mxu0 %v1984
    %2056 = vmatprep.subr.bf16.mxu0 %v1983
    %2057 = vmatpush1.bf16.msra.mxu0 %v1982
    %2058 = vmatprep.subr.bf16.mxu0 %v1981
    %2059 = vmatpush1.bf16.msra.mxu0 %v1980
    %2060 = vmatprep.subr.bf16.mxu0 %v2011
    %2061 = vmatpush2.bf16.msra.mxu0 %v2010
    %2062 = vmatprep.subr.bf16.mxu0 %v2009
    %2063 = vmatpush2.bf16.msra.mxu0 %v2008
    %2064 = vmatprep.subr.bf16.mxu0 %v2007
    %2065 = vmatpush2.bf16.msra.mxu0 %v2006
    %2066 = vmatprep.subr.bf16.mxu0 %v2005
    %2067 = vmatpush2.bf16.msra.mxu0 %v2004
    %2068 = vmatprep.subr.bf16.mxu0 %v2003
    %2069 = vmatpush2.bf16.msra.mxu0 %v2002
    %2070 = vmatprep.subr.bf16.mxu0 %v2001
    %2071 = vmatpush2.bf16.msra.mxu0 %v2000
    %2072 = vmatprep.subr.bf16.mxu0 %v1999
    %2073 = vmatpush2.bf16.msra.mxu0 %v1998
    %2074 = vmatprep.subr.bf16.mxu0 %v1997
    %2075 = vmatpush2.bf16.msra.mxu0 %v1996
    %2076 = vmatprep.mubr.bf16.mxu0 %v1839
    %2077 = vmatmul.mubr.bf16.gmra.mxu0 %v1838
    %v2078 = vpop.f32.mrf.mxu0
    %v2079 = vadd.f32 %v1877, %v2078
    %v2080 = vpop.f32.mrf.mxu0
    %v2081 = vadd.f32 %v1881, %v2080
    %v2082 = vpop.f32.mrf.mxu0
    %v2083 = vadd.f32 %v1877, %v2082
    %v2084 = vpop.f32.mrf.mxu0
    %v2085 = vadd.f32 %v1881, %v2084
    %2086 = vdwg.mxu0
    %vm2087 = vcmp.gt.f32.partialorder %v2079, 0.0
    %vm2088 = vcmp.gt.f32.partialorder %v2081, 0.0
    %vm2089 = vcmp.gt.f32.partialorder %v2083, 0.0
    %vm2090 = vcmp.gt.f32.partialorder %v2085, 0.0
    %v2091 = vmul.f32 %v2079, 0.2
    %v2092 = vmul.f32 %v2081, 0.2
    %v2093 = vmul.f32 %v2083, 0.2
    %v2094 = vmul.f32 %v2085, 0.2
    %v2095 = vsel %vm2087, %v2079, %v2091
    %v2096 = vsel %vm2088, %v2081, %v2092
    %v2097 = vsel %vm2089, %v2083, %v2093
    %v2098 = vsel %vm2090, %v2085, %v2094
    %v2099 = vpack.c.bf16 %v2097, %v2095
    %v2100 = vpack.c.bf16 %v2098, %v2096
    %v2101 = vld [vmem:[#allocation13] sm:$0xf]
    %v2102 = vld [vmem:[#allocation13 + $0x4] sm:$0xf]
    %v2103 = vld [vmem:[#allocation13 + $0x8] sm:$0xf]
    %v2104 = vld [vmem:[#allocation13 + $0xc] sm:$0xf]
    %v2105 = vld [vmem:[#allocation13 + $0x10] sm:$0xf]
    %v2106 = vld [vmem:[#allocation13 + $0x14] sm:$0xf]
    %v2107 = vld [vmem:[#allocation13 + $0x18] sm:$0xf]
    %v2108 = vld [vmem:[#allocation13 + $0x1c] sm:$0xf]
    %v2109 = vld [vmem:[#allocation13 + $0x20] sm:$0xf]
    %v2110 = vld [vmem:[#allocation13 + $0x24] sm:$0xf]
    %v2111 = vld [vmem:[#allocation13 + $0x28] sm:$0xf]
    %v2112 = vld [vmem:[#allocation13 + $0x2c] sm:$0xf]
    %v2113 = vld [vmem:[#allocation13 + $0x30] sm:$0xf]
    %v2114 = vld [vmem:[#allocation13 + $0x34] sm:$0xf]
    %v2115 = vld [vmem:[#allocation13 + $0x38] sm:$0xf]
    %v2116 = vld [vmem:[#allocation13 + $0x3c] sm:$0xf]
    %v2117 = vld [vmem:[#allocation13 + $0x40] sm:$0xf]
    %v2118 = vld [vmem:[#allocation13 + $0x44] sm:$0xf]
    %v2119 = vld [vmem:[#allocation13 + $0x48] sm:$0xf]
    %v2120 = vld [vmem:[#allocation13 + $0x4c] sm:$0xf]
    %v2121 = vld [vmem:[#allocation13 + $0x50] sm:$0xf]
    %v2122 = vld [vmem:[#allocation13 + $0x54] sm:$0xf]
    %v2123 = vld [vmem:[#allocation13 + $0x58] sm:$0xf]
    %v2124 = vld [vmem:[#allocation13 + $0x5c] sm:$0xf]
    %v2125 = vld [vmem:[#allocation13 + $0x60] sm:$0xf]
    %v2126 = vld [vmem:[#allocation13 + $0x64] sm:$0xf]
    %v2127 = vld [vmem:[#allocation13 + $0x68] sm:$0xf]
    %v2128 = vld [vmem:[#allocation13 + $0x6c] sm:$0xf]
    %v2129 = vld [vmem:[#allocation13 + $0x70] sm:$0xf]
    %v2130 = vld [vmem:[#allocation13 + $0x74] sm:$0xf]
    %v2131 = vld [vmem:[#allocation13 + $0x78] sm:$0xf]
    %v2132 = vld [vmem:[#allocation13 + $0x7c] sm:$0xf]
    %v2133 = vld [vmem:[%s10] sm:$0x1]
    %v2135 = vlaneseq
    %v2136 = vshrl.u32 %v2135, 7
    %v2137 = vsub.s32 0, %v2136
    %v2138 = vrot.slane %v2133, %v2137
    %v2172 = vunpack.c.l.b16 %v2101
    %v2173 = vunpack.c.l.b16 %v2102
    %v2174 = vunpack.c.l.b16 %v2103
    %v2175 = vunpack.c.l.b16 %v2104
    %v2176 = vunpack.c.l.b16 %v2105
    %v2177 = vunpack.c.l.b16 %v2106
    %v2178 = vunpack.c.l.b16 %v2107
    %v2179 = vunpack.c.l.b16 %v2108
    %v2180 = vunpack.c.l.b16 %v2109
    %v2181 = vunpack.c.l.b16 %v2110
    %v2182 = vunpack.c.l.b16 %v2111
    %v2183 = vunpack.c.l.b16 %v2112
    %v2184 = vunpack.c.l.b16 %v2113
    %v2185 = vunpack.c.l.b16 %v2114
    %v2186 = vunpack.c.l.b16 %v2115
    %v2187 = vunpack.c.l.b16 %v2116
    %v2188 = vunpack.c.l.b16 %v2117
    %v2189 = vunpack.c.l.b16 %v2118
    %v2190 = vunpack.c.l.b16 %v2119
    %v2191 = vunpack.c.l.b16 %v2120
    %v2192 = vunpack.c.l.b16 %v2121
    %v2193 = vunpack.c.l.b16 %v2122
    %v2194 = vunpack.c.l.b16 %v2123
    %v2195 = vunpack.c.l.b16 %v2124
    %v2196 = vunpack.c.l.b16 %v2125
    %v2197 = vunpack.c.l.b16 %v2126
    %v2198 = vunpack.c.l.b16 %v2127
    %v2199 = vunpack.c.l.b16 %v2128
    %v2200 = vunpack.c.l.b16 %v2129
    %v2201 = vunpack.c.l.b16 %v2130
    %v2202 = vunpack.c.l.b16 %v2131
    %v2203 = vunpack.c.l.b16 %v2132
    %v2204 = vpack.c.b16 %v2173, %v2172
    %v2205 = vpack.c.b16 %v2175, %v2174
    %v2206 = vpack.c.b16 %v2177, %v2176
    %v2207 = vpack.c.b16 %v2179, %v2178
    %v2208 = vpack.c.b16 %v2181, %v2180
    %v2209 = vpack.c.b16 %v2183, %v2182
    %v2210 = vpack.c.b16 %v2185, %v2184
    %v2211 = vpack.c.b16 %v2187, %v2186
    %v2212 = vpack.c.b16 %v2189, %v2188
    %v2213 = vpack.c.b16 %v2191, %v2190
    %v2214 = vpack.c.b16 %v2193, %v2192
    %v2215 = vpack.c.b16 %v2195, %v2194
    %v2216 = vpack.c.b16 %v2197, %v2196
    %v2217 = vpack.c.b16 %v2199, %v2198
    %v2218 = vpack.c.b16 %v2201, %v2200
    %v2219 = vpack.c.b16 %v2203, %v2202
    %2236 = vmatprep.subr.bf16.mxu0 0
    %2237 = vmatpush1.bf16.msra.mxu0 %v2211
    %2238 = vmatprep.subr.bf16.mxu0 0
    %2239 = vmatpush1.bf16.msra.mxu0 %v2210
    %2240 = vmatprep.subr.bf16.mxu0 0
    %2241 = vmatpush1.bf16.msra.mxu0 %v2209
    %2242 = vmatprep.subr.bf16.mxu0 0
    %2243 = vmatpush1.bf16.msra.mxu0 %v2208
    %2244 = vmatprep.subr.bf16.mxu0 0
    %2245 = vmatpush1.bf16.msra.mxu0 %v2207
    %2246 = vmatprep.subr.bf16.mxu0 0
    %2247 = vmatpush1.bf16.msra.mxu0 %v2206
    %2248 = vmatprep.subr.bf16.mxu0 0
    %2249 = vmatpush1.bf16.msra.mxu0 %v2205
    %2250 = vmatprep.subr.bf16.mxu0 0
    %2251 = vmatpush1.bf16.msra.mxu0 %v2204
    %2252 = vmatprep.subr.bf16.mxu0 0
    %2253 = vmatpush2.bf16.msra.mxu0 %v2219
    %2254 = vmatprep.subr.bf16.mxu0 0
    %2255 = vmatpush2.bf16.msra.mxu0 %v2218
    %2256 = vmatprep.subr.bf16.mxu0 0
    %2257 = vmatpush2.bf16.msra.mxu0 %v2217
    %2258 = vmatprep.subr.bf16.mxu0 0
    %2259 = vmatpush2.bf16.msra.mxu0 %v2216
    %2260 = vmatprep.subr.bf16.mxu0 0
    %2261 = vmatpush2.bf16.msra.mxu0 %v2215
    %2262 = vmatprep.subr.bf16.mxu0 0
    %2263 = vmatpush2.bf16.msra.mxu0 %v2214
    %2264 = vmatprep.subr.bf16.mxu0 0
    %2265 = vmatpush2.bf16.msra.mxu0 %v2213
    %2266 = vmatprep.subr.bf16.mxu0 0
    %2267 = vmatpush2.bf16.msra.mxu0 %v2212
    %2268 = vmatprep.mubr.bf16.mxu0 %v2100
    %2269 = vmatmul.mubr.bf16.gmra.mxu0 %v2099
    %v2270 = vpop.f32.mrf.mxu0
    %v2271 = vadd.f32 %v2138, %v2270
    %v2272 = vpop.f32.mrf.mxu0
    %v2273 = vpop.f32.mrf.mxu0
    %v2274 = vadd.f32 %v2138, %v2273
    %v2275 = vpop.f32.mrf.mxu0
    %2276 = vdwg.mxu0
    %2277 = vadd.xlane.f32.xlu0 %v2271
    %v2278 = vpop.xlane.xlu0 %2277
    %2279 = vadd.xlane.f32.xlu0 %v2274
    %v2280 = vpop.xlane.xlu0 %2279
    %v2281 = vrcp.pop 128.0
    %v2282 = vmul.f32 %v2278, %v2281
    %v2283 = vmul.f32 %v2280, %v2281
    %v2284 = vsub.f32 %v2271, %v2282
    %v2285 = vsub.f32 %v2274, %v2283
    %v2286 = vmul.f32 %v2284, %v2284
    %v2287 = vmul.f32 %v2285, %v2285
    %2288 = vadd.xlane.f32.xlu0 %v2286
    %v2289 = vpop.xlane.xlu0 %2288
    %2290 = vadd.xlane.f32.xlu0 %v2287
    %v2291 = vpop.xlane.xlu0 %2290
    %v2292 = vmul.f32 %v2289, %v2281
    %v2293 = vmul.f32 %v2291, %v2281
    %v2294 = vadd.f32 %v2292, 1e-05
    %v2295 = vadd.f32 %v2293, 1e-05
    %v2296 = vrsqrt.pop %v2294
    %v2297 = vrsqrt.pop %v2295
    %v2298 = vmul.f32 %v2284, %v2296
    %v2299 = vmul.f32 %v2285, %v2297
    %v2300 = vld [vmem:[%s11] sm:$0x1]
    %v2302 = vlaneseq
    %v2303 = vshrl.u32 %v2302, 7
    %v2304 = vsub.s32 0, %v2303
    %v2305 = vrot.slane %v2300, %v2304
    %v2307 = vmul.f32 %v2298, %v2305
    %v2308 = vmul.f32 %v2299, %v2305
    %v2309 = vld [vmem:[%s12] sm:$0x1]
    %v2311 = vlaneseq
    %v2312 = vshrl.u32 %v2311, 7
    %v2313 = vsub.s32 0, %v2312
    %v2314 = vrot.slane %v2309, %v2313
    %v2316 = vadd.f32 %v2307, %v2314
    %v2317 = vadd.f32 %v2308, %v2314
    %vm2318 = vcmp.gt.f32.partialorder %v2316, 0.0
    %vm2319 = vcmp.gt.f32.partialorder %v2317, 0.0
    %v2320 = vmul.f32 %v2316, 0.2
    %v2321 = vmul.f32 %v2317, 0.2
    %v2322 = vsel %vm2318, %v2316, %v2320
    %v2323 = vsel %vm2319, %v2317, %v2321
    %v2324 = vpack.c.bf16 %v2323, %v2322
    %v2325 = vld [vmem:[#allocation14] sm:$0xf]
    %v2326 = vld [vmem:[#allocation14 + $0x4] sm:$0xf]
    %v2327 = vld [vmem:[#allocation14 + $0x8] sm:$0xf]
    %v2328 = vld [vmem:[#allocation14 + $0xc] sm:$0xf]
    %v2329 = vld [vmem:[#allocation14 + $0x10] sm:$0xf]
    %v2330 = vld [vmem:[#allocation14 + $0x14] sm:$0xf]
    %v2331 = vld [vmem:[#allocation14 + $0x18] sm:$0xf]
    %v2332 = vld [vmem:[#allocation14 + $0x1c] sm:$0xf]
    %v2333 = vld [vmem:[#allocation14 + $0x20] sm:$0xf]
    %v2334 = vld [vmem:[#allocation14 + $0x24] sm:$0xf]
    %v2335 = vld [vmem:[#allocation14 + $0x28] sm:$0xf]
    %v2336 = vld [vmem:[#allocation14 + $0x2c] sm:$0xf]
    %v2337 = vld [vmem:[#allocation14 + $0x30] sm:$0xf]
    %v2338 = vld [vmem:[#allocation14 + $0x34] sm:$0xf]
    %v2339 = vld [vmem:[#allocation14 + $0x38] sm:$0xf]
    %v2340 = vld [vmem:[#allocation14 + $0x3c] sm:$0xf]
    %v2341 = vld [vmem:[%s14] sm:$0x1]
    %v2343 = vlaneseq
    %v2344 = vshrl.u32 %v2343, 7
    %v2345 = vsub.s32 0, %v2344
    %v2346 = vrot.slane %v2341, %v2345
    %v2364 = vunpack.c.l.b16 %v2325
    %v2365 = vunpack.c.l.b16 %v2326
    %v2366 = vunpack.c.l.b16 %v2327
    %v2367 = vunpack.c.l.b16 %v2328
    %v2368 = vunpack.c.l.b16 %v2329
    %v2369 = vunpack.c.l.b16 %v2330
    %v2370 = vunpack.c.l.b16 %v2331
    %v2371 = vunpack.c.l.b16 %v2332
    %v2372 = vunpack.c.l.b16 %v2333
    %v2373 = vunpack.c.l.b16 %v2334
    %v2374 = vunpack.c.l.b16 %v2335
    %v2375 = vunpack.c.l.b16 %v2336
    %v2376 = vunpack.c.l.b16 %v2337
    %v2377 = vunpack.c.l.b16 %v2338
    %v2378 = vunpack.c.l.b16 %v2339
    %v2379 = vunpack.c.l.b16 %v2340
    %v2380 = vpack.c.b16 %v2365, %v2364
    %v2381 = vpack.c.b16 %v2367, %v2366
    %v2382 = vpack.c.b16 %v2369, %v2368
    %v2383 = vpack.c.b16 %v2371, %v2370
    %v2384 = vpack.c.b16 %v2373, %v2372
    %v2385 = vpack.c.b16 %v2375, %v2374
    %v2386 = vpack.c.b16 %v2377, %v2376
    %v2387 = vpack.c.b16 %v2379, %v2378
    %2396 = vmatprep.subr.bf16.mxu0 0
    %2397 = vmatpush1.bf16.msra.mxu0 %v2387
    %2398 = vmatprep.subr.bf16.mxu0 0
    %2399 = vmatpush1.bf16.msra.mxu0 %v2386
    %2400 = vmatprep.subr.bf16.mxu0 0
    %2401 = vmatpush1.bf16.msra.mxu0 %v2385
    %2402 = vmatprep.subr.bf16.mxu0 0
    %2403 = vmatpush1.bf16.msra.mxu0 %v2384
    %2404 = vmatprep.subr.bf16.mxu0 0
    %2405 = vmatpush1.bf16.msra.mxu0 %v2383
    %2406 = vmatprep.subr.bf16.mxu0 0
    %2407 = vmatpush1.bf16.msra.mxu0 %v2382
    %2408 = vmatprep.subr.bf16.mxu0 0
    %2409 = vmatpush1.bf16.msra.mxu0 %v2381
    %2410 = vmatprep.subr.bf16.mxu0 0
    %2411 = vmatpush1.bf16.msra.mxu0 %v2380
    %2412 = vmatprep.subr.bf16.mxu0 0
    %2413 = vmatpush2.bf16.msra.mxu0 0
    %2414 = vmatprep.subr.bf16.mxu0 0
    %2415 = vmatpush2.bf16.msra.mxu0 0
    %2416 = vmatprep.subr.bf16.mxu0 0
    %2417 = vmatpush2.bf16.msra.mxu0 0
    %2418 = vmatprep.subr.bf16.mxu0 0
    %2419 = vmatpush2.bf16.msra.mxu0 0
    %2420 = vmatprep.subr.bf16.mxu0 0
    %2421 = vmatpush2.bf16.msra.mxu0 0
    %2422 = vmatprep.subr.bf16.mxu0 0
    %2423 = vmatpush2.bf16.msra.mxu0 0
    %2424 = vmatprep.subr.bf16.mxu0 0
    %2425 = vmatpush2.bf16.msra.mxu0 0
    %2426 = vmatprep.subr.bf16.mxu0 0
    %2427 = vmatpush2.bf16.msra.mxu0 0
    %2428 = vmatprep.mubr.bf16.mxu0 0
    %2429 = vmatmul.mubr.bf16.gmra.mxu0 %v2324
    %v2430 = vpop.f32.mrf.mxu0
    %v2431 = vadd.f32 %v2346, %v2430
    %v2432 = vpop.f32.mrf.mxu0
    %v2433 = vpop.f32.mrf.mxu0
    %v2434 = vadd.f32 %v2346, %v2433
    %v2435 = vpop.f32.mrf.mxu0
    %2436 = vdwg.mxu0
    %v2437 = vtanh.pop %v2431
    %v2438 = vtanh.pop %v2434
    %2439 = vst [vmem:[#allocation16] sm:$0xff] %v2437
    %2440 = vst [vmem:[#allocation16 + $0x8] sm:$0xff] %v2438
    // Predicated region
    $region94: #{tpu_custom_call.1} parent=1 // pred_check
      _
    $region95: #{tpu_custom_call.1} parent=1 // pred_check_branch
      %2442 = sbr.rel (0) target = $region97
    $region96: #{tpu_custom_call.1} parent=1 // pred_region
      %s2444 = ssub.s32 256, 256
      %2445 = vsyncadd [#allocation4], %s2444
      %s2446 = sshll.u32 [#allocation16], 4
      %s2447 = int_to_ptr.vmem [resolvable:$true] %s2446
      %2452 = dma.vmem_to_hbm [thread:$0]  %s2447, 256, %s15, [#allocation4], 128, 128, 8
    $region97: #{tpu_custom_call.1} parent=1 // pred_fallthru
      _
    // Predicated region
    $region98: #{tpu_custom_call.1} parent=1 // pred_check
      _
    $region99: #{tpu_custom_call.1} parent=1 // pred_check_branch
      %2454 = sbr.rel (0) target = $region101
    $region100: #{tpu_custom_call.1} parent=1 // pred_region
      %2455 = dma.done [#allocation4], 256
    $region101: #{tpu_custom_call.1} parent=1 // pred_fallthru
      _
    %2456 = vsyncpa [#allocation3], 1
    %2457 = vsyncpa [#allocation6], 1
    %2458 = vsyncpa [#allocation9], 1
    %2459 = vsyncpa [#allocation12], 1
    %2460 = vsyncpa [#allocation15], 1
    %2461 = vsyncpa [#allocation4], 1

// kernel: tpu_custom_call.1
$region0: #{tpu_custom_call.1}
  #allocation0 [shape = 'u32[]', space=smem, size = 0x4, offset = 0x4, fixed_abs, tag = 'smem constant byte address 0x4 - core index']
  #allocation1 [shape = 'u32[144,128]{1,0:T(1,128)}', space=vmem, size = 0x12000, scoped, tag = 'internal scratch']
  %s0 = inlined_call_operand.hbm [shape: bf16[16,32], index: 0, kind: input, shape index: {}]
  %s1 = inlined_call_operand.hbm [shape: bf16[32,512], index: 1, kind: input, shape index: {}]
  %s2 = inlined_call_operand.hbm [shape: f32[1,512], index: 2, kind: input, shape index: {}]
  %s3 = inlined_call_operand.hbm [shape: bf16[512,512], index: 3, kind: input, shape index: {}]
  %s4 = inlined_call_operand.vmem [shape: f32[1,512], index: 4, kind: input, shape index: {}]
  %s5 = inlined_call_operand.hbm [shape: bf16[512,256], index: 5, kind: input, shape index: {}]
  %s6 = inlined_call_operand.vmem [shape: f32[1,256], index: 6, kind: input, shape index: {}]
  %s7 = inlined_call_operand.hbm [shape: bf16[256,256], index: 7, kind: input, shape index: {}]
  %s8 = inlined_call_operand.vmem [shape: f32[1,256], index: 8, kind: input, shape index: {}]
  %s9 = inlined_call_operand.hbm [shape: bf16[256,128], index: 9, kind: input, shape index: {}]
  %s10 = inlined_call_operand.vmem [shape: f32[1,128], index: 10, kind: input, shape index: {}]
  %s11 = inlined_call_operand.vmem [shape: f32[1,128], index: 11, kind: input, shape index: {}]
  %s12 = inlined_call_operand.vmem [shape: f32[1,128], index: 12, kind: input, shape index: {}]
  %s13 = inlined_call_operand.hbm [shape: bf16[128,128], index: 13, kind: input, shape index: {}]
  %s14 = inlined_call_operand.vmem [shape: f32[1,128], index: 14, kind: input, shape index: {}]
  %s15 = inlined_call_operand.hbm [shape: f32[16,128], index: 15, kind: output, shape index: {}]
  %s16 = sld [smem:[#allocation0]]
  $region102: #{tpu_custom_call.1} parent=0
    _
  %s18 = ssub.s32 1, %s16
  %s19 = scalar_select 0, %s18, %s16
  $region1: #{tpu_custom_call.1} parent=0
    #allocation2 [shape = 'u8[4096]{0}', space=vmem, size = 0x1000, scoped, tag = 'input window, operand 0, single buffered']
    #allocation3 [shape = 's32[1]{0}', space=sflag, size = 0x4, scoped, tag = 'scoped memory for tpu_custom_call.1']
    #allocation4 [shape = 's32[1]{0}', space=sflag, size = 0x4, scoped, tag = 'scoped memory for tpu_custom_call.1']
    #allocation5 [shape = 'u8[32768]{0}', space=vmem, size = 0x8000, scoped, tag = 'input window, operand 1, single buffered']
    #allocation6 [shape = 's32[1]{0}', space=sflag, size = 0x4, scoped, tag = 'scoped memory for tpu_custom_call.1']
    #allocation7 [shape = 'u8[2048]{0}', space=vmem, size = 0x800, scoped, tag = 'input window, operand 2, single buffered']
    #allocation8 [shape = 'u8[524288]{0}', space=vmem, size = 0x80000, scoped, tag = 'input window, operand 3, single buffered']
    #allocation9 [shape = 's32[1]{0}', space=sflag, size = 0x4, scoped, tag = 'scoped memory for tpu_custom_call.1']
    #allocation10 [shape = 'u8[262144]{0}', space=vmem, size = 0x40000, scoped, tag = 'input window, operand 5, single buffered']
    #allocation11 [shape = 'u8[131072]{0}', space=vmem, size = 0x20000, scoped, tag = 'input window, operand 7, single buffered']
    #allocation12 [shape = 's32[1]{0}', space=sflag, size = 0x4, scoped, tag = 'scoped memory for tpu_custom_call.1']
    #allocation13 [shape = 'u8[65536]{0}', space=vmem, size = 0x10000, scoped, tag = 'input window, operand 9, single buffered']
    #allocation14 [shape = 'u8[32768]{0}', space=vmem, size = 0x8000, scoped, tag = 'input window, operand 13, single buffered']
    #allocation15 [shape = 's32[1]{0}', space=sflag, size = 0x4, scoped, tag = 'scoped memory for tpu_custom_call.1']
    #allocation16 [shape = 'u8[8192]{0}', space=vmem, size = 0x2000, scoped, tag = 'output window, operand 0, single buffered']
    %20 = vsyncpa [#allocation3], 0
    %21 = vsyncpa [#allocation6], 0
    %22 = vsyncpa [#allocation9], 0
    %23 = vsyncpa [#allocation12], 0
    %24 = vsyncpa [#allocation15], 0
    %25 = vsyncpa [#allocation4], 0
    // Predicated region
    $region2: #{tpu_custom_call.1} parent=1 // pred_check
      _
    $region3: #{tpu_custom_call.1} parent=1 // pred_check_branch
      %27 = sbr.rel (0) target = $region5
    $region4: #{tpu_custom_call.1} parent=1 // pred_region
      %s29 = ssub.s32 128, 128
      %30 = vsyncadd [#allocation3], %s29
      %s31 = sshll.u32 [#allocation2], 4
      %s32 = int_to_ptr.vmem [resolvable:$true] %s31
      %37 = dma.hbm_to_vmem [thread:$0]  %s0, 128, %s32, [#allocation3], 64, 64, 4
    $region5: #{tpu_custom_call.1} parent=1 // pred_fallthru
      _
    // Predicated region
    $region6: #{tpu_custom_call.1} parent=1 // pred_check
      _
    $region7: #{tpu_custom_call.1} parent=1 // pred_check_branch
      %39 = sbr.rel (0) target = $region9
    $region8: #{tpu_custom_call.1} parent=1 // pred_region
      %s41 = ssub.s32 1024, 1024
      %42 = vsyncadd [#allocation6], %s41
      %s43 = sshll.u32 [#allocation5], 4
      %s44 = int_to_ptr.vmem [resolvable:$true] %s43
      %49 = dma.hbm_to_vmem [thread:$0]  %s1, 1024, %s44, [#allocation6], 256, 256, 16
    $region9: #{tpu_custom_call.1} parent=1 // pred_fallthru
      _
    // Predicated region
    $region10: #{tpu_custom_call.1} parent=1 // pred_check
      _
    $region11: #{tpu_custom_call.1} parent=1 // pred_check_branch
      %51 = sbr.rel (0) target = $region13
    $region12: #{tpu_custom_call.1} parent=1 // pred_region
      %s53 = ssub.s32 64, 64
      %54 = vsyncadd [#allocation6], %s53
      %s56 = sshll.u32 [#allocation7], 4
      %s57 = int_to_ptr.vmem [resolvable:$true] %s56
      %59 = dma.hbm_to_vmem [thread:$0]  %s2, 64, %s57, [#allocation6]
    $region13: #{tpu_custom_call.1} parent=1 // pred_fallthru
      _
    // Predicated region
    $region14: #{tpu_custom_call.1} parent=1 // pred_check
      _
    $region15: #{tpu_custom_call.1} parent=1 // pred_check_branch
      %61 = sbr.rel (0) target = $region17
    $region16: #{tpu_custom_call.1} parent=1 // pred_region
      %s63 = ssub.s32 16384, 16384
      %64 = vsyncadd [#allocation9], %s63
      %s65 = sshll.u32 [#allocation8], 4
      %s66 = int_to_ptr.vmem [resolvable:$true] %s65
      %71 = dma.hbm_to_vmem [thread:$0]  %s3, 16384, %s66, [#allocation9], 256, 256, 16
    $region17: #{tpu_custom_call.1} parent=1 // pred_fallthru
      _
    // Predicated region
    $region18: #{tpu_custom_call.1} parent=1 // pred_check
      _
    $region19: #{tpu_custom_call.1} parent=1 // pred_check_branch
      %73 = sbr.rel (0) target = $region21
    $region20: #{tpu_custom_call.1} parent=1 // pred_region
      _
    $region21: #{tpu_custom_call.1} parent=1 // pred_fallthru
      _
    // Predicated region
    $region22: #{tpu_custom_call.1} parent=1 // pred_check
      _
    $region23: #{tpu_custom_call.1} parent=1 // pred_check_branch
      %75 = sbr.rel (0) target = $region25
    $region24: #{tpu_custom_call.1} parent=1 // pred_region
      %s77 = ssub.s32 8192, 8192
      %78 = vsyncadd [#allocation9], %s77
      %s79 = sshll.u32 [#allocation10], 4
      %s80 = int_to_ptr.vmem [resolvable:$true] %s79
      %85 = dma.hbm_to_vmem [thread:$0]  %s5, 8192, %s80, [#allocation9], 128, 128, 8
    $region25: #{tpu_custom_call.1} parent=1 // pred_fallthru
      _
    // Predicated region
    $region26: #{tpu_custom_call.1} parent=1 // pred_check
      _
    $region27: #{tpu_custom_call.1} parent=1 // pred_check_branch
      %87 = sbr.rel (0) target = $region29
    $region28: #{tpu_custom_call.1} parent=1 // pred_region
      _
    $region29: #{tpu_custom_call.1} parent=1 // pred_fallthru
      _
    // Predicated region
    $region30: #{tpu_custom_call.1} parent=1 // pred_check
      _
    $region31: #{tpu_custom_call.1} parent=1 // pred_check_branch
      %89 = sbr.rel (0) target = $region33
    $region32: #{tpu_custom_call.1} parent=1 // pred_region
      %s91 = ssub.s32 4096, 4096
      %92 = vsyncadd [#allocation12], %s91
      %s93 = sshll.u32 [#allocation11], 4
      %s94 = int_to_ptr.vmem [resolvable:$true] %s93
      %99 = dma.hbm_to_vmem [thread:$0]  %s7, 4096, %s94, [#allocation12], 128, 128, 8
    $region33: #{tpu_custom_call.1} parent=1 // pred_fallthru
      _
    // Predicated region
    $region34: #{tpu_custom_call.1} parent=1 // pred_check
      _
    $region35: #{tpu_custom_call.1} parent=1 // pred_check_branch
      %101 = sbr.rel (0) target = $region37
    $region36: #{tpu_custom_call.1} parent=1 // pred_region
      _
    $region37: #{tpu_custom_call.1} parent=1 // pred_fallthru
      _
    // Predicated region
    $region38: #{tpu_custom_call.1} parent=1 // pred_check
      _
    $region39: #{tpu_custom_call.1} parent=1 // pred_check_branch
      %103 = sbr.rel (0) target = $region41
    $region40: #{tpu_custom_call.1} parent=1 // pred_region
      %s105 = ssub.s32 2048, 2048
      %106 = vsyncadd [#allocation12], %s105
      %s107 = sshll.u32 [#allocation13], 4
      %s108 = int_to_ptr.vmem [resolvable:$true] %s107
      %113 = dma.hbm_to_vmem [thread:$0]  %s9, 2048, %s108, [#allocation12], 64, 64, 4
    $region41: #{tpu_custom_call.1} parent=1 // pred_fallthru
      _
    // Predicated region
    $region42: #{tpu_custom_call.1} parent=1 // pred_check
      _
    $region43: #{tpu_custom_call.1} parent=1 // pred_check_branch
      %115 = sbr.rel (0) target = $region45
    $region44: #{tpu_custom_call.1} parent=1 // pred_region
      _
    $region45: #{tpu_custom_call.1} parent=1 // pred_fallthru
      _
    // Predicated region
    $region46: #{tpu_custom_call.1} parent=1 // pred_check
      _
    $region47: #{tpu_custom_call.1} parent=1 // pred_check_branch
      %117 = sbr.rel (0) target = $region49
    $region48: #{tpu_custom_call.1} parent=1 // pred_region
      _
    $region49: #{tpu_custom_call.1} parent=1 // pred_fallthru
      _
    // Predicated region
    $region50: #{tpu_custom_call.1} parent=1 // pred_check
      _
    $region51: #{tpu_custom_call.1} parent=1 // pred_check_branch
      %119 = sbr.rel (0) target = $region53
    $region52: #{tpu_custom_call.1} parent=1 // pred_region
      _
    $region53: #{tpu_custom_call.1} parent=1 // pred_fallthru
      _
    // Predicated region
    $region54: #{tpu_custom_call.1} parent=1 // pred_check
      _
    $region55: #{tpu_custom_call.1} parent=1 // pred_check_branch
      %121 = sbr.rel (0) target = $region57
    $region56: #{tpu_custom_call.1} parent=1 // pred_region
      %s123 = ssub.s32 1024, 1024
      %124 = vsyncadd [#allocation15], %s123
      %s125 = sshll.u32 [#allocation14], 4
      %s126 = int_to_ptr.vmem [resolvable:$true] %s125
      %131 = dma.hbm_to_vmem [thread:$0]  %s13, 1024, %s126, [#allocation15], 64, 64, 4
    $region57: #{tpu_custom_call.1} parent=1 // pred_fallthru
      _
    // Predicated region
    $region58: #{tpu_custom_call.1} parent=1 // pred_check
      _
    $region59: #{tpu_custom_call.1} parent=1 // pred_check_branch
      %133 = sbr.rel (0) target = $region61
    $region60: #{tpu_custom_call.1} parent=1 // pred_region
      _
    $region61: #{tpu_custom_call.1} parent=1 // pred_fallthru
      _
    // Predicated region
    $region62: #{tpu_custom_call.1} parent=1 // pred_check
      _
    $region63: #{tpu_custom_call.1} parent=1 // pred_check_branch
      %135 = sbr.rel (0) target = $region65
    $region64: #{tpu_custom_call.1} parent=1 // pred_region
      %136 = dma.done [#allocation3], 128
    $region65: #{tpu_custom_call.1} parent=1 // pred_fallthru
      _
    // Predicated region
    $region66: #{tpu_custom_call.1} parent=1 // pred_check
      _
    $region67: #{tpu_custom_call.1} parent=1 // pred_check_branch
      %138 = sbr.rel (0) target = $region69
    $region68: #{tpu_custom_call.1} parent=1 // pred_region
      %139 = dma.done [#allocation6], 1024
    $region69: #{tpu_custom_call.1} parent=1 // pred_fallthru
      _
    // Predicated region
    $region70: #{tpu_custom_call.1} parent=1 // pred_check
      _
    $region71: #{tpu_custom_call.1} parent=1 // pred_check_branch
      %141 = sbr.rel (0) target = $region73
    $region72: #{tpu_custom_call.1} parent=1 // pred_region
      %142 = dma.done [#allocation6], 64
    $region73: #{tpu_custom_call.1} parent=1 // pred_fallthru
      _
    // Predicated region
    $region74: #{tpu_custom_call.1} parent=1 // pred_check
      _
    $region75: #{tpu_custom_call.1} parent=1 // pred_check_branch
      %144 = sbr.rel (0) target = $region77
    $region76: #{tpu_custom_call.1} parent=1 // pred_region
      %145 = dma.done [#allocation9], 16384
    $region77: #{tpu_custom_call.1} parent=1 // pred_fallthru
      _
    // Predicated region
    $region78: #{tpu_custom_call.1} parent=1 // pred_check
      _
    $region79: #{tpu_custom_call.1} parent=1 // pred_check_branch
      %147 = sbr.rel (0) target = $region81
    $region80: #{tpu_custom_call.1} parent=1 // pred_region
      %148 = dma.done [#allocation9], 8192
    $region81: #{tpu_custom_call.1} parent=1 // pred_fallthru
      _
    // Predicated region
    $region82: #{tpu_custom_call.1} parent=1 // pred_check
      _
    $region83: #{tpu_custom_call.1} parent=1 // pred_check_branch
      %150 = sbr.rel (0) target = $region85
    $region84: #{tpu_custom_call.1} parent=1 // pred_region
      %151 = dma.done [#allocation12], 4096
    $region85: #{tpu_custom_call.1} parent=1 // pred_fallthru
      _
    // Predicated region
    $region86: #{tpu_custom_call.1} parent=1 // pred_check
      _
    $region87: #{tpu_custom_call.1} parent=1 // pred_check_branch
      %153 = sbr.rel (0) target = $region89
    $region88: #{tpu_custom_call.1} parent=1 // pred_region
      %154 = dma.done [#allocation12], 2048
    $region89: #{tpu_custom_call.1} parent=1 // pred_fallthru
      _
    // Predicated region
    $region90: #{tpu_custom_call.1} parent=1 // pred_check
      _
    $region91: #{tpu_custom_call.1} parent=1 // pred_check_branch
      %156 = sbr.rel (0) target = $region93
    $region92: #{tpu_custom_call.1} parent=1 // pred_region
      %157 = dma.done [#allocation15], 1024
    $region93: #{tpu_custom_call.1} parent=1 // pred_fallthru
      _
    %v159 = vld [vmem:[#allocation2] sm:$0xf]
    %v160 = vld [vmem:[#allocation2 + $0x4] sm:$0xf]
    %v161 = vld [vmem:[#allocation5] sm:$0xff]
    %v162 = vld [vmem:[#allocation5 + $0x8] sm:$0xff]
    %v163 = vld [vmem:[#allocation5 + $0x10] sm:$0xff]
    %v164 = vld [vmem:[#allocation5 + $0x18] sm:$0xff]
    %v165 = vld [vmem:[#allocation5 + $0x20] sm:$0xff]
    %v166 = vld [vmem:[#allocation5 + $0x28] sm:$0xff]
    %v167 = vld [vmem:[#allocation5 + $0x30] sm:$0xff]
    %v168 = vld [vmem:[#allocation5 + $0x38] sm:$0xff]
    %v169 = vld [vmem:[#allocation7] sm:$0xf]
    %v171 = vlaneseq
    %v172 = vshrl.u32 %v171, 7
    %v173 = vsub.s32 0, %v172
    %v174 = vrot.slane %v169, %v173
    %v175 = vlaneseq
    %v176 = vshrl.u32 %v175, 7
    %v177 = vsub.s32 1, %v176
    %v178 = vrot.slane %v169, %v177
    %v179 = vlaneseq
    %v180 = vshrl.u32 %v179, 7
    %v181 = vsub.s32 2, %v180
    %v182 = vrot.slane %v169, %v181
    %v183 = vlaneseq
    %v184 = vshrl.u32 %v183, 7
    %v185 = vsub.s32 3, %v184
    %v186 = vrot.slane %v169, %v185
    %v193 = vunpack.c.l.b16 %v159
    %v194 = vunpack.c.l.b16 %v160
    %v195 = vpack.c.b16 %v194, %v193
    %v204 = vunpack.c.l.b16 %v161
    %v205 = vunpack.c.h.b16 %v161
    %v206 = vunpack.c.l.b16 %v162
    %v207 = vunpack.c.h.b16 %v162
    %v208 = vunpack.c.l.b16 %v163
    %v209 = vunpack.c.h.b16 %v163
    %v210 = vunpack.c.l.b16 %v164
    %v211 = vunpack.c.h.b16 %v164
    %v212 = vunpack.c.l.b16 %v165
    %v213 = vunpack.c.h.b16 %v165
    %v214 = vunpack.c.l.b16 %v166
    %v215 = vunpack.c.h.b16 %v166
    %v216 = vunpack.c.l.b16 %v167
    %v217 = vunpack.c.h.b16 %v167
    %v218 = vunpack.c.l.b16 %v168
    %v219 = vunpack.c.h.b16 %v168
    %v220 = vpack.c.b16 %v208, %v204
    %v221 = vpack.c.b16 %v209, %v205
    %v222 = vpack.c.b16 %v210, %v206
    %v223 = vpack.c.b16 %v211, %v207
    %v224 = vpack.c.b16 %v216, %v212
    %v225 = vpack.c.b16 %v217, %v213
    %v226 = vpack.c.b16 %v218, %v214
    %v227 = vpack.c.b16 %v219, %v215
    %vm236 = vcmask 261120
    %v238 = vsel %vm236, %v195, 0
    %240 = vmatprep.subr.bf16.mxu0 0
    %241 = vmatpush1.bf16.msra.mxu0 0
    %242 = vmatprep.subr.bf16.mxu0 0
    %243 = vmatpush1.bf16.msra.mxu0 0
    %244 = vmatprep.subr.bf16.mxu0 0
    %245 = vmatpush1.bf16.msra.mxu0 0
    %246 = vmatprep.subr.bf16.mxu0 0
    %247 = vmatpush1.bf16.msra.mxu0 0
    %248 = vmatprep.subr.bf16.mxu0 0
    %249 = vmatpush1.bf16.msra.mxu0 0
    %250 = vmatprep.subr.bf16.mxu0 0
    %251 = vmatpush1.bf16.msra.mxu0 0
    %252 = vmatprep.subr.bf16.mxu0 %v225
    %253 = vmatpush1.bf16.msra.mxu0 %v224
    %254 = vmatprep.subr.bf16.mxu0 %v221
    %255 = vmatpush1.bf16.msra.mxu0 %v220
    %256 = vmatprep.subr.bf16.mxu0 0
    %257 = vmatpush2.bf16.msra.mxu0 0
    %258 = vmatprep.subr.bf16.mxu0 0
    %259 = vmatpush2.bf16.msra.mxu0 0
    %260 = vmatprep.subr.bf16.mxu0 0
    %261 = vmatpush2.bf16.msra.mxu0 0
    %262 = vmatprep.subr.bf16.mxu0 0
    %263 = vmatpush2.bf16.msra.mxu0 0
    %264 = vmatprep.subr.bf16.mxu0 0
    %265 = vmatpush2.bf16.msra.mxu0 0
    %266 = vmatprep.subr.bf16.mxu0 0
    %267 = vmatpush2.bf16.msra.mxu0 0
    %268 = vmatprep.subr.bf16.mxu0 0
    %269 = vmatpush2.bf16.msra.mxu0 0
    %270 = vmatprep.subr.bf16.mxu0 0
    %271 = vmatpush2.bf16.msra.mxu0 0
    %272 = vmatprep.mubr.bf16.mxu0 0
    %273 = vmatmul.mubr.bf16.gmra.mxu0 %v238
    %v274 = vpop.f32.mrf.mxu0
    %v275 = vadd.f32 %v174, %v274
    %v276 = vpop.f32.mrf.mxu0
    %v277 = vadd.f32 %v178, %v276
    %v278 = vpop.f32.mrf.mxu0
    %v279 = vadd.f32 %v174, %v278
    %v280 = vpop.f32.mrf.mxu0
    %v281 = vadd.f32 %v178, %v280
    %282 = vdwg.mxu0
    %283 = vmatprep.subr.bf16.mxu0 0
    %284 = vmatpush1.bf16.msra.mxu0 0
    %285 = vmatprep.subr.bf16.mxu0 0
    %286 = vmatpush1.bf16.msra.mxu0 0
    %287 = vmatprep.subr.bf16.mxu0 0
    %288 = vmatpush1.bf16.msra.mxu0 0
    %289 = vmatprep.subr.bf16.mxu0 0
    %290 = vmatpush1.bf16.msra.mxu0 0
    %291 = vmatprep.subr.bf16.mxu0 0
    %292 = vmatpush1.bf16.msra.mxu0 0
    %293 = vmatprep.subr.bf16.mxu0 0
    %294 = vmatpush1.bf16.msra.mxu0 0
    %295 = vmatprep.subr.bf16.mxu0 %v227
    %296 = vmatpush1.bf16.msra.mxu0 %v226
    %297 = vmatprep.subr.bf16.mxu0 %v223
    %298 = vmatpush1.bf16.msra.mxu0 %v222
    %299 = vmatprep.subr.bf16.mxu0 0
    %300 = vmatpush2.bf16.msra.mxu0 0
    %301 = vmatprep.subr.bf16.mxu0 0
    %302 = vmatpush2.bf16.msra.mxu0 0
    %303 = vmatprep.subr.bf16.mxu0 0
    %304 = vmatpush2.bf16.msra.mxu0 0
    %305 = vmatprep.subr.bf16.mxu0 0
    %306 = vmatpush2.bf16.msra.mxu0 0
    %307 = vmatprep.subr.bf16.mxu0 0
    %308 = vmatpush2.bf16.msra.mxu0 0
    %309 = vmatprep.subr.bf16.mxu0 0
    %310 = vmatpush2.bf16.msra.mxu0 0
    %311 = vmatprep.subr.bf16.mxu0 0
    %312 = vmatpush2.bf16.msra.mxu0 0
    %313 = vmatprep.subr.bf16.mxu0 0
    %314 = vmatpush2.bf16.msra.mxu0 0
    %315 = vmatprep.mubr.bf16.mxu0 0
    %316 = vmatmul.mubr.bf16.gmra.mxu0 %v238
    %v317 = vpop.f32.mrf.mxu0
    %v318 = vadd.f32 %v182, %v317
    %v319 = vpop.f32.mrf.mxu0
    %v320 = vadd.f32 %v186, %v319
    %v321 = vpop.f32.mrf.mxu0
    %v322 = vadd.f32 %v182, %v321
    %v323 = vpop.f32.mrf.mxu0
    %v324 = vadd.f32 %v186, %v323
    %325 = vdwg.mxu0
    %vm326 = vcmp.gt.f32.partialorder %v275, 0.0
    %vm327 = vcmp.gt.f32.partialorder %v277, 0.0
    %vm328 = vcmp.gt.f32.partialorder %v318, 0.0
    %vm329 = vcmp.gt.f32.partialorder %v320, 0.0
    %vm330 = vcmp.gt.f32.partialorder %v279, 0.0
    %vm331 = vcmp.gt.f32.partialorder %v281, 0.0
    %vm332 = vcmp.gt.f32.partialorder %v322, 0.0
    %vm333 = vcmp.gt.f32.partialorder %v324, 0.0
    %v334 = vmul.f32 %v275, 0.2
    %v335 = vmul.f32 %v277, 0.2
    %v336 = vmul.f32 %v318, 0.2
    %v337 = vmul.f32 %v320, 0.2
    %v338 = vmul.f32 %v279, 0.2
    %v339 = vmul.f32 %v281, 0.2
    %v340 = vmul.f32 %v322, 0.2
    %v341 = vmul.f32 %v324, 0.2
    %v342 = vsel %vm326, %v275, %v334
    %v343 = vsel %vm327, %v277, %v335
    %v344 = vsel %vm328, %v318, %v336
    %v345 = vsel %vm329, %v320, %v337
    %v346 = vsel %vm330, %v279, %v338
    %v347 = vsel %vm331, %v281, %v339
    %v348 = vsel %vm332, %v322, %v340
    %v349 = vsel %vm333, %v324, %v341
    %v350 = vpack.c.bf16 %v346, %v342
    %v351 = vpack.c.bf16 %v347, %v343
    %v352 = vpack.c.bf16 %v348, %v344
    %v353 = vpack.c.bf16 %v349, %v345
    %v354 = vld [vmem:[#allocation8] sm:$0xff]
    %v355 = vld [vmem:[#allocation8 + $0x8] sm:$0xff]
    %v356 = vld [vmem:[#allocation8 + $0x10] sm:$0xff]
    %v357 = vld [vmem:[#allocation8 + $0x18] sm:$0xff]
    %v358 = vld [vmem:[#allocation8 + $0x20] sm:$0xff]
    %v359 = vld [vmem:[#allocation8 + $0x28] sm:$0xff]
    %v360 = vld [vmem:[#allocation8 + $0x30] sm:$0xff]
    %v361 = vld [vmem:[#allocation8 + $0x38] sm:$0xff]
    %v362 = vld [vmem:[#allocation8 + $0x40] sm:$0xff]
    %v363 = vld [vmem:[#allocation8 + $0x48] sm:$0xff]
    %v364 = vld [vmem:[#allocation8 + $0x50] sm:$0xff]
    %v365 = vld [vmem:[#allocation8 + $0x58] sm:$0xff]
    %v366 = vld [vmem:[#allocation8 + $0x60] sm:$0xff]
    %v367 = vld [vmem:[#allocation8 + $0x68] sm:$0xff]
    %v368 = vld [vmem:[#allocation8 + $0x70] sm:$0xff]
    %v369 = vld [vmem:[#allocation8 + $0x78] sm:$0xff]
    %v370 = vld [vmem:[#allocation8 + $0x80] sm:$0xff]
    %v371 = vld [vmem:[#allocation8 + $0x88] sm:$0xff]
    %v372 = vld [vmem:[#allocation8 + $0x90] sm:$0xff]
    %v373 = vld [vmem:[#allocation8 + $0x98] sm:$0xff]
    %v374 = vld [vmem:[#allocation8 + $0xa0] sm:$0xff]
    %v375 = vld [vmem:[#allocation8 + $0xa8] sm:$0xff]
    %v376 = vld [vmem:[#allocation8 + $0xb0] sm:$0xff]
    %v377 = vld [vmem:[#allocation8 + $0xb8] sm:$0xff]
    %v378 = vld [vmem:[#allocation8 + $0xc0] sm:$0xff]
    %v379 = vld [vmem:[#allocation8 + $0xc8] sm:$0xff]
    %v380 = vld [vmem:[#allocation8 + $0xd0] sm:$0xff]
    %v381 = vld [vmem:[#allocation8 + $0xd8] sm:$0xff]
    %v382 = vld [vmem:[#allocation8 + $0xe0] sm:$0xff]
    %v383 = vld [vmem:[#allocation8 + $0xe8] sm:$0xff]
    %v384 = vld [vmem:[#allocation8 + $0xf0] sm:$0xff]
    %v385 = vld [vmem:[#allocation8 + $0xf8] sm:$0xff]
    %v386 = vld [vmem:[#allocation8 + $0x100] sm:$0xff]
    %v387 = vld [vmem:[#allocation8 + $0x108] sm:$0xff]
    %v388 = vld [vmem:[#allocation8 + $0x110] sm:$0xff]
    %v389 = vld [vmem:[#allocation8 + $0x118] sm:$0xff]
    %v390 = vld [vmem:[#allocation8 + $0x120] sm:$0xff]
    %v391 = vld [vmem:[#allocation8 + $0x128] sm:$0xff]
    %v392 = vld [vmem:[#allocation8 + $0x130] sm:$0xff]
    %v393 = vld [vmem:[#allocation8 + $0x138] sm:$0xff]
    %v394 = vld [vmem:[#allocation8 + $0x140] sm:$0xff]
    %v395 = vld [vmem:[#allocation8 + $0x148] sm:$0xff]
    %v396 = vld [vmem:[#allocation8 + $0x150] sm:$0xff]
    %v397 = vld [vmem:[#allocation8 + $0x158] sm:$0xff]
    %v398 = vld [vmem:[#allocation8 + $0x160] sm:$0xff]
    %v399 = vld [vmem:[#allocation8 + $0x168] sm:$0xff]
    %v400 = vld [vmem:[#allocation8 + $0x170] sm:$0xff]
    %v401 = vld [vmem:[#allocation8 + $0x178] sm:$0xff]
    %v402 = vld [vmem:[#allocation8 + $0x180] sm:$0xff]
    %v403 = vld [vmem:[#allocation8 + $0x188] sm:$0xff]
    %v404 = vld [vmem:[#allocation8 + $0x190] sm:$0xff]
    %v405 = vld [vmem:[#allocation8 + $0x198] sm:$0xff]
    %v406 = vld [vmem:[#allocation8 + $0x1a0] sm:$0xff]
    %v407 = vld [vmem:[#allocation8 + $0x1a8] sm:$0xff]
    %v408 = vld [vmem:[#allocation8 + $0x1b0] sm:$0xff]
    %v409 = vld [vmem:[#allocation8 + $0x1b8] sm:$0xff]
    %v410 = vld [vmem:[#allocation8 + $0x1c0] sm:$0xff]
    %v411 = vld [vmem:[#allocation8 + $0x1c8] sm:$0xff]
    %v412 = vld [vmem:[#allocation8 + $0x1d0] sm:$0xff]
    %v413 = vld [vmem:[#allocation8 + $0x1d8] sm:$0xff]
    %v414 = vld [vmem:[#allocation8 + $0x1e0] sm:$0xff]
    %v415 = vld [vmem:[#allocation8 + $0x1e8] sm:$0xff]
    %v416 = vld [vmem:[#allocation8 + $0x1f0] sm:$0xff]
    %v417 = vld [vmem:[#allocation8 + $0x1f8] sm:$0xff]
    %v418 = vld [vmem:[#allocation8 + $0x200] sm:$0xff]
    %v419 = vld [vmem:[#allocation8 + $0x208] sm:$0xff]
    %v420 = vld [vmem:[#allocation8 + $0x210] sm:$0xff]
    %v421 = vld [vmem:[#allocation8 + $0x218] sm:$0xff]
    %v422 = vld [vmem:[#allocation8 + $0x220] sm:$0xff]
    %v423 = vld [vmem:[#allocation8 + $0x228] sm:$0xff]
    %v424 = vld [vmem:[#allocation8 + $0x230] sm:$0xff]
    %v425 = vld [vmem:[#allocation8 + $0x238] sm:$0xff]
    %v426 = vld [vmem:[#allocation8 + $0x240] sm:$0xff]
    %v427 = vld [vmem:[#allocation8 + $0x248] sm:$0xff]
    %v428 = vld [vmem:[#allocation8 + $0x250] sm:$0xff]
    %v429 = vld [vmem:[#allocation8 + $0x258] sm:$0xff]
    %v430 = vld [vmem:[#allocation8 + $0x260] sm:$0xff]
    %v431 = vld [vmem:[#allocation8 + $0x268] sm:$0xff]
    %v432 = vld [vmem:[#allocation8 + $0x270] sm:$0xff]
    %v433 = vld [vmem:[#allocation8 + $0x278] sm:$0xff]
    %v434 = vld [vmem:[#allocation8 + $0x280] sm:$0xff]
    %v435 = vld [vmem:[#allocation8 + $0x288] sm:$0xff]
    %v436 = vld [vmem:[#allocation8 + $0x290] sm:$0xff]
    %v437 = vld [vmem:[#allocation8 + $0x298] sm:$0xff]
    %v438 = vld [vmem:[#allocation8 + $0x2a0] sm:$0xff]
    %v439 = vld [vmem:[#allocation8 + $0x2a8] sm:$0xff]
    %v440 = vld [vmem:[#allocation8 + $0x2b0] sm:$0xff]
    %v441 = vld [vmem:[#allocation8 + $0x2b8] sm:$0xff]
    %v442 = vld [vmem:[#allocation8 + $0x2c0] sm:$0xff]
    %v443 = vld [vmem:[#allocation8 + $0x2c8] sm:$0xff]
    %v444 = vld [vmem:[#allocation8 + $0x2d0] sm:$0xff]
    %v445 = vld [vmem:[#allocation8 + $0x2d8] sm:$0xff]
    %v446 = vld [vmem:[#allocation8 + $0x2e0] sm:$0xff]
    %v447 = vld [vmem:[#allocation8 + $0x2e8] sm:$0xff]
    %v448 = vld [vmem:[#allocation8 + $0x2f0] sm:$0xff]
    %v449 = vld [vmem:[#allocation8 + $0x2f8] sm:$0xff]
    %v450 = vld [vmem:[#allocation8 + $0x300] sm:$0xff]
    %v451 = vld [vmem:[#allocation8 + $0x308] sm:$0xff]
    %v452 = vld [vmem:[#allocation8 + $0x310] sm:$0xff]
    %v453 = vld [vmem:[#allocation8 + $0x318] sm:$0xff]
    %v454 = vld [vmem:[#allocation8 + $0x320] sm:$0xff]
    %v455 = vld [vmem:[#allocation8 + $0x328] sm:$0xff]
    %v456 = vld [vmem:[#allocation8 + $0x330] sm:$0xff]
    %v457 = vld [vmem:[#allocation8 + $0x338] sm:$0xff]
    %v458 = vld [vmem:[#allocation8 + $0x340] sm:$0xff]
    %v459 = vld [vmem:[#allocation8 + $0x348] sm:$0xff]
    %v460 = vld [vmem:[#allocation8 + $0x350] sm:$0xff]
    %v461 = vld [vmem:[#allocation8 + $0x358] sm:$0xff]
    %v462 = vld [vmem:[#allocation8 + $0x360] sm:$0xff]
    %v463 = vld [vmem:[#allocation8 + $0x368] sm:$0xff]
    %v464 = vld [vmem:[#allocation8 + $0x370] sm:$0xff]
    %v465 = vld [vmem:[#allocation8 + $0x378] sm:$0xff]
    %v466 = vld [vmem:[#allocation8 + $0x380] sm:$0xff]
    %v467 = vld [vmem:[#allocation8 + $0x388] sm:$0xff]
    %v468 = vld [vmem:[#allocation8 + $0x390] sm:$0xff]
    %v469 = vld [vmem:[#allocation8 + $0x398] sm:$0xff]
    %v470 = vld [vmem:[#allocation8 + $0x3a0] sm:$0xff]
    %v471 = vld [vmem:[#allocation8 + $0x3a8] sm:$0xff]
    %v472 = vld [vmem:[#allocation8 + $0x3b0] sm:$0xff]
    %v473 = vld [vmem:[#allocation8 + $0x3b8] sm:$0xff]
    %v474 = vld [vmem:[#allocation8 + $0x3c0] sm:$0xff]
    %v475 = vld [vmem:[#allocation8 + $0x3c8] sm:$0xff]
    %v476 = vld [vmem:[#allocation8 + $0x3d0] sm:$0xff]
    %v477 = vld [vmem:[#allocation8 + $0x3d8] sm:$0xff]
    %v478 = vld [vmem:[#allocation8 + $0x3e0] sm:$0xff]
    %v479 = vld [vmem:[#allocation8 + $0x3e8] sm:$0xff]
    %v480 = vld [vmem:[#allocation8 + $0x3f0] sm:$0xff]
    %v481 = vld [vmem:[#allocation8 + $0x3f8] sm:$0xff]
    %v482 = vld [vmem:[%s4] sm:$0xf]
    %v484 = vlaneseq
    %v485 = vshrl.u32 %v484, 7
    %v486 = vsub.s32 0, %v485
    %v487 = vrot.slane %v482, %v486
    %v488 = vlaneseq
    %v489 = vshrl.u32 %v488, 7
    %v490 = vsub.s32 1, %v489
    %v491 = vrot.slane %v482, %v490
    %v492 = vlaneseq
    %v493 = vshrl.u32 %v492, 7
    %v494 = vsub.s32 2, %v493
    %v495 = vrot.slane %v482, %v494
    %v496 = vlaneseq
    %v497 = vshrl.u32 %v496, 7
    %v498 = vsub.s32 3, %v497
    %v499 = vrot.slane %v482, %v498
    %v632 = vunpack.c.l.b16 %v354
    %v633 = vunpack.c.h.b16 %v354
    %v634 = vunpack.c.l.b16 %v355
    %v635 = vunpack.c.h.b16 %v355
    %v636 = vunpack.c.l.b16 %v356
    %v637 = vunpack.c.h.b16 %v356
    %v638 = vunpack.c.l.b16 %v357
    %v639 = vunpack.c.h.b16 %v357
    %v640 = vunpack.c.l.b16 %v358
    %v641 = vunpack.c.h.b16 %v358
    %v642 = vunpack.c.l.b16 %v359
    %v643 = vunpack.c.h.b16 %v359
    %v644 = vunpack.c.l.b16 %v360
    %v645 = vunpack.c.h.b16 %v360
    %v646 = vunpack.c.l.b16 %v361
    %v647 = vunpack.c.h.b16 %v361
    %v648 = vunpack.c.l.b16 %v362
    %v649 = vunpack.c.h.b16 %v362
    %v650 = vunpack.c.l.b16 %v363
    %v651 = vunpack.c.h.b16 %v363
    %v652 = vunpack.c.l.b16 %v364
    %v653 = vunpack.c.h.b16 %v364
    %v654 = vunpack.c.l.b16 %v365
    %v655 = vunpack.c.h.b16 %v365
    %v656 = vunpack.c.l.b16 %v366
    %v657 = vunpack.c.h.b16 %v366
    %v658 = vunpack.c.l.b16 %v367
    %v659 = vunpack.c.h.b16 %v367
    %v660 = vunpack.c.l.b16 %v368
    %v661 = vunpack.c.h.b16 %v368
    %v662 = vunpack.c.l.b16 %v369
    %v663 = vunpack.c.h.b16 %v369
    %v664 = vunpack.c.l.b16 %v370
    %v665 = vunpack.c.h.b16 %v370
    %v666 = vunpack.c.l.b16 %v371
    %v667 = vunpack.c.h.b16 %v371
    %v668 = vunpack.c.l.b16 %v372
    %v669 = vunpack.c.h.b16 %v372
    %v670 = vunpack.c.l.b16 %v373
    %v671 = vunpack.c.h.b16 %v373
    %v672 = vunpack.c.l.b16 %v374
    %v673 = vunpack.c.h.b16 %v374
    %v674 = vunpack.c.l.b16 %v375
    %v675 = vunpack.c.h.b16 %v375
    %v676 = vunpack.c.l.b16 %v376
    %v677 = vunpack.c.h.b16 %v376
    %v678 = vunpack.c.l.b16 %v377
    %v679 = vunpack.c.h.b16 %v377
    %v680 = vunpack.c.l.b16 %v378
    %v681 = vunpack.c.h.b16 %v378
    %v682 = vunpack.c.l.b16 %v379
    %v683 = vunpack.c.h.b16 %v379
    %v684 = vunpack.c.l.b16 %v380
    %v685 = vunpack.c.h.b16 %v380
    %v686 = vunpack.c.l.b16 %v381
    %v687 = vunpack.c.h.b16 %v381
    %v688 = vunpack.c.l.b16 %v382
    %v689 = vunpack.c.h.b16 %v382
    %v690 = vunpack.c.l.b16 %v383
    %v691 = vunpack.c.h.b16 %v383
    %v692 = vunpack.c.l.b16 %v384
    %v693 = vunpack.c.h.b16 %v384
    %v694 = vunpack.c.l.b16 %v385
    %v695 = vunpack.c.h.b16 %v385
    %v696 = vunpack.c.l.b16 %v386
    %v697 = vunpack.c.h.b16 %v386
    %v698 = vunpack.c.l.b16 %v387
    %v699 = vunpack.c.h.b16 %v387
    %v700 = vunpack.c.l.b16 %v388
    %v701 = vunpack.c.h.b16 %v388
    %v702 = vunpack.c.l.b16 %v389
    %v703 = vunpack.c.h.b16 %v389
    %v704 = vunpack.c.l.b16 %v390
    %v705 = vunpack.c.h.b16 %v390
    %v706 = vunpack.c.l.b16 %v391
    %v707 = vunpack.c.h.b16 %v391
    %v708 = vunpack.c.l.b16 %v392
    %v709 = vunpack.c.h.b16 %v392
    %v710 = vunpack.c.l.b16 %v393
    %v711 = vunpack.c.h.b16 %v393
    %v712 = vunpack.c.l.b16 %v394
    %v713 = vunpack.c.h.b16 %v394
    %v714 = vunpack.c.l.b16 %v395
    %v715 = vunpack.c.h.b16 %v395
    %v716 = vunpack.c.l.b16 %v396
    %v717 = vunpack.c.h.b16 %v396
    %v718 = vunpack.c.l.b16 %v397
    %v719 = vunpack.c.h.b16 %v397
    %v720 = vunpack.c.l.b16 %v398
    %v721 = vunpack.c.h.b16 %v398
    %v722 = vunpack.c.l.b16 %v399
    %v723 = vunpack.c.h.b16 %v399
    %v724 = vunpack.c.l.b16 %v400
    %v725 = vunpack.c.h.b16 %v400
    %v726 = vunpack.c.l.b16 %v401
    %v727 = vunpack.c.h.b16 %v401
    %v728 = vunpack.c.l.b16 %v402
    %v729 = vunpack.c.h.b16 %v402
    %v730 = vunpack.c.l.b16 %v403
    %v731 = vunpack.c.h.b16 %v403
    %v732 = vunpack.c.l.b16 %v404
    %v733 = vunpack.c.h.b16 %v404
    %v734 = vunpack.c.l.b16 %v405
    %v735 = vunpack.c.h.b16 %v405
    %v736 = vunpack.c.l.b16 %v406
    %v737 = vunpack.c.h.b16 %v406
    %v738 = vunpack.c.l.b16 %v407
    %v739 = vunpack.c.h.b16 %v407
    %v740 = vunpack.c.l.b16 %v408
    %v741 = vunpack.c.h.b16 %v408
    %v742 = vunpack.c.l.b16 %v409
    %v743 = vunpack.c.h.b16 %v409
    %v744 = vunpack.c.l.b16 %v410
    %v745 = vunpack.c.h.b16 %v410
    %v746 = vunpack.c.l.b16 %v411
    %v747 = vunpack.c.h.b16 %v411
    %v748 = vunpack.c.l.b16 %v412
    %v749 = vunpack.c.h.b16 %v412
    %v750 = vunpack.c.l.b16 %v413
    %v751 = vunpack.c.h.b16 %v413
    %v752 = vunpack.c.l.b16 %v414
    %v753 = vunpack.c.h.b16 %v414
    %v754 = vunpack.c.l.b16 %v415
    %v755 = vunpack.c.h.b16 %v415
    %v756 = vunpack.c.l.b16 %v416
    %v757 = vunpack.c.h.b16 %v416
    %v758 = vunpack.c.l.b16 %v417
    %v759 = vunpack.c.h.b16 %v417
    %v760 = vunpack.c.l.b16 %v418
    %v761 = vunpack.c.h.b16 %v418
    %v762 = vunpack.c.l.b16 %v419
    %v763 = vunpack.c.h.b16 %v419
    %v764 = vunpack.c.l.b16 %v420
    %v765 = vunpack.c.h.b16 %v420
    %v766 = vunpack.c.l.b16 %v421
    %v767 = vunpack.c.h.b16 %v421
    %v768 = vunpack.c.l.b16 %v422
    %v769 = vunpack.c.h.b16 %v422
    %v770 = vunpack.c.l.b16 %v423
    %v771 = vunpack.c.h.b16 %v423
    %v772 = vunpack.c.l.b16 %v424
    %v773 = vunpack.c.h.b16 %v424
    %v774 = vunpack.c.l.b16 %v425
    %v775 = vunpack.c.h.b16 %v425
    %v776 = vunpack.c.l.b16 %v426
    %v777 = vunpack.c.h.b16 %v426
    %v778 = vunpack.c.l.b16 %v427
    %v779 = vunpack.c.h.b16 %v427
    %v780 = vunpack.c.l.b16 %v428
    %v781 = vunpack.c.h.b16 %v428
    %v782 = vunpack.c.l.b16 %v429
    %v783 = vunpack.c.h.b16 %v429
    %v784 = vunpack.c.l.b16 %v430
    %v785 = vunpack.c.h.b16 %v430
    %v786 = vunpack.c.l.b16 %v431
    %v787 = vunpack.c.h.b16 %v431
    %v788 = vunpack.c.l.b16 %v432
    %v789 = vunpack.c.h.b16 %v432
    %v790 = vunpack.c.l.b16 %v433
    %v791 = vunpack.c.h.b16 %v433
    %v792 = vunpack.c.l.b16 %v434
    %v793 = vunpack.c.h.b16 %v434
    %v794 = vunpack.c.l.b16 %v435
    %v795 = vunpack.c.h.b16 %v435
    %v796 = vunpack.c.l.b16 %v436
    %v797 = vunpack.c.h.b16 %v436
    %v798 = vunpack.c.l.b16 %v437
    %v799 = vunpack.c.h.b16 %v437
    %v800 = vunpack.c.l.b16 %v438
    %v801 = vunpack.c.h.b16 %v438
    %v802 = vunpack.c.l.b16 %v439
    %v803 = vunpack.c.h.b16 %v439
    %v804 = vunpack.c.l.b16 %v440
    %v805 = vunpack.c.h.b16 %v440
    %v806 = vunpack.c.l.b16 %v441
    %v807 = vunpack.c.h.b16 %v441
    %v808 = vunpack.c.l.b16 %v442
    %v809 = vunpack.c.h.b16 %v442
    %v810 = vunpack.c.l.b16 %v443
    %v811 = vunpack.c.h.b16 %v443
    %v812 = vunpack.c.l.b16 %v444
    %v813 = vunpack.c.h.b16 %v444
    %v814 = vunpack.c.l.b16 %v445
    %v815 = vunpack.c.h.b16 %v445
    %v816 = vunpack.c.l.b16 %v446
    %v817 = vunpack.c.h.b16 %v446
    %v818 = vunpack.c.l.b16 %v447
    %v819 = vunpack.c.h.b16 %v447
    %v820 = vunpack.c.l.b16 %v448
    %v821 = vunpack.c.h.b16 %v448
    %v822 = vunpack.c.l.b16 %v449
    %v823 = vunpack.c.h.b16 %v449
    %v824 = vunpack.c.l.b16 %v450
    %v825 = vunpack.c.h.b16 %v450
    %v826 = vunpack.c.l.b16 %v451
    %v827 = vunpack.c.h.b16 %v451
    %v828 = vunpack.c.l.b16 %v452
    %v829 = vunpack.c.h.b16 %v452
    %v830 = vunpack.c.l.b16 %v453
    %v831 = vunpack.c.h.b16 %v453
    %v832 = vunpack.c.l.b16 %v454
    %v833 = vunpack.c.h.b16 %v454
    %v834 = vunpack.c.l.b16 %v455
    %v835 = vunpack.c.h.b16 %v455
    %v836 = vunpack.c.l.b16 %v456
    %v837 = vunpack.c.h.b16 %v456
    %v838 = vunpack.c.l.b16 %v457
    %v839 = vunpack.c.h.b16 %v457
    %v840 = vunpack.c.l.b16 %v458
    %v841 = vunpack.c.h.b16 %v458
    %v842 = vunpack.c.l.b16 %v459
    %v843 = vunpack.c.h.b16 %v459
    %v844 = vunpack.c.l.b16 %v460
    %v845 = vunpack.c.h.b16 %v460
    %v846 = vunpack.c.l.b16 %v461
    %v847 = vunpack.c.h.b16 %v461
    %v848 = vunpack.c.l.b16 %v462
    %v849 = vunpack.c.h.b16 %v462
    %v850 = vunpack.c.l.b16 %v463
    %v851 = vunpack.c.h.b16 %v463
    %v852 = vunpack.c.l.b16 %v464
    %v853 = vunpack.c.h.b16 %v464
    %v854 = vunpack.c.l.b16 %v465
    %v855 = vunpack.c.h.b16 %v465
    %v856 = vunpack.c.l.b16 %v466
    %v857 = vunpack.c.h.b16 %v466
    %v858 = vunpack.c.l.b16 %v467
    %v859 = vunpack.c.h.b16 %v467
    %v860 = vunpack.c.l.b16 %v468
    %v861 = vunpack.c.h.b16 %v468
    %v862 = vunpack.c.l.b16 %v469
    %v863 = vunpack.c.h.b16 %v469
    %v864 = vunpack.c.l.b16 %v470
    %v865 = vunpack.c.h.b16 %v470
    %v866 = vunpack.c.l.b16 %v471
    %v867 = vunpack.c.h.b16 %v471
    %v868 = vunpack.c.l.b16 %v472
    %v869 = vunpack.c.h.b16 %v472
    %v870 = vunpack.c.l.b16 %v473
    %v871 = vunpack.c.h.b16 %v473
    %v872 = vunpack.c.l.b16 %v474
    %v873 = vunpack.c.h.b16 %v474
    %v874 = vunpack.c.l.b16 %v475
    %v875 = vunpack.c.h.b16 %v475
    %v876 = vunpack.c.l.b16 %v476
    %v877 = vunpack.c.h.b16 %v476
    %v878 = vunpack.c.l.b16 %v477
    %v879 = vunpack.c.h.b16 %v477
    %v880 = vunpack.c.l.b16 %v478
    %v881 = vunpack.c.h.b16 %v478
    %v882 = vunpack.c.l.b16 %v479
    %v883 = vunpack.c.h.b16 %v479
    %v884 = vunpack.c.l.b16 %v480
    %v885 = vunpack.c.h.b16 %v480
    %v886 = vunpack.c.l.b16 %v481
    %v887 = vunpack.c.h.b16 %v481
    %v888 = vpack.c.b16 %v636, %v632
    %v889 = vpack.c.b16 %v637, %v633
    %v890 = vpack.c.b16 %v638, %v634
    %v891 = vpack.c.b16 %v639, %v635
    %v892 = vpack.c.b16 %v644, %v640
    %v893 = vpack.c.b16 %v645, %v641
    %v894 = vpack.c.b16 %v646, %v642
    %v895 = vpack.c.b16 %v647, %v643
    %v896 = vpack.c.b16 %v652, %v648
    %v897 = vpack.c.b16 %v653, %v649
    %v898 = vpack.c.b16 %v654, %v650
    %v899 = vpack.c.b16 %v655, %v651
    %v900 = vpack.c.b16 %v660, %v656
    %v901 = vpack.c.b16 %v661, %v657
    %v902 = vpack.c.b16 %v662, %v658
    %v903 = vpack.c.b16 %v663, %v659
    %v904 = vpack.c.b16 %v668, %v664
    %v905 = vpack.c.b16 %v669, %v665
    %v906 = vpack.c.b16 %v670, %v666
    %v907 = vpack.c.b16 %v671, %v667
    %v908 = vpack.c.b16 %v676, %v672
    %v909 = vpack.c.b16 %v677, %v673
    %v910 = vpack.c.b16 %v678, %v674
    %v911 = vpack.c.b16 %v679, %v675
    %v912 = vpack.c.b16 %v684, %v680
    %v913 = vpack.c.b16 %v685, %v681
    %v914 = vpack.c.b16 %v686, %v682
    %v915 = vpack.c.b16 %v687, %v683
    %v916 = vpack.c.b16 %v692, %v688
    %v917 = vpack.c.b16 %v693, %v689
    %v918 = vpack.c.b16 %v694, %v690
    %v919 = vpack.c.b16 %v695, %v691
    %v920 = vpack.c.b16 %v700, %v696
    %v921 = vpack.c.b16 %v701, %v697
    %v922 = vpack.c.b16 %v702, %v698
    %v923 = vpack.c.b16 %v703, %v699
    %v924 = vpack.c.b16 %v708, %v704
    %v925 = vpack.c.b16 %v709, %v705
    %v926 = vpack.c.b16 %v710, %v706
    %v927 = vpack.c.b16 %v711, %v707
    %v928 = vpack.c.b16 %v716, %v712
    %v929 = vpack.c.b16 %v717, %v713
    %v930 = vpack.c.b16 %v718, %v714
    %v931 = vpack.c.b16 %v719, %v715
    %v932 = vpack.c.b16 %v724, %v720
    %v933 = vpack.c.b16 %v725, %v721
    %v934 = vpack.c.b16 %v726, %v722
    %v935 = vpack.c.b16 %v727, %v723
    %v936 = vpack.c.b16 %v732, %v728
    %v937 = vpack.c.b16 %v733, %v729
    %v938 = vpack.c.b16 %v734, %v730
    %v939 = vpack.c.b16 %v735, %v731
    %v940 = vpack.c.b16 %v740, %v736
    %v941 = vpack.c.b16 %v741, %v737
    %v942 = vpack.c.b16 %v742, %v738
    %v943 = vpack.c.b16 %v743, %v739
    %v944 = vpack.c.b16 %v748, %v744
    %v945 = vpack.c.b16 %v749, %v745
    %v946 = vpack.c.b16 %v750, %v746
    %v947 = vpack.c.b16 %v751, %v747
    %v948 = vpack.c.b16 %v756, %v752
    %v949 = vpack.c.b16 %v757, %v753
    %v950 = vpack.c.b16 %v758, %v754
    %v951 = vpack.c.b16 %v759, %v755
    %v952 = vpack.c.b16 %v764, %v760
    %v953 = vpack.c.b16 %v765, %v761
    %v954 = vpack.c.b16 %v766, %v762
    %v955 = vpack.c.b16 %v767, %v763
    %v956 = vpack.c.b16 %v772, %v768
    %v957 = vpack.c.b16 %v773, %v769
    %v958 = vpack.c.b16 %v774, %v770
    %v959 = vpack.c.b16 %v775, %v771
    %v960 = vpack.c.b16 %v780, %v776
    %v961 = vpack.c.b16 %v781, %v777
    %v962 = vpack.c.b16 %v782, %v778
    %v963 = vpack.c.b16 %v783, %v779
    %v964 = vpack.c.b16 %v788, %v784
    %v965 = vpack.c.b16 %v789, %v785
    %v966 = vpack.c.b16 %v790, %v786
    %v967 = vpack.c.b16 %v791, %v787
    %v968 = vpack.c.b16 %v796, %v792
    %v969 = vpack.c.b16 %v797, %v793
    %v970 = vpack.c.b16 %v798, %v794
    %v971 = vpack.c.b16 %v799, %v795
    %v972 = vpack.c.b16 %v804, %v800
    %v973 = vpack.c.b16 %v805, %v801
    %v974 = vpack.c.b16 %v806, %v802
    %v975 = vpack.c.b16 %v807, %v803
    %v976 = vpack.c.b16 %v812, %v808
    %v977 = vpack.c.b16 %v813, %v809
    %v978 = vpack.c.b16 %v814, %v810
    %v979 = vpack.c.b16 %v815, %v811
    %v980 = vpack.c.b16 %v820, %v816
    %v981 = vpack.c.b16 %v821, %v817
    %v982 = vpack.c.b16 %v822, %v818
    %v983 = vpack.c.b16 %v823, %v819
    %v984 = vpack.c.b16 %v828, %v824
    %v985 = vpack.c.b16 %v829, %v825
    %v986 = vpack.c.b16 %v830, %v826
    %v987 = vpack.c.b16 %v831, %v827
    %v988 = vpack.c.b16 %v836, %v832
    %v989 = vpack.c.b16 %v837, %v833
    %v990 = vpack.c.b16 %v838, %v834
    %v991 = vpack.c.b16 %v839, %v835
    %v992 = vpack.c.b16 %v844, %v840
    %v993 = vpack.c.b16 %v845, %v841
    %v994 = vpack.c.b16 %v846, %v842
    %v995 = vpack.c.b16 %v847, %v843
    %v996 = vpack.c.b16 %v852, %v848
    %v997 = vpack.c.b16 %v853, %v849
    %v998 = vpack.c.b16 %v854, %v850
    %v999 = vpack.c.b16 %v855, %v851
    %v1000 = vpack.c.b16 %v860, %v856
    %v1001 = vpack.c.b16 %v861, %v857
    %v1002 = vpack.c.b16 %v862, %v858
    %v1003 = vpack.c.b16 %v863, %v859
    %v1004 = vpack.c.b16 %v868, %v864
    %v1005 = vpack.c.b16 %v869, %v865
    %v1006 = vpack.c.b16 %v870, %v866
    %v1007 = vpack.c.b16 %v871, %v867
    %v1008 = vpack.c.b16 %v876, %v872
    %v1009 = vpack.c.b16 %v877, %v873
    %v1010 = vpack.c.b16 %v878, %v874
    %v1011 = vpack.c.b16 %v879, %v875
    %v1012 = vpack.c.b16 %v884, %v880
    %v1013 = vpack.c.b16 %v885, %v881
    %v1014 = vpack.c.b16 %v886, %v882
    %v1015 = vpack.c.b16 %v887, %v883
    %1144 = vmatprep.subr.bf16.mxu0 %v917
    %1145 = vmatpush1.bf16.msra.mxu0 %v916
    %1146 = vmatprep.subr.bf16.mxu0 %v913
    %1147 = vmatpush1.bf16.msra.mxu0 %v912
    %1148 = vmatprep.subr.bf16.mxu0 %v909
    %1149 = vmatpush1.bf16.msra.mxu0 %v908
    %1150 = vmatprep.subr.bf16.mxu0 %v905
    %1151 = vmatpush1.bf16.msra.mxu0 %v904
    %1152 = vmatprep.subr.bf16.mxu0 %v901
    %1153 = vmatpush1.bf16.msra.mxu0 %v900
    %1154 = vmatprep.subr.bf16.mxu0 %v897
    %1155 = vmatpush1.bf16.msra.mxu0 %v896
    %1156 = vmatprep.subr.bf16.mxu0 %v893
    %1157 = vmatpush1.bf16.msra.mxu0 %v892
    %1158 = vmatprep.subr.bf16.mxu0 %v889
    %1159 = vmatpush1.bf16.msra.mxu0 %v888
    %1160 = vmatprep.subr.bf16.mxu0 %v949
    %1161 = vmatpush2.bf16.msra.mxu0 %v948
    %1162 = vmatprep.subr.bf16.mxu0 %v945
    %1163 = vmatpush2.bf16.msra.mxu0 %v944
    %1164 = vmatprep.subr.bf16.mxu0 %v941
    %1165 = vmatpush2.bf16.msra.mxu0 %v940
    %1166 = vmatprep.subr.bf16.mxu0 %v937
    %1167 = vmatpush2.bf16.msra.mxu0 %v936
    %1168 = vmatprep.subr.bf16.mxu0 %v933
    %1169 = vmatpush2.bf16.msra.mxu0 %v932
    %1170 = vmatprep.subr.bf16.mxu0 %v929
    %1171 = vmatpush2.bf16.msra.mxu0 %v928
    %1172 = vmatprep.subr.bf16.mxu0 %v925
    %1173 = vmatpush2.bf16.msra.mxu0 %v924
    %1174 = vmatprep.subr.bf16.mxu0 %v921
    %1175 = vmatpush2.bf16.msra.mxu0 %v920
    %1176 = vmatprep.mubr.bf16.mxu0 %v351
    %1177 = vmatmul.mubr.bf16.gmra.mxu0 %v350
    %v1178 = vpop.f32.mrf.mxu0
    %v1179 = vadd.f32 %v487, %v1178
    %v1180 = vpop.f32.mrf.mxu0
    %v1181 = vadd.f32 %v491, %v1180
    %v1182 = vpop.f32.mrf.mxu0
    %v1183 = vadd.f32 %v487, %v1182
    %v1184 = vpop.f32.mrf.mxu0
    %v1185 = vadd.f32 %v491, %v1184
    %1186 = vdwg.mxu0
    %1187 = vmatprep.subr.bf16.mxu0 %v981
    %1188 = vmatpush1.bf16.msra.mxu0 %v980
    %1189 = vmatprep.subr.bf16.mxu0 %v977
    %1190 = vmatpush1.bf16.msra.mxu0 %v976
    %1191 = vmatprep.subr.bf16.mxu0 %v973
    %1192 = vmatpush1.bf16.msra.mxu0 %v972
    %1193 = vmatprep.subr.bf16.mxu0 %v969
    %1194 = vmatpush1.bf16.msra.mxu0 %v968
    %1195 = vmatprep.subr.bf16.mxu0 %v965
    %1196 = vmatpush1.bf16.msra.mxu0 %v964
    %1197 = vmatprep.subr.bf16.mxu0 %v961
    %1198 = vmatpush1.bf16.msra.mxu0 %v960
    %1199 = vmatprep.subr.bf16.mxu0 %v957
    %1200 = vmatpush1.bf16.msra.mxu0 %v956
    %1201 = vmatprep.subr.bf16.mxu0 %v953
    %1202 = vmatpush1.bf16.msra.mxu0 %v952
    %1203 = vmatprep.subr.bf16.mxu0 %v1013
    %1204 = vmatpush2.bf16.msra.mxu0 %v1012
    %1205 = vmatprep.subr.bf16.mxu0 %v1009
    %1206 = vmatpush2.bf16.msra.mxu0 %v1008
    %1207 = vmatprep.subr.bf16.mxu0 %v1005
    %1208 = vmatpush2.bf16.msra.mxu0 %v1004
    %1209 = vmatprep.subr.bf16.mxu0 %v1001
    %1210 = vmatpush2.bf16.msra.mxu0 %v1000
    %1211 = vmatprep.subr.bf16.mxu0 %v997
    %1212 = vmatpush2.bf16.msra.mxu0 %v996
    %1213 = vmatprep.subr.bf16.mxu0 %v993
    %1214 = vmatpush2.bf16.msra.mxu0 %v992
    %1215 = vmatprep.subr.bf16.mxu0 %v989
    %1216 = vmatpush2.bf16.msra.mxu0 %v988
    %1217 = vmatprep.subr.bf16.mxu0 %v985
    %1218 = vmatpush2.bf16.msra.mxu0 %v984
    %1219 = vmatprep.mubr.bf16.mxu0 %v353
    %1220 = vmatmul.mubr.bf16.gmra.mxu0 %v352
    %v1221 = vpop.f32.mrf.mxu0
    %v1222 = vadd.f32 %v1179, %v1221
    %v1223 = vpop.f32.mrf.mxu0
    %v1224 = vadd.f32 %v1181, %v1223
    %v1225 = vpop.f32.mrf.mxu0
    %v1226 = vadd.f32 %v1183, %v1225
    %v1227 = vpop.f32.mrf.mxu0
    %v1228 = vadd.f32 %v1185, %v1227
    %1229 = vdwg.mxu0
    %1230 = vmatprep.subr.bf16.mxu0 %v919
    %1231 = vmatpush1.bf16.msra.mxu0 %v918
    %1232 = vmatprep.subr.bf16.mxu0 %v915
    %1233 = vmatpush1.bf16.msra.mxu0 %v914
    %1234 = vmatprep.subr.bf16.mxu0 %v911
    %1235 = vmatpush1.bf16.msra.mxu0 %v910
    %1236 = vmatprep.subr.bf16.mxu0 %v907
    %1237 = vmatpush1.bf16.msra.mxu0 %v906
    %1238 = vmatprep.subr.bf16.mxu0 %v903
    %1239 = vmatpush1.bf16.msra.mxu0 %v902
    %1240 = vmatprep.subr.bf16.mxu0 %v899
    %1241 = vmatpush1.bf16.msra.mxu0 %v898
    %1242 = vmatprep.subr.bf16.mxu0 %v895
    %1243 = vmatpush1.bf16.msra.mxu0 %v894
    %1244 = vmatprep.subr.bf16.mxu0 %v891
    %1245 = vmatpush1.bf16.msra.mxu0 %v890
    %1246 = vmatprep.subr.bf16.mxu0 %v951
    %1247 = vmatpush2.bf16.msra.mxu0 %v950
    %1248 = vmatprep.subr.bf16.mxu0 %v947
    %1249 = vmatpush2.bf16.msra.mxu0 %v946
    %1250 = vmatprep.subr.bf16.mxu0 %v943
    %1251 = vmatpush2.bf16.msra.mxu0 %v942
    %1252 = vmatprep.subr.bf16.mxu0 %v939
    %1253 = vmatpush2.bf16.msra.mxu0 %v938
    %1254 = vmatprep.subr.bf16.mxu0 %v935
    %1255 = vmatpush2.bf16.msra.mxu0 %v934
    %1256 = vmatprep.subr.bf16.mxu0 %v931
    %1257 = vmatpush2.bf16.msra.mxu0 %v930
    %1258 = vmatprep.subr.bf16.mxu0 %v927
    %1259 = vmatpush2.bf16.msra.mxu0 %v926
    %1260 = vmatprep.subr.bf16.mxu0 %v923
    %1261 = vmatpush2.bf16.msra.mxu0 %v922
    %1262 = vmatprep.mubr.bf16.mxu0 %v351
    %1263 = vmatmul.mubr.bf16.gmra.mxu0 %v350
    %v1264 = vpop.f32.mrf.mxu0
    %v1265 = vadd.f32 %v495, %v1264
    %v1266 = vpop.f32.mrf.mxu0
    %v1267 = vadd.f32 %v499, %v1266
    %v1268 = vpop.f32.mrf.mxu0
    %v1269 = vadd.f32 %v495, %v1268
    %v1270 = vpop.f32.mrf.mxu0
    %v1271 = vadd.f32 %v499, %v1270
    %1272 = vdwg.mxu0
    %1273 = vmatprep.subr.bf16.mxu0 %v983
    %1274 = vmatpush1.bf16.msra.mxu0 %v982
    %1275 = vmatprep.subr.bf16.mxu0 %v979
    %1276 = vmatpush1.bf16.msra.mxu0 %v978
    %1277 = vmatprep.subr.bf16.mxu0 %v975
    %1278 = vmatpush1.bf16.msra.mxu0 %v974
    %1279 = vmatprep.subr.bf16.mxu0 %v971
    %1280 = vmatpush1.bf16.msra.mxu0 %v970
    %1281 = vmatprep.subr.bf16.mxu0 %v967
    %1282 = vmatpush1.bf16.msra.mxu0 %v966
    %1283 = vmatprep.subr.bf16.mxu0 %v963
    %1284 = vmatpush1.bf16.msra.mxu0 %v962
    %1285 = vmatprep.subr.bf16.mxu0 %v959
    %1286 = vmatpush1.bf16.msra.mxu0 %v958
    %1287 = vmatprep.subr.bf16.mxu0 %v955
    %1288 = vmatpush1.bf16.msra.mxu0 %v954
    %1289 = vmatprep.subr.bf16.mxu0 %v1015
    %1290 = vmatpush2.bf16.msra.mxu0 %v1014
    %1291 = vmatprep.subr.bf16.mxu0 %v1011
    %1292 = vmatpush2.bf16.msra.mxu0 %v1010
    %1293 = vmatprep.subr.bf16.mxu0 %v1007
    %1294 = vmatpush2.bf16.msra.mxu0 %v1006
    %1295 = vmatprep.subr.bf16.mxu0 %v1003
    %1296 = vmatpush2.bf16.msra.mxu0 %v1002
    %1297 = vmatprep.subr.bf16.mxu0 %v999
    %1298 = vmatpush2.bf16.msra.mxu0 %v998
    %1299 = vmatprep.subr.bf16.mxu0 %v995
    %1300 = vmatpush2.bf16.msra.mxu0 %v994
    %1301 = vmatprep.subr.bf16.mxu0 %v991
    %1302 = vmatpush2.bf16.msra.mxu0 %v990
    %1303 = vmatprep.subr.bf16.mxu0 %v987
    %1304 = vmatpush2.bf16.msra.mxu0 %v986
    %1305 = vmatprep.mubr.bf16.mxu0 %v353
    %1306 = vmatmul.mubr.bf16.gmra.mxu0 %v352
    %v1307 = vpop.f32.mrf.mxu0
    %v1308 = vadd.f32 %v1265, %v1307
    %v1309 = vpop.f32.mrf.mxu0
    %v1310 = vadd.f32 %v1267, %v1309
    %v1311 = vpop.f32.mrf.mxu0
    %v1312 = vadd.f32 %v1269, %v1311
    %v1313 = vpop.f32.mrf.mxu0
    %v1314 = vadd.f32 %v1271, %v1313
    %1315 = vdwg.mxu0
    %vm1316 = vcmp.gt.f32.partialorder %v1222, 0.0
    %vm1317 = vcmp.gt.f32.partialorder %v1224, 0.0
    %vm1318 = vcmp.gt.f32.partialorder %v1308, 0.0
    %vm1319 = vcmp.gt.f32.partialorder %v1310, 0.0
    %vm1320 = vcmp.gt.f32.partialorder %v1226, 0.0
    %vm1321 = vcmp.gt.f32.partialorder %v1228, 0.0
    %vm1322 = vcmp.gt.f32.partialorder %v1312, 0.0
    %vm1323 = vcmp.gt.f32.partialorder %v1314, 0.0
    %v1324 = vmul.f32 %v1222, 0.2
    %v1325 = vmul.f32 %v1224, 0.2
    %v1326 = vmul.f32 %v1308, 0.2
    %v1327 = vmul.f32 %v1310, 0.2
    %v1328 = vmul.f32 %v1226, 0.2
    %v1329 = vmul.f32 %v1228, 0.2
    %v1330 = vmul.f32 %v1312, 0.2
    %v1331 = vmul.f32 %v1314, 0.2
    %v1332 = vsel %vm1316, %v1222, %v1324
    %v1333 = vsel %vm1317, %v1224, %v1325
    %v1334 = vsel %vm1318, %v1308, %v1326
    %v1335 = vsel %vm1319, %v1310, %v1327
    %v1336 = vsel %vm1320, %v1226, %v1328
    %v1337 = vsel %vm1321, %v1228, %v1329
    %v1338 = vsel %vm1322, %v1312, %v1330
    %v1339 = vsel %vm1323, %v1314, %v1331
    %v1340 = vpack.c.bf16 %v1336, %v1332
    %v1341 = vpack.c.bf16 %v1337, %v1333
    %v1342 = vpack.c.bf16 %v1338, %v1334
    %v1343 = vpack.c.bf16 %v1339, %v1335
    %v1344 = vld [vmem:[#allocation10] sm:$0xff]
    %v1345 = vld [vmem:[#allocation10 + $0x8] sm:$0xff]
    %v1346 = vld [vmem:[#allocation10 + $0x10] sm:$0xff]
    %v1347 = vld [vmem:[#allocation10 + $0x18] sm:$0xff]
    %v1348 = vld [vmem:[#allocation10 + $0x20] sm:$0xff]
    %v1349 = vld [vmem:[#allocation10 + $0x28] sm:$0xff]
    %v1350 = vld [vmem:[#allocation10 + $0x30] sm:$0xff]
    %v1351 = vld [vmem:[#allocation10 + $0x38] sm:$0xff]
    %v1352 = vld [vmem:[#allocation10 + $0x40] sm:$0xff]
    %v1353 = vld [vmem:[#allocation10 + $0x48] sm:$0xff]
    %v1354 = vld [vmem:[#allocation10 + $0x50] sm:$0xff]
    %v1355 = vld [vmem:[#allocation10 + $0x58] sm:$0xff]
    %v1356 = vld [vmem:[#allocation10 + $0x60] sm:$0xff]
    %v1357 = vld [vmem:[#allocation10 + $0x68] sm:$0xff]
    %v1358 = vld [vmem:[#allocation10 + $0x70] sm:$0xff]
    %v1359 = vld [vmem:[#allocation10 + $0x78] sm:$0xff]
    %v1360 = vld [vmem:[#allocation10 + $0x80] sm:$0xff]
    %v1361 = vld [vmem:[#allocation10 + $0x88] sm:$0xff]
    %v1362 = vld [vmem:[#allocation10 + $0x90] sm:$0xff]
    %v1363 = vld [vmem:[#allocation10 + $0x98] sm:$0xff]
    %v1364 = vld [vmem:[#allocation10 + $0xa0] sm:$0xff]
    %v1365 = vld [vmem:[#allocation10 + $0xa8] sm:$0xff]
    %v1366 = vld [vmem:[#allocation10 + $0xb0] sm:$0xff]
    %v1367 = vld [vmem:[#allocation10 + $0xb8] sm:$0xff]
    %v1368 = vld [vmem:[#allocation10 + $0xc0] sm:$0xff]
    %v1369 = vld [vmem:[#allocation10 + $0xc8] sm:$0xff]
    %v1370 = vld [vmem:[#allocation10 + $0xd0] sm:$0xff]
    %v1371 = vld [vmem:[#allocation10 + $0xd8] sm:$0xff]
    %v1372 = vld [vmem:[#allocation10 + $0xe0] sm:$0xff]
    %v1373 = vld [vmem:[#allocation10 + $0xe8] sm:$0xff]
    %v1374 = vld [vmem:[#allocation10 + $0xf0] sm:$0xff]
    %v1375 = vld [vmem:[#allocation10 + $0xf8] sm:$0xff]
    %v1376 = vld [vmem:[#allocation10 + $0x100] sm:$0xff]
    %v1377 = vld [vmem:[#allocation10 + $0x108] sm:$0xff]
    %v1378 = vld [vmem:[#allocation10 + $0x110] sm:$0xff]
    %v1379 = vld [vmem:[#allocation10 + $0x118] sm:$0xff]
    %v1380 = vld [vmem:[#allocation10 + $0x120] sm:$0xff]
    %v1381 = vld [vmem:[#allocation10 + $0x128] sm:$0xff]
    %v1382 = vld [vmem:[#allocation10 + $0x130] sm:$0xff]
    %v1383 = vld [vmem:[#allocation10 + $0x138] sm:$0xff]
    %v1384 = vld [vmem:[#allocation10 + $0x140] sm:$0xff]
    %v1385 = vld [vmem:[#allocation10 + $0x148] sm:$0xff]
    %v1386 = vld [vmem:[#allocation10 + $0x150] sm:$0xff]
    %v1387 = vld [vmem:[#allocation10 + $0x158] sm:$0xff]
    %v1388 = vld [vmem:[#allocation10 + $0x160] sm:$0xff]
    %v1389 = vld [vmem:[#allocation10 + $0x168] sm:$0xff]
    %v1390 = vld [vmem:[#allocation10 + $0x170] sm:$0xff]
    %v1391 = vld [vmem:[#allocation10 + $0x178] sm:$0xff]
    %v1392 = vld [vmem:[#allocation10 + $0x180] sm:$0xff]
    %v1393 = vld [vmem:[#allocation10 + $0x188] sm:$0xff]
    %v1394 = vld [vmem:[#allocation10 + $0x190] sm:$0xff]
    %v1395 = vld [vmem:[#allocation10 + $0x198] sm:$0xff]
    %v1396 = vld [vmem:[#allocation10 + $0x1a0] sm:$0xff]
    %v1397 = vld [vmem:[#allocation10 + $0x1a8] sm:$0xff]
    %v1398 = vld [vmem:[#allocation10 + $0x1b0] sm:$0xff]
    %v1399 = vld [vmem:[#allocation10 + $0x1b8] sm:$0xff]
    %v1400 = vld [vmem:[#allocation10 + $0x1c0] sm:$0xff]
    %v1401 = vld [vmem:[#allocation10 + $0x1c8] sm:$0xff]
    %v1402 = vld [vmem:[#allocation10 + $0x1d0] sm:$0xff]
    %v1403 = vld [vmem:[#allocation10 + $0x1d8] sm:$0xff]
    %v1404 = vld [vmem:[#allocation10 + $0x1e0] sm:$0xff]
    %v1405 = vld [vmem:[#allocation10 + $0x1e8] sm:$0xff]
    %v1406 = vld [vmem:[#allocation10 + $0x1f0] sm:$0xff]
    %v1407 = vld [vmem:[#allocation10 + $0x1f8] sm:$0xff]
    %v1408 = vld [vmem:[%s6] sm:$0x3]
    %v1410 = vlaneseq
    %v1411 = vshrl.u32 %v1410, 7
    %v1412 = vsub.s32 0, %v1411
    %v1413 = vrot.slane %v1408, %v1412
    %v1414 = vlaneseq
    %v1415 = vshrl.u32 %v1414, 7
    %v1416 = vsub.s32 1, %v1415
    %v1417 = vrot.slane %v1408, %v1416
    %v1484 = vunpack.c.l.b16 %v1344
    %v1485 = vunpack.c.h.b16 %v1344
    %v1486 = vunpack.c.l.b16 %v1345
    %v1487 = vunpack.c.h.b16 %v1345
    %v1488 = vunpack.c.l.b16 %v1346
    %v1489 = vunpack.c.h.b16 %v1346
    %v1490 = vunpack.c.l.b16 %v1347
    %v1491 = vunpack.c.h.b16 %v1347
    %v1492 = vunpack.c.l.b16 %v1348
    %v1493 = vunpack.c.h.b16 %v1348
    %v1494 = vunpack.c.l.b16 %v1349
    %v1495 = vunpack.c.h.b16 %v1349
    %v1496 = vunpack.c.l.b16 %v1350
    %v1497 = vunpack.c.h.b16 %v1350
    %v1498 = vunpack.c.l.b16 %v1351
    %v1499 = vunpack.c.h.b16 %v1351
    %v1500 = vunpack.c.l.b16 %v1352
    %v1501 = vunpack.c.h.b16 %v1352
    %v1502 = vunpack.c.l.b16 %v1353
    %v1503 = vunpack.c.h.b16 %v1353
    %v1504 = vunpack.c.l.b16 %v1354
    %v1505 = vunpack.c.h.b16 %v1354
    %v1506 = vunpack.c.l.b16 %v1355
    %v1507 = vunpack.c.h.b16 %v1355
    %v1508 = vunpack.c.l.b16 %v1356
    %v1509 = vunpack.c.h.b16 %v1356
    %v1510 = vunpack.c.l.b16 %v1357
    %v1511 = vunpack.c.h.b16 %v1357
    %v1512 = vunpack.c.l.b16 %v1358
    %v1513 = vunpack.c.h.b16 %v1358
    %v1514 = vunpack.c.l.b16 %v1359
    %v1515 = vunpack.c.h.b16 %v1359
    %v1516 = vunpack.c.l.b16 %v1360
    %v1517 = vunpack.c.h.b16 %v1360
    %v1518 = vunpack.c.l.b16 %v1361
    %v1519 = vunpack.c.h.b16 %v1361
    %v1520 = vunpack.c.l.b16 %v1362
    %v1521 = vunpack.c.h.b16 %v1362
    %v1522 = vunpack.c.l.b16 %v1363
    %v1523 = vunpack.c.h.b16 %v1363
    %v1524 = vunpack.c.l.b16 %v1364
    %v1525 = vunpack.c.h.b16 %v1364
    %v1526 = vunpack.c.l.b16 %v1365
    %v1527 = vunpack.c.h.b16 %v1365
    %v1528 = vunpack.c.l.b16 %v1366
    %v1529 = vunpack.c.h.b16 %v1366
    %v1530 = vunpack.c.l.b16 %v1367
    %v1531 = vunpack.c.h.b16 %v1367
    %v1532 = vunpack.c.l.b16 %v1368
    %v1533 = vunpack.c.h.b16 %v1368
    %v1534 = vunpack.c.l.b16 %v1369
    %v1535 = vunpack.c.h.b16 %v1369
    %v1536 = vunpack.c.l.b16 %v1370
    %v1537 = vunpack.c.h.b16 %v1370
    %v1538 = vunpack.c.l.b16 %v1371
    %v1539 = vunpack.c.h.b16 %v1371
    %v1540 = vunpack.c.l.b16 %v1372
    %v1541 = vunpack.c.h.b16 %v1372
    %v1542 = vunpack.c.l.b16 %v1373
    %v1543 = vunpack.c.h.b16 %v1373
    %v1544 = vunpack.c.l.b16 %v1374
    %v1545 = vunpack.c.h.b16 %v1374
    %v1546 = vunpack.c.l.b16 %v1375
    %v1547 = vunpack.c.h.b16 %v1375
    %v1548 = vunpack.c.l.b16 %v1376
    %v1549 = vunpack.c.h.b16 %v1376
    %v1550 = vunpack.c.l.b16 %v1377
    %v1551 = vunpack.c.h.b16 %v1377
    %v1552 = vunpack.c.l.b16 %v1378
    %v1553 = vunpack.c.h.b16 %v1378
    %v1554 = vunpack.c.l.b16 %v1379
    %v1555 = vunpack.c.h.b16 %v1379
    %v1556 = vunpack.c.l.b16 %v1380
    %v1557 = vunpack.c.h.b16 %v1380
    %v1558 = vunpack.c.l.b16 %v1381
    %v1559 = vunpack.c.h.b16 %v1381
    %v1560 = vunpack.c.l.b16 %v1382
    %v1561 = vunpack.c.h.b16 %v1382
    %v1562 = vunpack.c.l.b16 %v1383
    %v1563 = vunpack.c.h.b16 %v1383
    %v1564 = vunpack.c.l.b16 %v1384
    %v1565 = vunpack.c.h.b16 %v1384
    %v1566 = vunpack.c.l.b16 %v1385
    %v1567 = vunpack.c.h.b16 %v1385
    %v1568 = vunpack.c.l.b16 %v1386
    %v1569 = vunpack.c.h.b16 %v1386
    %v1570 = vunpack.c.l.b16 %v1387
    %v1571 = vunpack.c.h.b16 %v1387
    %v1572 = vunpack.c.l.b16 %v1388
    %v1573 = vunpack.c.h.b16 %v1388
    %v1574 = vunpack.c.l.b16 %v1389
    %v1575 = vunpack.c.h.b16 %v1389
    %v1576 = vunpack.c.l.b16 %v1390
    %v1577 = vunpack.c.h.b16 %v1390
    %v1578 = vunpack.c.l.b16 %v1391
    %v1579 = vunpack.c.h.b16 %v1391
    %v1580 = vunpack.c.l.b16 %v1392
    %v1581 = vunpack.c.h.b16 %v1392
    %v1582 = vunpack.c.l.b16 %v1393
    %v1583 = vunpack.c.h.b16 %v1393
    %v1584 = vunpack.c.l.b16 %v1394
    %v1585 = vunpack.c.h.b16 %v1394
    %v1586 = vunpack.c.l.b16 %v1395
    %v1587 = vunpack.c.h.b16 %v1395
    %v1588 = vunpack.c.l.b16 %v1396
    %v1589 = vunpack.c.h.b16 %v1396
    %v1590 = vunpack.c.l.b16 %v1397
    %v1591 = vunpack.c.h.b16 %v1397
    %v1592 = vunpack.c.l.b16 %v1398
    %v1593 = vunpack.c.h.b16 %v1398
    %v1594 = vunpack.c.l.b16 %v1399
    %v1595 = vunpack.c.h.b16 %v1399
    %v1596 = vunpack.c.l.b16 %v1400
    %v1597 = vunpack.c.h.b16 %v1400
    %v1598 = vunpack.c.l.b16 %v1401
    %v1599 = vunpack.c.h.b16 %v1401
    %v1600 = vunpack.c.l.b16 %v1402
    %v1601 = vunpack.c.h.b16 %v1402
    %v1602 = vunpack.c.l.b16 %v1403
    %v1603 = vunpack.c.h.b16 %v1403
    %v1604 = vunpack.c.l.b16 %v1404
    %v1605 = vunpack.c.h.b16 %v1404
    %v1606 = vunpack.c.l.b16 %v1405
    %v1607 = vunpack.c.h.b16 %v1405
    %v1608 = vunpack.c.l.b16 %v1406
    %v1609 = vunpack.c.h.b16 %v1406
    %v1610 = vunpack.c.l.b16 %v1407
    %v1611 = vunpack.c.h.b16 %v1407
    %v1612 = vpack.c.b16 %v1486, %v1484
    %v1613 = vpack.c.b16 %v1487, %v1485
    %v1614 = vpack.c.b16 %v1490, %v1488
    %v1615 = vpack.c.b16 %v1491, %v1489
    %v1616 = vpack.c.b16 %v1494, %v1492
    %v1617 = vpack.c.b16 %v1495, %v1493
    %v1618 = vpack.c.b16 %v1498, %v1496
    %v1619 = vpack.c.b16 %v1499, %v1497
    %v1620 = vpack.c.b16 %v1502, %v1500
    %v1621 = vpack.c.b16 %v1503, %v1501
    %v1622 = vpack.c.b16 %v1506, %v1504
    %v1623 = vpack.c.b16 %v1507, %v1505
    %v1624 = vpack.c.b16 %v1510, %v1508
    %v1625 = vpack.c.b16 %v1511, %v1509
    %v1626 = vpack.c.b16 %v1514, %v1512
    %v1627 = vpack.c.b16 %v1515, %v1513
    %v1628 = vpack.c.b16 %v1518, %v1516
    %v1629 = vpack.c.b16 %v1519, %v1517
    %v1630 = vpack.c.b16 %v1522, %v1520
    %v1631 = vpack.c.b16 %v1523, %v1521
    %v1632 = vpack.c.b16 %v1526, %v1524
    %v1633 = vpack.c.b16 %v1527, %v1525
    %v1634 = vpack.c.b16 %v1530, %v1528
    %v1635 = vpack.c.b16 %v1531, %v1529
    %v1636 = vpack.c.b16 %v1534, %v1532
    %v1637 = vpack.c.b16 %v1535, %v1533
    %v1638 = vpack.c.b16 %v1538, %v1536
    %v1639 = vpack.c.b16 %v1539, %v1537
    %v1640 = vpack.c.b16 %v1542, %v1540
    %v1641 = vpack.c.b16 %v1543, %v1541
    %v1642 = vpack.c.b16 %v1546, %v1544
    %v1643 = vpack.c.b16 %v1547, %v1545
    %v1644 = vpack.c.b16 %v1550, %v1548
    %v1645 = vpack.c.b16 %v1551, %v1549
    %v1646 = vpack.c.b16 %v1554, %v1552
    %v1647 = vpack.c.b16 %v1555, %v1553
    %v1648 = vpack.c.b16 %v1558, %v1556
    %v1649 = vpack.c.b16 %v1559, %v1557
    %v1650 = vpack.c.b16 %v1562, %v1560
    %v1651 = vpack.c.b16 %v1563, %v1561
    %v1652 = vpack.c.b16 %v1566, %v1564
    %v1653 = vpack.c.b16 %v1567, %v1565
    %v1654 = vpack.c.b16 %v1570, %v1568
    %v1655 = vpack.c.b16 %v1571, %v1569
    %v1656 = vpack.c.b16 %v1574, %v1572
    %v1657 = vpack.c.b16 %v1575, %v1573
    %v1658 = vpack.c.b16 %v1578, %v1576
    %v1659 = vpack.c.b16 %v1579, %v1577
    %v1660 = vpack.c.b16 %v1582, %v1580
    %v1661 = vpack.c.b16 %v1583, %v1581
    %v1662 = vpack.c.b16 %v1586, %v1584
    %v1663 = vpack.c.b16 %v1587, %v1585
    %v1664 = vpack.c.b16 %v1590, %v1588
    %v1665 = vpack.c.b16 %v1591, %v1589
    %v1666 = vpack.c.b16 %v1594, %v1592
    %v1667 = vpack.c.b16 %v1595, %v1593
    %v1668 = vpack.c.b16 %v1598, %v1596
    %v1669 = vpack.c.b16 %v1599, %v1597
    %v1670 = vpack.c.b16 %v1602, %v1600
    %v1671 = vpack.c.b16 %v1603, %v1601
    %v1672 = vpack.c.b16 %v1606, %v1604
    %v1673 = vpack.c.b16 %v1607, %v1605
    %v1674 = vpack.c.b16 %v1610, %v1608
    %v1675 = vpack.c.b16 %v1611, %v1609
    %1740 = vmatprep.subr.bf16.mxu0 %v1627
    %1741 = vmatpush1.bf16.msra.mxu0 %v1626
    %1742 = vmatprep.subr.bf16.mxu0 %v1625
    %1743 = vmatpush1.bf16.msra.mxu0 %v1624
    %1744 = vmatprep.subr.bf16.mxu0 %v1623
    %1745 = vmatpush1.bf16.msra.mxu0 %v1622
    %1746 = vmatprep.subr.bf16.mxu0 %v1621
    %1747 = vmatpush1.bf16.msra.mxu0 %v1620
    %1748 = vmatprep.subr.bf16.mxu0 %v1619
    %1749 = vmatpush1.bf16.msra.mxu0 %v1618
    %1750 = vmatprep.subr.bf16.mxu0 %v1617
    %1751 = vmatpush1.bf16.msra.mxu0 %v1616
    %1752 = vmatprep.subr.bf16.mxu0 %v1615
    %1753 = vmatpush1.bf16.msra.mxu0 %v1614
    %1754 = vmatprep.subr.bf16.mxu0 %v1613
    %1755 = vmatpush1.bf16.msra.mxu0 %v1612
    %1756 = vmatprep.subr.bf16.mxu0 %v1643
    %1757 = vmatpush2.bf16.msra.mxu0 %v1642
    %1758 = vmatprep.subr.bf16.mxu0 %v1641
    %1759 = vmatpush2.bf16.msra.mxu0 %v1640
    %1760 = vmatprep.subr.bf16.mxu0 %v1639
    %1761 = vmatpush2.bf16.msra.mxu0 %v1638
    %1762 = vmatprep.subr.bf16.mxu0 %v1637
    %1763 = vmatpush2.bf16.msra.mxu0 %v1636
    %1764 = vmatprep.subr.bf16.mxu0 %v1635
    %1765 = vmatpush2.bf16.msra.mxu0 %v1634
    %1766 = vmatprep.subr.bf16.mxu0 %v1633
    %1767 = vmatpush2.bf16.msra.mxu0 %v1632
    %1768 = vmatprep.subr.bf16.mxu0 %v1631
    %1769 = vmatpush2.bf16.msra.mxu0 %v1630
    %1770 = vmatprep.subr.bf16.mxu0 %v1629
    %1771 = vmatpush2.bf16.msra.mxu0 %v1628
    %1772 = vmatprep.mubr.bf16.mxu0 %v1341
    %1773 = vmatmul.mubr.bf16.gmra.mxu0 %v1340
    %v1774 = vpop.f32.mrf.mxu0
    %v1775 = vadd.f32 %v1413, %v1774
    %v1776 = vpop.f32.mrf.mxu0
    %v1777 = vadd.f32 %v1417, %v1776
    %v1778 = vpop.f32.mrf.mxu0
    %v1779 = vadd.f32 %v1413, %v1778
    %v1780 = vpop.f32.mrf.mxu0
    %v1781 = vadd.f32 %v1417, %v1780
    %1782 = vdwg.mxu0
    %1783 = vmatprep.subr.bf16.mxu0 %v1659
    %1784 = vmatpush1.bf16.msra.mxu0 %v1658
    %1785 = vmatprep.subr.bf16.mxu0 %v1657
    %1786 = vmatpush1.bf16.msra.mxu0 %v1656
    %1787 = vmatprep.subr.bf16.mxu0 %v1655
    %1788 = vmatpush1.bf16.msra.mxu0 %v1654
    %1789 = vmatprep.subr.bf16.mxu0 %v1653
    %1790 = vmatpush1.bf16.msra.mxu0 %v1652
    %1791 = vmatprep.subr.bf16.mxu0 %v1651
    %1792 = vmatpush1.bf16.msra.mxu0 %v1650
    %1793 = vmatprep.subr.bf16.mxu0 %v1649
    %1794 = vmatpush1.bf16.msra.mxu0 %v1648
    %1795 = vmatprep.subr.bf16.mxu0 %v1647
    %1796 = vmatpush1.bf16.msra.mxu0 %v1646
    %1797 = vmatprep.subr.bf16.mxu0 %v1645
    %1798 = vmatpush1.bf16.msra.mxu0 %v1644
    %1799 = vmatprep.subr.bf16.mxu0 %v1675
    %1800 = vmatpush2.bf16.msra.mxu0 %v1674
    %1801 = vmatprep.subr.bf16.mxu0 %v1673
    %1802 = vmatpush2.bf16.msra.mxu0 %v1672
    %1803 = vmatprep.subr.bf16.mxu0 %v1671
    %1804 = vmatpush2.bf16.msra.mxu0 %v1670
    %1805 = vmatprep.subr.bf16.mxu0 %v1669
    %1806 = vmatpush2.bf16.msra.mxu0 %v1668
    %1807 = vmatprep.subr.bf16.mxu0 %v1667
    %1808 = vmatpush2.bf16.msra.mxu0 %v1666
    %1809 = vmatprep.subr.bf16.mxu0 %v1665
    %1810 = vmatpush2.bf16.msra.mxu0 %v1664
    %1811 = vmatprep.subr.bf16.mxu0 %v1663
    %1812 = vmatpush2.bf16.msra.mxu0 %v1662
    %1813 = vmatprep.subr.bf16.mxu0 %v1661
    %1814 = vmatpush2.bf16.msra.mxu0 %v1660
    %1815 = vmatprep.mubr.bf16.mxu0 %v1343
    %1816 = vmatmul.mubr.bf16.gmra.mxu0 %v1342
    %v1817 = vpop.f32.mrf.mxu0
    %v1818 = vadd.f32 %v1775, %v1817
    %v1819 = vpop.f32.mrf.mxu0
    %v1820 = vadd.f32 %v1777, %v1819
    %v1821 = vpop.f32.mrf.mxu0
    %v1822 = vadd.f32 %v1779, %v1821
    %v1823 = vpop.f32.mrf.mxu0
    %v1824 = vadd.f32 %v1781, %v1823
    %1825 = vdwg.mxu0
    %vm1826 = vcmp.gt.f32.partialorder %v1818, 0.0
    %vm1827 = vcmp.gt.f32.partialorder %v1820, 0.0
    %vm1828 = vcmp.gt.f32.partialorder %v1822, 0.0
    %vm1829 = vcmp.gt.f32.partialorder %v1824, 0.0
    %v1830 = vmul.f32 %v1818, 0.2
    %v1831 = vmul.f32 %v1820, 0.2
    %v1832 = vmul.f32 %v1822, 0.2
    %v1833 = vmul.f32 %v1824, 0.2
    %v1834 = vsel %vm1826, %v1818, %v1830
    %v1835 = vsel %vm1827, %v1820, %v1831
    %v1836 = vsel %vm1828, %v1822, %v1832
    %v1837 = vsel %vm1829, %v1824, %v1833
    %v1838 = vpack.c.bf16 %v1836, %v1834
    %v1839 = vpack.c.bf16 %v1837, %v1835
    %v1840 = vld [vmem:[#allocation11] sm:$0xff]
    %v1841 = vld [vmem:[#allocation11 + $0x8] sm:$0xff]
    %v1842 = vld [vmem:[#allocation11 + $0x10] sm:$0xff]
    %v1843 = vld [vmem:[#allocation11 + $0x18] sm:$0xff]
    %v1844 = vld [vmem:[#allocation11 + $0x20] sm:$0xff]
    %v1845 = vld [vmem:[#allocation11 + $0x28] sm:$0xff]
    %v1846 = vld [vmem:[#allocation11 + $0x30] sm:$0xff]
    %v1847 = vld [vmem:[#allocation11 + $0x38] sm:$0xff]
    %v1848 = vld [vmem:[#allocation11 + $0x40] sm:$0xff]
    %v1849 = vld [vmem:[#allocation11 + $0x48] sm:$0xff]
    %v1850 = vld [vmem:[#allocation11 + $0x50] sm:$0xff]
    %v1851 = vld [vmem:[#allocation11 + $0x58] sm:$0xff]
    %v1852 = vld [vmem:[#allocation11 + $0x60] sm:$0xff]
    %v1853 = vld [vmem:[#allocation11 + $0x68] sm:$0xff]
    %v1854 = vld [vmem:[#allocation11 + $0x70] sm:$0xff]
    %v1855 = vld [vmem:[#allocation11 + $0x78] sm:$0xff]
    %v1856 = vld [vmem:[#allocation11 + $0x80] sm:$0xff]
    %v1857 = vld [vmem:[#allocation11 + $0x88] sm:$0xff]
    %v1858 = vld [vmem:[#allocation11 + $0x90] sm:$0xff]
    %v1859 = vld [vmem:[#allocation11 + $0x98] sm:$0xff]
    %v1860 = vld [vmem:[#allocation11 + $0xa0] sm:$0xff]
    %v1861 = vld [vmem:[#allocation11 + $0xa8] sm:$0xff]
    %v1862 = vld [vmem:[#allocation11 + $0xb0] sm:$0xff]
    %v1863 = vld [vmem:[#allocation11 + $0xb8] sm:$0xff]
    %v1864 = vld [vmem:[#allocation11 + $0xc0] sm:$0xff]
    %v1865 = vld [vmem:[#allocation11 + $0xc8] sm:$0xff]
    %v1866 = vld [vmem:[#allocation11 + $0xd0] sm:$0xff]
    %v1867 = vld [vmem:[#allocation11 + $0xd8] sm:$0xff]
    %v1868 = vld [vmem:[#allocation11 + $0xe0] sm:$0xff]
    %v1869 = vld [vmem:[#allocation11 + $0xe8] sm:$0xff]
    %v1870 = vld [vmem:[#allocation11 + $0xf0] sm:$0xff]
    %v1871 = vld [vmem:[#allocation11 + $0xf8] sm:$0xff]
    %v1872 = vld [vmem:[%s8] sm:$0x3]
    %v1874 = vlaneseq
    %v1875 = vshrl.u32 %v1874, 7
    %v1876 = vsub.s32 0, %v1875
    %v1877 = vrot.slane %v1872, %v1876
    %v1878 = vlaneseq
    %v1879 = vshrl.u32 %v1878, 7
    %v1880 = vsub.s32 1, %v1879
    %v1881 = vrot.slane %v1872, %v1880
    %v1916 = vunpack.c.l.b16 %v1840
    %v1917 = vunpack.c.h.b16 %v1840
    %v1918 = vunpack.c.l.b16 %v1841
    %v1919 = vunpack.c.h.b16 %v1841
    %v1920 = vunpack.c.l.b16 %v1842
    %v1921 = vunpack.c.h.b16 %v1842
    %v1922 = vunpack.c.l.b16 %v1843
    %v1923 = vunpack.c.h.b16 %v1843
    %v1924 = vunpack.c.l.b16 %v1844
    %v1925 = vunpack.c.h.b16 %v1844
    %v1926 = vunpack.c.l.b16 %v1845
    %v1927 = vunpack.c.h.b16 %v1845
    %v1928 = vunpack.c.l.b16 %v1846
    %v1929 = vunpack.c.h.b16 %v1846
    %v1930 = vunpack.c.l.b16 %v1847
    %v1931 = vunpack.c.h.b16 %v1847
    %v1932 = vunpack.c.l.b16 %v1848
    %v1933 = vunpack.c.h.b16 %v1848
    %v1934 = vunpack.c.l.b16 %v1849
    %v1935 = vunpack.c.h.b16 %v1849
    %v1936 = vunpack.c.l.b16 %v1850
    %v1937 = vunpack.c.h.b16 %v1850
    %v1938 = vunpack.c.l.b16 %v1851
    %v1939 = vunpack.c.h.b16 %v1851
    %v1940 = vunpack.c.l.b16 %v1852
    %v1941 = vunpack.c.h.b16 %v1852
    %v1942 = vunpack.c.l.b16 %v1853
    %v1943 = vunpack.c.h.b16 %v1853
    %v1944 = vunpack.c.l.b16 %v1854
    %v1945 = vunpack.c.h.b16 %v1854
    %v1946 = vunpack.c.l.b16 %v1855
    %v1947 = vunpack.c.h.b16 %v1855
    %v1948 = vunpack.c.l.b16 %v1856
    %v1949 = vunpack.c.h.b16 %v1856
    %v1950 = vunpack.c.l.b16 %v1857
    %v1951 = vunpack.c.h.b16 %v1857
    %v1952 = vunpack.c.l.b16 %v1858
    %v1953 = vunpack.c.h.b16 %v1858
    %v1954 = vunpack.c.l.b16 %v1859
    %v1955 = vunpack.c.h.b16 %v1859
    %v1956 = vunpack.c.l.b16 %v1860
    %v1957 = vunpack.c.h.b16 %v1860
    %v1958 = vunpack.c.l.b16 %v1861
    %v1959 = vunpack.c.h.b16 %v1861
    %v1960 = vunpack.c.l.b16 %v1862
    %v1961 = vunpack.c.h.b16 %v1862
    %v1962 = vunpack.c.l.b16 %v1863
    %v1963 = vunpack.c.h.b16 %v1863
    %v1964 = vunpack.c.l.b16 %v1864
    %v1965 = vunpack.c.h.b16 %v1864
    %v1966 = vunpack.c.l.b16 %v1865
    %v1967 = vunpack.c.h.b16 %v1865
    %v1968 = vunpack.c.l.b16 %v1866
    %v1969 = vunpack.c.h.b16 %v1866
    %v1970 = vunpack.c.l.b16 %v1867
    %v1971 = vunpack.c.h.b16 %v1867
    %v1972 = vunpack.c.l.b16 %v1868
    %v1973 = vunpack.c.h.b16 %v1868
    %v1974 = vunpack.c.l.b16 %v1869
    %v1975 = vunpack.c.h.b16 %v1869
    %v1976 = vunpack.c.l.b16 %v1870
    %v1977 = vunpack.c.h.b16 %v1870
    %v1978 = vunpack.c.l.b16 %v1871
    %v1979 = vunpack.c.h.b16 %v1871
    %v1980 = vpack.c.b16 %v1918, %v1916
    %v1981 = vpack.c.b16 %v1919, %v1917
    %v1982 = vpack.c.b16 %v1922, %v1920
    %v1983 = vpack.c.b16 %v1923, %v1921
    %v1984 = vpack.c.b16 %v1926, %v1924
    %v1985 = vpack.c.b16 %v1927, %v1925
    %v1986 = vpack.c.b16 %v1930, %v1928
    %v1987 = vpack.c.b16 %v1931, %v1929
    %v1988 = vpack.c.b16 %v1934, %v1932
    %v1989 = vpack.c.b16 %v1935, %v1933
    %v1990 = vpack.c.b16 %v1938, %v1936
    %v1991 = vpack.c.b16 %v1939, %v1937
    %v1992 = vpack.c.b16 %v1942, %v1940
    %v1993 = vpack.c.b16 %v1943, %v1941
    %v1994 = vpack.c.b16 %v1946, %v1944
    %v1995 = vpack.c.b16 %v1947, %v1945
    %v1996 = vpack.c.b16 %v1950, %v1948
    %v1997 = vpack.c.b16 %v1951, %v1949
    %v1998 = vpack.c.b16 %v1954, %v1952
    %v1999 = vpack.c.b16 %v1955, %v1953
    %v2000 = vpack.c.b16 %v1958, %v1956
    %v2001 = vpack.c.b16 %v1959, %v1957
    %v2002 = vpack.c.b16 %v1962, %v1960
    %v2003 = vpack.c.b16 %v1963, %v1961
    %v2004 = vpack.c.b16 %v1966, %v1964
    %v2005 = vpack.c.b16 %v1967, %v1965
    %v2006 = vpack.c.b16 %v1970, %v1968
    %v2007 = vpack.c.b16 %v1971, %v1969
    %v2008 = vpack.c.b16 %v1974, %v1972
    %v2009 = vpack.c.b16 %v1975, %v1973
    %v2010 = vpack.c.b16 %v1978, %v1976
    %v2011 = vpack.c.b16 %v1979, %v1977
    %2044 = vmatprep.subr.bf16.mxu0 %v1995
    %2045 = vmatpush1.bf16.msra.mxu0 %v1994
    %2046 = vmatprep.subr.bf16.mxu0 %v1993
    %2047 = vmatpush1.bf16.msra.mxu0 %v1992
    %2048 = vmatprep.subr.bf16.mxu0 %v1991
    %2049 = vmatpush1.bf16.msra.mxu0 %v1990
    %2050 = vmatprep.subr.bf16.mxu0 %v1989
    %2051 = vmatpush1.bf16.msra.mxu0 %v1988
    %2052 = vmatprep.subr.bf16.mxu0 %v1987
    %2053 = vmatpush1.bf16.msra.mxu0 %v1986
    %2054 = vmatprep.subr.bf16.mxu0 %v1985
    %2055 = vmatpush1.bf16.msra.mxu0 %v1984
    %2056 = vmatprep.subr.bf16.mxu0 %v1983
    %2057 = vmatpush1.bf16.msra.mxu0 %v1982
    %2058 = vmatprep.subr.bf16.mxu0 %v1981
    %2059 = vmatpush1.bf16.msra.mxu0 %v1980
    %2060 = vmatprep.subr.bf16.mxu0 %v2011
    %2061 = vmatpush2.bf16.msra.mxu0 %v2010
    %2062 = vmatprep.subr.bf16.mxu0 %v2009
    %2063 = vmatpush2.bf16.msra.mxu0 %v2008
    %2064 = vmatprep.subr.bf16.mxu0 %v2007
    %2065 = vmatpush2.bf16.msra.mxu0 %v2006
    %2066 = vmatprep.subr.bf16.mxu0 %v2005
    %2067 = vmatpush2.bf16.msra.mxu0 %v2004
    %2068 = vmatprep.subr.bf16.mxu0 %v2003
    %2069 = vmatpush2.bf16.msra.mxu0 %v2002
    %2070 = vmatprep.subr.bf16.mxu0 %v2001
    %2071 = vmatpush2.bf16.msra.mxu0 %v2000
    %2072 = vmatprep.subr.bf16.mxu0 %v1999
    %2073 = vmatpush2.bf16.msra.mxu0 %v1998
    %2074 = vmatprep.subr.bf16.mxu0 %v1997
    %2075 = vmatpush2.bf16.msra.mxu0 %v1996
    %2076 = vmatprep.mubr.bf16.mxu0 %v1839
    %2077 = vmatmul.mubr.bf16.gmra.mxu0 %v1838
    %v2078 = vpop.f32.mrf.mxu0
    %v2079 = vadd.f32 %v1877, %v2078
    %v2080 = vpop.f32.mrf.mxu0
    %v2081 = vadd.f32 %v1881, %v2080
    %v2082 = vpop.f32.mrf.mxu0
    %v2083 = vadd.f32 %v1877, %v2082
    %v2084 = vpop.f32.mrf.mxu0
    %v2085 = vadd.f32 %v1881, %v2084
    %2086 = vdwg.mxu0
    %vm2087 = vcmp.gt.f32.partialorder %v2079, 0.0
    %vm2088 = vcmp.gt.f32.partialorder %v2081, 0.0
    %vm2089 = vcmp.gt.f32.partialorder %v2083, 0.0
    %vm2090 = vcmp.gt.f32.partialorder %v2085, 0.0
    %v2091 = vmul.f32 %v2079, 0.2
    %v2092 = vmul.f32 %v2081, 0.2
    %v2093 = vmul.f32 %v2083, 0.2
    %v2094 = vmul.f32 %v2085, 0.2
    %v2095 = vsel %vm2087, %v2079, %v2091
    %v2096 = vsel %vm2088, %v2081, %v2092
    %v2097 = vsel %vm2089, %v2083, %v2093
    %v2098 = vsel %vm2090, %v2085, %v2094
    %v2099 = vpack.c.bf16 %v2097, %v2095
    %v2100 = vpack.c.bf16 %v2098, %v2096
    %v2101 = vld [vmem:[#allocation13] sm:$0xf]
    %v2102 = vld [vmem:[#allocation13 + $0x4] sm:$0xf]
    %v2103 = vld [vmem:[#allocation13 + $0x8] sm:$0xf]
    %v2104 = vld [vmem:[#allocation13 + $0xc] sm:$0xf]
    %v2105 = vld [vmem:[#allocation13 + $0x10] sm:$0xf]
    %v2106 = vld [vmem:[#allocation13 + $0x14] sm:$0xf]
    %v2107 = vld [vmem:[#allocation13 + $0x18] sm:$0xf]
    %v2108 = vld [vmem:[#allocation13 + $0x1c] sm:$0xf]
    %v2109 = vld [vmem:[#allocation13 + $0x20] sm:$0xf]
    %v2110 = vld [vmem:[#allocation13 + $0x24] sm:$0xf]
    %v2111 = vld [vmem:[#allocation13 + $0x28] sm:$0xf]
    %v2112 = vld [vmem:[#allocation13 + $0x2c] sm:$0xf]
    %v2113 = vld [vmem:[#allocation13 + $0x30] sm:$0xf]
    %v2114 = vld [vmem:[#allocation13 + $0x34] sm:$0xf]
    %v2115 = vld [vmem:[#allocation13 + $0x38] sm:$0xf]
    %v2116 = vld [vmem:[#allocation13 + $0x3c] sm:$0xf]
    %v2117 = vld [vmem:[#allocation13 + $0x40] sm:$0xf]
    %v2118 = vld [vmem:[#allocation13 + $0x44] sm:$0xf]
    %v2119 = vld [vmem:[#allocation13 + $0x48] sm:$0xf]
    %v2120 = vld [vmem:[#allocation13 + $0x4c] sm:$0xf]
    %v2121 = vld [vmem:[#allocation13 + $0x50] sm:$0xf]
    %v2122 = vld [vmem:[#allocation13 + $0x54] sm:$0xf]
    %v2123 = vld [vmem:[#allocation13 + $0x58] sm:$0xf]
    %v2124 = vld [vmem:[#allocation13 + $0x5c] sm:$0xf]
    %v2125 = vld [vmem:[#allocation13 + $0x60] sm:$0xf]
    %v2126 = vld [vmem:[#allocation13 + $0x64] sm:$0xf]
    %v2127 = vld [vmem:[#allocation13 + $0x68] sm:$0xf]
    %v2128 = vld [vmem:[#allocation13 + $0x6c] sm:$0xf]
    %v2129 = vld [vmem:[#allocation13 + $0x70] sm:$0xf]
    %v2130 = vld [vmem:[#allocation13 + $0x74] sm:$0xf]
    %v2131 = vld [vmem:[#allocation13 + $0x78] sm:$0xf]
    %v2132 = vld [vmem:[#allocation13 + $0x7c] sm:$0xf]
    %v2133 = vld [vmem:[%s10] sm:$0x1]
    %v2135 = vlaneseq
    %v2136 = vshrl.u32 %v2135, 7
    %v2137 = vsub.s32 0, %v2136
    %v2138 = vrot.slane %v2133, %v2137
    %v2172 = vunpack.c.l.b16 %v2101
    %v2173 = vunpack.c.l.b16 %v2102
    %v2174 = vunpack.c.l.b16 %v2103
    %v2175 = vunpack.c.l.b16 %v2104
    %v2176 = vunpack.c.l.b16 %v2105
    %v2177 = vunpack.c.l.b16 %v2106
    %v2178 = vunpack.c.l.b16 %v2107
    %v2179 = vunpack.c.l.b16 %v2108
    %v2180 = vunpack.c.l.b16 %v2109
    %v2181 = vunpack.c.l.b16 %v2110
    %v2182 = vunpack.c.l.b16 %v2111
    %v2183 = vunpack.c.l.b16 %v2112
    %v2184 = vunpack.c.l.b16 %v2113
    %v2185 = vunpack.c.l.b16 %v2114
    %v2186 = vunpack.c.l.b16 %v2115
    %v2187 = vunpack.c.l.b16 %v2116
    %v2188 = vunpack.c.l.b16 %v2117
    %v2189 = vunpack.c.l.b16 %v2118
    %v2190 = vunpack.c.l.b16 %v2119
    %v2191 = vunpack.c.l.b16 %v2120
    %v2192 = vunpack.c.l.b16 %v2121
    %v2193 = vunpack.c.l.b16 %v2122
    %v2194 = vunpack.c.l.b16 %v2123
    %v2195 = vunpack.c.l.b16 %v2124
    %v2196 = vunpack.c.l.b16 %v2125
    %v2197 = vunpack.c.l.b16 %v2126
    %v2198 = vunpack.c.l.b16 %v2127
    %v2199 = vunpack.c.l.b16 %v2128
    %v2200 = vunpack.c.l.b16 %v2129
    %v2201 = vunpack.c.l.b16 %v2130
    %v2202 = vunpack.c.l.b16 %v2131
    %v2203 = vunpack.c.l.b16 %v2132
    %v2204 = vpack.c.b16 %v2173, %v2172
    %v2205 = vpack.c.b16 %v2175, %v2174
    %v2206 = vpack.c.b16 %v2177, %v2176
    %v2207 = vpack.c.b16 %v2179, %v2178
    %v2208 = vpack.c.b16 %v2181, %v2180
    %v2209 = vpack.c.b16 %v2183, %v2182
    %v2210 = vpack.c.b16 %v2185, %v2184
    %v2211 = vpack.c.b16 %v2187, %v2186
    %v2212 = vpack.c.b16 %v2189, %v2188
    %v2213 = vpack.c.b16 %v2191, %v2190
    %v2214 = vpack.c.b16 %v2193, %v2192
    %v2215 = vpack.c.b16 %v2195, %v2194
    %v2216 = vpack.c.b16 %v2197, %v2196
    %v2217 = vpack.c.b16 %v2199, %v2198
    %v2218 = vpack.c.b16 %v2201, %v2200
    %v2219 = vpack.c.b16 %v2203, %v2202
    %2236 = vmatprep.subr.bf16.mxu0 0
    %2237 = vmatpush1.bf16.msra.mxu0 %v2211
    %2238 = vmatprep.subr.bf16.mxu0 0
    %2239 = vmatpush1.bf16.msra.mxu0 %v2210
    %2240 = vmatprep.subr.bf16.mxu0 0
    %2241 = vmatpush1.bf16.msra.mxu0 %v2209
    %2242 = vmatprep.subr.bf16.mxu0 0
    %2243 = vmatpush1.bf16.msra.mxu0 %v2208
    %2244 = vmatprep.subr.bf16.mxu0 0
    %2245 = vmatpush1.bf16.msra.mxu0 %v2207
    %2246 = vmatprep.subr.bf16.mxu0 0
    %2247 = vmatpush1.bf16.msra.mxu0 %v2206
    %2248 = vmatprep.subr.bf16.mxu0 0
    %2249 = vmatpush1.bf16.msra.mxu0 %v2205
    %2250 = vmatprep.subr.bf16.mxu0 0
    %2251 = vmatpush1.bf16.msra.mxu0 %v2204
    %2252 = vmatprep.subr.bf16.mxu0 0
    %2253 = vmatpush2.bf16.msra.mxu0 %v2219
    %2254 = vmatprep.subr.bf16.mxu0 0
    %2255 = vmatpush2.bf16.msra.mxu0 %v2218
    %2256 = vmatprep.subr.bf16.mxu0 0
    %2257 = vmatpush2.bf16.msra.mxu0 %v2217
    %2258 = vmatprep.subr.bf16.mxu0 0
    %2259 = vmatpush2.bf16.msra.mxu0 %v2216
    %2260 = vmatprep.subr.bf16.mxu0 0
    %2261 = vmatpush2.bf16.msra.mxu0 %v2215
    %2262 = vmatprep.subr.bf16.mxu0 0
    %2263 = vmatpush2.bf16.msra.mxu0 %v2214
    %2264 = vmatprep.subr.bf16.mxu0 0
    %2265 = vmatpush2.bf16.msra.mxu0 %v2213
    %2266 = vmatprep.subr.bf16.mxu0 0
    %2267 = vmatpush2.bf16.msra.mxu0 %v2212
    %2268 = vmatprep.mubr.bf16.mxu0 %v2100
    %2269 = vmatmul.mubr.bf16.gmra.mxu0 %v2099
    %v2270 = vpop.f32.mrf.mxu0
    %v2271 = vadd.f32 %v2138, %v2270
    %v2272 = vpop.f32.mrf.mxu0
    %v2273 = vpop.f32.mrf.mxu0
    %v2274 = vadd.f32 %v2138, %v2273
    %v2275 = vpop.f32.mrf.mxu0
    %2276 = vdwg.mxu0
    %2277 = vadd.xlane.f32.xlu0 %v2271
    %v2278 = vpop.xlane.xlu0 %2277
    %2279 = vadd.xlane.f32.xlu0 %v2274
    %v2280 = vpop.xlane.xlu0 %2279
    %v2281 = vrcp.pop 128.0
    %v2282 = vmul.f32 %v2278, %v2281
    %v2283 = vmul.f32 %v2280, %v2281
    %v2284 = vsub.f32 %v2271, %v2282
    %v2285 = vsub.f32 %v2274, %v2283
    %v2286 = vmul.f32 %v2284, %v2284
    %v2287 = vmul.f32 %v2285, %v2285
    %2288 = vadd.xlane.f32.xlu0 %v2286
    %v2289 = vpop.xlane.xlu0 %2288
    %2290 = vadd.xlane.f32.xlu0 %v2287
    %v2291 = vpop.xlane.xlu0 %2290
    %v2292 = vmul.f32 %v2289, %v2281
    %v2293 = vmul.f32 %v2291, %v2281
    %v2294 = vadd.f32 %v2292, 1e-05
    %v2295 = vadd.f32 %v2293, 1e-05
    %v2296 = vrsqrt.pop %v2294
    %v2297 = vrsqrt.pop %v2295
    %v2298 = vmul.f32 %v2284, %v2296
    %v2299 = vmul.f32 %v2285, %v2297
    %v2300 = vld [vmem:[%s11] sm:$0x1]
    %v2302 = vlaneseq
    %v2303 = vshrl.u32 %v2302, 7
    %v2304 = vsub.s32 0, %v2303
    %v2305 = vrot.slane %v2300, %v2304
    %v2307 = vmul.f32 %v2298, %v2305
    %v2308 = vmul.f32 %v2299, %v2305
    %v2309 = vld [vmem:[%s12] sm:$0x1]
    %v2311 = vlaneseq
    %v2312 = vshrl.u32 %v2311, 7
    %v2313 = vsub.s32 0, %v2312
    %v2314 = vrot.slane %v2309, %v2313
    %v2316 = vadd.f32 %v2307, %v2314
    %v2317 = vadd.f32 %v2308, %v2314
    %vm2318 = vcmp.gt.f32.partialorder %v2316, 0.0
    %vm2319 = vcmp.gt.f32.partialorder %v2317, 0.0
    %v2320 = vmul.f32 %v2316, 0.2
    %v2321 = vmul.f32 %v2317, 0.2
    %v2322 = vsel %vm2318, %v2316, %v2320
    %v2323 = vsel %vm2319, %v2317, %v2321
    %v2324 = vpack.c.bf16 %v2323, %v2322
    %v2325 = vld [vmem:[#allocation14] sm:$0xf]
    %v2326 = vld [vmem:[#allocation14 + $0x4] sm:$0xf]
    %v2327 = vld [vmem:[#allocation14 + $0x8] sm:$0xf]
    %v2328 = vld [vmem:[#allocation14 + $0xc] sm:$0xf]
    %v2329 = vld [vmem:[#allocation14 + $0x10] sm:$0xf]
    %v2330 = vld [vmem:[#allocation14 + $0x14] sm:$0xf]
    %v2331 = vld [vmem:[#allocation14 + $0x18] sm:$0xf]
    %v2332 = vld [vmem:[#allocation14 + $0x1c] sm:$0xf]
    %v2333 = vld [vmem:[#allocation14 + $0x20] sm:$0xf]
    %v2334 = vld [vmem:[#allocation14 + $0x24] sm:$0xf]
    %v2335 = vld [vmem:[#allocation14 + $0x28] sm:$0xf]
    %v2336 = vld [vmem:[#allocation14 + $0x2c] sm:$0xf]
    %v2337 = vld [vmem:[#allocation14 + $0x30] sm:$0xf]
    %v2338 = vld [vmem:[#allocation14 + $0x34] sm:$0xf]
    %v2339 = vld [vmem:[#allocation14 + $0x38] sm:$0xf]
    %v2340 = vld [vmem:[#allocation14 + $0x3c] sm:$0xf]
    %v2341 = vld [vmem:[%s14] sm:$0x1]
    %v2343 = vlaneseq
    %v2344 = vshrl.u32 %v2343, 7
    %v2345 = vsub.s32 0, %v2344
    %v2346 = vrot.slane %v2341, %v2345
    %v2364 = vunpack.c.l.b16 %v2325
    %v2365 = vunpack.c.l.b16 %v2326
    %v2366 = vunpack.c.l.b16 %v2327
    %v2367 = vunpack.c.l.b16 %v2328
    %v2368 = vunpack.c.l.b16 %v2329
    %v2369 = vunpack.c.l.b16 %v2330
    %v2370 = vunpack.c.l.b16 %v2331
    %v2371 = vunpack.c.l.b16 %v2332
    %v2372 = vunpack.c.l.b16 %v2333
    %v2373 = vunpack.c.l.b16 %v2334
    %v2374 = vunpack.c.l.b16 %v2335
    %v2375 = vunpack.c.l.b16 %v2336
    %v2376 = vunpack.c.l.b16 %v2337
    %v2377 = vunpack.c.l.b16 %v2338
    %v2378 = vunpack.c.l.b16 %v2339
    %v2379 = vunpack.c.l.b16 %v2340
    %v2380 = vpack.c.b16 %v2365, %v2364
    %v2381 = vpack.c.b16 %v2367, %v2366
    %v2382 = vpack.c.b16 %v2369, %v2368
    %v2383 = vpack.c.b16 %v2371, %v2370
    %v2384 = vpack.c.b16 %v2373, %v2372
    %v2385 = vpack.c.b16 %v2375, %v2374
    %v2386 = vpack.c.b16 %v2377, %v2376
    %v2387 = vpack.c.b16 %v2379, %v2378
    %2396 = vmatprep.subr.bf16.mxu0 0
    %2397 = vmatpush1.bf16.msra.mxu0 %v2387
    %2398 = vmatprep.subr.bf16.mxu0 0
    %2399 = vmatpush1.bf16.msra.mxu0 %v2386
    %2400 = vmatprep.subr.bf16.mxu0 0
    %2401 = vmatpush1.bf16.msra.mxu0 %v2385
    %2402 = vmatprep.subr.bf16.mxu0 0
    %2403 = vmatpush1.bf16.msra.mxu0 %v2384
    %2404 = vmatprep.subr.bf16.mxu0 0
    %2405 = vmatpush1.bf16.msra.mxu0 %v2383
    %2406 = vmatprep.subr.bf16.mxu0 0
    %2407 = vmatpush1.bf16.msra.mxu0 %v2382
    %2408 = vmatprep.subr.bf16.mxu0 0
    %2409 = vmatpush1.bf16.msra.mxu0 %v2381
    %2410 = vmatprep.subr.bf16.mxu0 0
    %2411 = vmatpush1.bf16.msra.mxu0 %v2380
    %2412 = vmatprep.subr.bf16.mxu0 0
    %2413 = vmatpush2.bf16.msra.mxu0 0
    %2414 = vmatprep.subr.bf16.mxu0 0
    %2415 = vmatpush2.bf16.msra.mxu0 0
    %2416 = vmatprep.subr.bf16.mxu0 0
    %2417 = vmatpush2.bf16.msra.mxu0 0
    %2418 = vmatprep.subr.bf16.mxu0 0
    %2419 = vmatpush2.bf16.msra.mxu0 0
    %2420 = vmatprep.subr.bf16.mxu0 0
    %2421 = vmatpush2.bf16.msra.mxu0 0
    %2422 = vmatprep.subr.bf16.mxu0 0
    %2423 = vmatpush2.bf16.msra.mxu0 0
    %2424 = vmatprep.subr.bf16.mxu0 0
    %2425 = vmatpush2.bf16.msra.mxu0 0
    %2426 = vmatprep.subr.bf16.mxu0 0
    %2427 = vmatpush2.bf16.msra.mxu0 0
    %2428 = vmatprep.mubr.bf16.mxu0 0
    %2429 = vmatmul.mubr.bf16.gmra.mxu0 %v2324
    %v2430 = vpop.f32.mrf.mxu0
    %v2431 = vadd.f32 %v2346, %v2430
    %v2432 = vpop.f32.mrf.mxu0
    %v2433 = vpop.f32.mrf.mxu0
    %v2434 = vadd.f32 %v2346, %v2433
    %v2435 = vpop.f32.mrf.mxu0
    %2436 = vdwg.mxu0
    %v2437 = vtanh.pop %v2431
    %v2438 = vtanh.pop %v2434
    %2439 = vst [vmem:[#allocation16] sm:$0xff] %v2437
    %2440 = vst [vmem:[#allocation16 + $0x8] sm:$0xff] %v2438
    // Predicated region
    $region94: #{tpu_custom_call.1} parent=1 // pred_check
      _
    $region95: #{tpu_custom_call.1} parent=1 // pred_check_branch
      %2442 = sbr.rel (0) target = $region97
    $region96: #{tpu_custom_call.1} parent=1 // pred_region
      %s2444 = ssub.s32 256, 256
      %2445 = vsyncadd [#allocation4], %s2444
      %s2446 = sshll.u32 [#allocation16], 4
      %s2447 = int_to_ptr.vmem [resolvable:$true] %s2446
      %2452 = dma.vmem_to_hbm [thread:$0]  %s2447, 256, %s15, [#allocation4], 128, 128, 8
    $region97: #{tpu_custom_call.1} parent=1 // pred_fallthru
      _
    // Predicated region
    $region98: #{tpu_custom_call.1} parent=1 // pred_check
      _
    $region99: #{tpu_custom_call.1} parent=1 // pred_check_branch
      %2454 = sbr.rel (0) target = $region101
    $region100: #{tpu_custom_call.1} parent=1 // pred_region
      %2455 = dma.done [#allocation4], 256
    $region101: #{tpu_custom_call.1} parent=1 // pred_fallthru
      _
    %2456 = vsyncpa [#allocation3], 1
    %2457 = vsyncpa [#allocation6], 1
    %2458 = vsyncpa [#allocation9], 1
    %2459 = vsyncpa [#allocation12], 1
    %2460 = vsyncpa [#allocation15], 1
    %2461 = vsyncpa [#allocation4], 1

</llo_original>
